<compile_context>
chip_gen: v7x
topology: tpu7x:2x2x1
jax: 0.10.0
libtpu: 0.0.40
codegen_flags: <defaults>
</compile_context>

<pallas_src>
import jax
import jax.numpy as jnp
from jax import lax
from jax.experimental import pallas as pl
from jax.experimental.pallas import tpu as pltpu

# Beyond this T, switch the (otherwise fully unrolled) time loop to a
# lax.fori_loop so the serial chain does not blow up code size / live ranges.
_UNROLL_T_MAX = 32


def _neural_ode_kernel(dts_ref,                 # SMEM (max(T-1,1),) f32 time deltas
                       x_ref,                   # VMEM (Bp, Din)      mxu dtype
                       w_in_ref, b_in_ref,      # (Din, H) mxu, (1, H) f32
                       w1_ref, b1_ref,          # (H, H)   mxu, (1, H) f32
                       w2_ref, b2_ref,          # (H, H)   mxu, (1, H) f32
                       w_proj_ref, b_proj_ref,  # (H, Dout+1) mxu, (1, Dout+1) f32
                       pk_ref,                  # out VMEM (T*Bp, Dout) f32
                       pd_ref,                  # out VMEM (Bp, 1)      f32
                       h_scratch):              # VMEM (T*Bp, H) f32
    Bp = x_ref.shape[0]
    T = h_scratch.shape[0] // Bp
    Dout = pk_ref.shape[1]

    # Hoist all weight / bias loads out of the time loop (JAX does not CSE
    # broadcasts / loads).  At H=32 this is ~a handful of vregs; for H >= 128
    # re-read w1/w2 from their refs inside odefunc instead (vld is cheap).
    w_in = w_in_ref[...]
    b_in = b_in_ref[...]
    w1 = w1_ref[...]
    b1 = b1_ref[...]
    w2 = w2_ref[...]
    b2 = b2_ref[...]
    mxu = w1.dtype  # bf16 (or f32) MXU operand dtype

    def odefunc(h):
        # Linear -> Tanh -> Linear, MXU operands in `mxu`, accumulation in f32.
        z = jnp.tanh(
            jnp.dot(h.astype(mxu), w1, preferred_element_type=jnp.float32) + b1)
        return jnp.dot(z.astype(mxu), w2, preferred_element_type=jnp.float32) + b2

    def rk4_step(h, dt):
        half_dt = 0.5 * dt
        k1 = odefunc(h)
        k2 = odefunc(h + half_dt * k1)
        k3 = odefunc(h + half_dt * k2)
        k4 = odefunc(h + dt * k3)
        return h + (dt * (1.0 / 6.0)) * (k1 + 2.0 * (k2 + k3) + k4)

    # h0 = fc_in(static_input)  (f32 result).
    h = jnp.dot(x_ref[...], w_in, preferred_element_type=jnp.float32) + b_in
    h_scratch[pl.ds(0, Bp), :] = h

    if T <= _UNROLL_T_MAX:
        # Small static T: fully unrolled, every scratch store index static.
        for t in range(1, T):
            h = rk4_step(h, dts_ref[t - 1])
            h_scratch[pl.ds(t * Bp, Bp), :] = h
    else:
        # Large T: bound live ranges with a real loop; dynamic scratch index.
        def body(t, h_carry):
            h_new = rk4_step(h_carry, dts_ref[t - 1])
            h_scratch[pl.ds(pl.multiple_of(t * Bp, 8), Bp), :] = h_new
            return h_new
        h = lax.fori_loop(1, T, body, h)

    # One batched end-of-kernel projection for ALL time steps, with fc_pd folded
    # in as the last output column.  This is the only projection matmul and the
    # only store of pk -- nothing interleaves with the RK4 chain above.
    proj = (jnp.dot(h_scratch[...].astype(mxu), w_proj_ref[...],
                    preferred_element_type=jnp.float32)
            + b_proj_ref[...])                      # (T*Bp, Dout+1)
    pk_ref[...] = proj[:, :Dout]                    # (T*Bp, Dout) contiguous slab
    pd_ref[...] = proj[(T - 1) * Bp:, Dout:]        # fc_pd of last time step


def neural_ode_pkpd_forward(static_input, times, params, *,
                            mxu_dtype=jnp.bfloat16):
    """Full NeuralODEPKPD forward pass in a single Pallas kernel.

    Returns (pk_pred, pd_pred) with shapes (B, T, output_dim) and (B, 1).
    `mxu_dtype` controls the matmul-operand precision (bf16 = native MXU rate
    on v6e/v7x; pass jnp.float32 for a bit-closer-to-reference run).
    """
    B, Din = static_input.shape
    T = int(times.shape[0])
    H = params['w_in'].shape[1]
    Dout = params['w_pk'].shape[1]

    # Sublane-align the batch dimension (multiple of 8); padded rows carry
    # bias-only junk and are sliced off after the call.  The whole padded batch
    # stays in one invocation (don't tile B down -- M per matmul is the only
    # free throughput axis here).
    Bp = max(8, ((B + 7) // 8) * 8)
    x = jnp.zeros((Bp, Din), mxu_dtype).at[:B].set(
        static_input.astype(mxu_dtype))

    times = times.astype(jnp.float32)
    if T > 1:
        dts = times[1:] - times[:-1]            # (T-1,) step sizes
    else:
        dts = jnp.zeros((1,), jnp.float32)      # placeholder, never read

    # Fold fc_pd into fc_pk: one (H, Dout+1) projection weight / bias.
    w_proj = jnp.concatenate(
        [params['w_pk'], params['w_pd']], axis=1).astype(mxu_dtype)
    b_proj = jnp.concatenate(
        [params['b_pk'], params['b_pd']], axis=1).astype(jnp.float32)

    kernel_args = (
        dts,
        x,
        params['w_in'].astype(mxu_dtype), params['b_in'].astype(jnp.float32),
        params['w1'].astype(mxu_dtype), params['b1'].astype(jnp.float32),
        params['w2'].astype(mxu_dtype), params['b2'].astype(jnp.float32),
        w_proj, b_proj,
    )

    in_specs = (
        [pl.BlockSpec(memory_space=pltpu.MemorySpace.SMEM)]          # dts scalars
        + [pl.BlockSpec(memory_space=pltpu.MemorySpace.VMEM)] * 9    # x + weights
    )
    out_specs = (
        pl.BlockSpec(memory_space=pltpu.MemorySpace.VMEM),
        pl.BlockSpec(memory_space=pltpu.MemorySpace.VMEM),
    )

    pk_slab, pd_full = pl.pallas_call(
        _neural_ode_kernel,
        out_shape=(
            jax.ShapeDtypeStruct((T * Bp, Dout), jnp.float32),
            jax.ShapeDtypeStruct((Bp, 1), jnp.float32),
        ),
        in_specs=in_specs,
        out_specs=out_specs,
        scratch_shapes=[pltpu.VMEM((T * Bp, H), jnp.float32)],
    )(*kernel_args)

    # Un-flatten the lane-dense (T*Bp, Dout) slab to (B, T, Dout) and drop
    # batch padding; this is a few-KiB wrapper-side transpose.
    pk = pk_slab.reshape(T, Bp, Dout)[:, :B, :].transpose(1, 0, 2)
    pd = pd_full[:B]
    return pk, pd


def _reference_forward(static_input, times, params):
    """Pure-JAX f32 reference (same fixed-step RK4) for tolerance checking."""
    x = static_input.astype(jnp.float32)
    h = x @ params['w_in'] + params['b_in']

    def f(h):
        z = jnp.tanh(h @ params['w1'] + params['b1'])
        return z @ params['w2'] + params['b2']

    hs = [h]
    for t in range(1, int(times.shape[0])):
        dt = times[t] - times[t - 1]
        k1 = f(h)
        k2 = f(h + 0.5 * dt * k1)
        k3 = f(h + 0.5 * dt * k2)
        k4 = f(h + dt * k3)
        h = h + (dt / 6.0) * (k1 + 2.0 * (k2 + k3) + k4)
        hs.append(h)
    h_ts = jnp.stack(hs, axis=1)                      # (B, T, H)
    pk = h_ts @ params['w_pk'] + params['b_pk']
    pd = h_ts[:, -1, :] @ params['w_pd'] + params['b_pd']
    return pk, pd


def init_params(key, input_dim, hidden_dim, output_dim):
    """Deterministic synthetic parameters (torch Linear shapes, pre-transposed
    so the kernel computes y = x @ W + b)."""
    ks = jax.random.split(key, 10)
    scale = 0.1

    def dense(kw, kb, fan_in, fan_out):
        w = scale * jax.random.normal(kw, (fan_in, fan_out), jnp.float32)
        b = scale * jax.random.normal(kb, (1, fan_out), jnp.float32)
        return w, b

    w_in, b_in = dense(ks[0], ks[1], input_dim, hidden_dim)   # fc_in
    w1, b1 = dense(ks[2], ks[3], hidden_dim, hidden_dim)      # odefunc.net[0]
    w2, b2 = dense(ks[4], ks[5], hidden_dim, hidden_dim)      # odefunc.net[2]
    w_pk, b_pk = dense(ks[6], ks[7], hidden_dim, output_dim)  # fc_pk
    w_pd, b_pd = dense(ks[8], ks[9], hidden_dim, 1)           # fc_pd
    return dict(w_in=w_in, b_in=b_in, w1=w1, b1=b1, w2=w2, b2=b2,
                w_pk=w_pk, b_pk=b_pk, w_pd=w_pd, b_pd=b_pd)


if __name__ == "__main__":
    B, input_dim, hidden_dim, output_dim, T = 2, 4, 32, 3, 8

    key = jax.random.PRNGKey(0)
    k_x, k_p = jax.random.split(key)

    static_input = jax.random.normal(k_x, (B, input_dim), jnp.float32)
    times = jnp.linspace(0.0, 1.0, T, dtype=jnp.float32)
    params = init_params(k_p, input_dim, hidden_dim, output_dim)

    pk_pred, pd_pred = neural_ode_pkpd_forward(static_input, times, params)
    jax.block_until_ready((pk_pred, pd_pred))

    assert pk_pred.shape == (B, T, output_dim), pk_pred.shape
    assert pd_pred.shape == (B, 1), pd_pred.shape

    # Tolerance check vs pure-JAX f32 reference (bf16 MXU operands + serial
    # RK4 chain -> loose tolerance, not bit-compare).
    pk_ref, pd_ref = _reference_forward(static_input, times, params)
    pk_err = float(jnp.max(jnp.abs(pk_pred - pk_ref)))
    pd_err = float(jnp.max(jnp.abs(pd_pred - pd_ref)))
    assert pk_err < 5e-2, f"pk max abs err {pk_err}"
    assert pd_err < 5e-2, f"pd max abs err {pd_err}"

    print("KERNEL_OK")
</pallas_src>

<mosaic_0001>
module attributes {stable_mosaic.version = 11 : i64} {
  func.func @_neural_ode_kernel(%arg0: memref<7xf32, #tpu.memory_space<smem>>, %arg1: memref<8x4xbf16, #tpu.memory_space<vmem>>, %arg2: memref<4x32xbf16, #tpu.memory_space<vmem>>, %arg3: memref<1x32xf32, #tpu.memory_space<vmem>>, %arg4: memref<32x32xbf16, #tpu.memory_space<vmem>>, %arg5: memref<1x32xf32, #tpu.memory_space<vmem>>, %arg6: memref<32x32xbf16, #tpu.memory_space<vmem>>, %arg7: memref<1x32xf32, #tpu.memory_space<vmem>>, %arg8: memref<32x4xbf16, #tpu.memory_space<vmem>>, %arg9: memref<1x4xf32, #tpu.memory_space<vmem>>, %arg10: memref<64x3xf32, #tpu.memory_space<vmem>>, %arg11: memref<8x1xf32, #tpu.memory_space<vmem>>, %arg12: memref<64x32xf32, #tpu.memory_space<vmem>>) attributes {dimension_semantics = [], scalar_prefetch = 0 : i64, scratch_operands = 1 : i64, tpu.core_type = #tpu.core_type<tc>} {
    %c0 = arith.constant 0 : index
    %c0_0 = arith.constant 0 : index
    %0 = vector.load %arg2[%c0, %c0_0] : memref<4x32xbf16, #tpu.memory_space<vmem>>, vector<4x32xbf16>
    %c0_1 = arith.constant 0 : index
    %c0_2 = arith.constant 0 : index
    %1 = vector.load %arg3[%c0_1, %c0_2] : memref<1x32xf32, #tpu.memory_space<vmem>>, vector<1x32xf32>
    %c0_3 = arith.constant 0 : index
    %c0_4 = arith.constant 0 : index
    %2 = vector.load %arg4[%c0_3, %c0_4] : memref<32x32xbf16, #tpu.memory_space<vmem>>, vector<32x32xbf16>
    %c0_5 = arith.constant 0 : index
    %c0_6 = arith.constant 0 : index
    %3 = vector.load %arg5[%c0_5, %c0_6] : memref<1x32xf32, #tpu.memory_space<vmem>>, vector<1x32xf32>
    %c0_7 = arith.constant 0 : index
    %c0_8 = arith.constant 0 : index
    %4 = vector.load %arg6[%c0_7, %c0_8] : memref<32x32xbf16, #tpu.memory_space<vmem>>, vector<32x32xbf16>
    %c0_9 = arith.constant 0 : index
    %c0_10 = arith.constant 0 : index
    %5 = vector.load %arg7[%c0_9, %c0_10] : memref<1x32xf32, #tpu.memory_space<vmem>>, vector<1x32xf32>
    %c0_11 = arith.constant 0 : index
    %c0_12 = arith.constant 0 : index
    %6 = vector.load %arg1[%c0_11, %c0_12] : memref<8x4xbf16, #tpu.memory_space<vmem>>, vector<8x4xbf16>
    %cst = arith.constant dense<0.000000e+00> : vector<8x32xf32>
    %7 = tpu.matmul %6, %0, %cst {dimension_numbers = #tpu.dot_dimension_numbers<[1], [0], [0], [1], [0, 0, 1, 1], [], []>} : vector<8x4xbf16>, vector<4x32xbf16>, vector<8x32xf32> -> vector<8x32xf32>
    %8 = vector.broadcast %1 : vector<1x32xf32> to vector<8x32xf32>
    %9 = arith.addf %7, %8 : vector<8x32xf32>
    %c0_13 = arith.constant 0 : index
    %c0_14 = arith.constant 0 : index
    %10 = vector.load %arg12[%c0_13, %c0_14] : memref<64x32xf32, #tpu.memory_space<vmem>>, vector<8x32xf32>
    tpu.vector_store %arg12[%c0_13, %c0_14], %9 {strides = array<i32>} : memref<64x32xf32, #tpu.memory_space<vmem>>, vector<8x32xf32>,
    %c0_15 = arith.constant 0 : index
    %11 = memref.load %arg0[%c0_15] : memref<7xf32, #tpu.memory_space<smem>>
    %cst_16 = arith.constant 5.000000e-01 : f32
    %12 = arith.mulf %cst_16, %11 : f32
    %13 = arith.truncf %9 : vector<8x32xf32> to vector<8x32xbf16>
    %cst_17 = arith.constant dense<0.000000e+00> : vector<8x32xf32>
    %14 = tpu.matmul %13, %2, %cst_17 {dimension_numbers = #tpu.dot_dimension_numbers<[1], [0], [0], [1], [0, 0, 1, 1], [], []>} : vector<8x32xbf16>, vector<32x32xbf16>, vector<8x32xf32> -> vector<8x32xf32>
    %15 = vector.broadcast %3 : vector<1x32xf32> to vector<8x32xf32>
    %16 = arith.addf %14, %15 : vector<8x32xf32>
    %17 = math.tanh %16 : vector<8x32xf32>
    %18 = arith.truncf %17 : vector<8x32xf32> to vector<8x32xbf16>
    %cst_18 = arith.constant dense<0.000000e+00> : vector<8x32xf32>
    %19 = tpu.matmul %18, %4, %cst_18 {dimension_numbers = #tpu.dot_dimension_numbers<[1], [0], [0], [1], [0, 0, 1, 1], [], []>} : vector<8x32xbf16>, vector<32x32xbf16>, vector<8x32xf32> -> vector<8x32xf32>
    %20 = vector.broadcast %5 : vector<1x32xf32> to vector<8x32xf32>
    %21 = arith.addf %19, %20 : vector<8x32xf32>
    %22 = vector.broadcast %12 : f32 to vector<8x32xf32>
    %23 = arith.mulf %22, %21 : vector<8x32xf32>
    %24 = arith.addf %9, %23 : vector<8x32xf32>
    %25 = arith.truncf %24 : vector<8x32xf32> to vector<8x32xbf16>
    %cst_19 = arith.constant dense<0.000000e+00> : vector<8x32xf32>
    %26 = tpu.matmul %25, %2, %cst_19 {dimension_numbers = #tpu.dot_dimension_numbers<[1], [0], [0], [1], [0, 0, 1, 1], [], []>} : vector<8x32xbf16>, vector<32x32xbf16>, vector<8x32xf32> -> vector<8x32xf32>
    %27 = vector.broadcast %3 : vector<1x32xf32> to vector<8x32xf32>
    %28 = arith.addf %26, %27 : vector<8x32xf32>
    %29 = math.tanh %28 : vector<8x32xf32>
    %30 = arith.truncf %29 : vector<8x32xf32> to vector<8x32xbf16>
    %cst_20 = arith.constant dense<0.000000e+00> : vector<8x32xf32>
    %31 = tpu.matmul %30, %4, %cst_20 {dimension_numbers = #tpu.dot_dimension_numbers<[1], [0], [0], [1], [0, 0, 1, 1], [], []>} : vector<8x32xbf16>, vector<32x32xbf16>, vector<8x32xf32> -> vector<8x32xf32>
    %32 = vector.broadcast %5 : vector<1x32xf32> to vector<8x32xf32>
    %33 = arith.addf %31, %32 : vector<8x32xf32>
    %34 = vector.broadcast %12 : f32 to vector<8x32xf32>
    %35 = arith.mulf %34, %33 : vector<8x32xf32>
    %36 = arith.addf %9, %35 : vector<8x32xf32>
    %37 = arith.truncf %36 : vector<8x32xf32> to vector<8x32xbf16>
    %cst_21 = arith.constant dense<0.000000e+00> : vector<8x32xf32>
    %38 = tpu.matmul %37, %2, %cst_21 {dimension_numbers = #tpu.dot_dimension_numbers<[1], [0], [0], [1], [0, 0, 1, 1], [], []>} : vector<8x32xbf16>, vector<32x32xbf16>, vector<8x32xf32> -> vector<8x32xf32>
    %39 = vector.broadcast %3 : vector<1x32xf32> to vector<8x32xf32>
    %40 = arith.addf %38, %39 : vector<8x32xf32>
    %41 = math.tanh %40 : vector<8x32xf32>
    %42 = arith.truncf %41 : vector<8x32xf32> to vector<8x32xbf16>
    %cst_22 = arith.constant dense<0.000000e+00> : vector<8x32xf32>
    %43 = tpu.matmul %42, %4, %cst_22 {dimension_numbers = #tpu.dot_dimension_numbers<[1], [0], [0], [1], [0, 0, 1, 1], [], []>} : vector<8x32xbf16>, vector<32x32xbf16>, vector<8x32xf32> -> vector<8x32xf32>
    %44 = vector.broadcast %5 : vector<1x32xf32> to vector<8x32xf32>
    %45 = arith.addf %43, %44 : vector<8x32xf32>
    %46 = vector.broadcast %11 : f32 to vector<8x32xf32>
    %47 = arith.mulf %46, %45 : vector<8x32xf32>
    %48 = arith.addf %9, %47 : vector<8x32xf32>
    %49 = arith.truncf %48 : vector<8x32xf32> to vector<8x32xbf16>
    %cst_23 = arith.constant dense<0.000000e+00> : vector<8x32xf32>
    %50 = tpu.matmul %49, %2, %cst_23 {dimension_numbers = #tpu.dot_dimension_numbers<[1], [0], [0], [1], [0, 0, 1, 1], [], []>} : vector<8x32xbf16>, vector<32x32xbf16>, vector<8x32xf32> -> vector<8x32xf32>
    %51 = vector.broadcast %3 : vector<1x32xf32> to vector<8x32xf32>
    %52 = arith.addf %50, %51 : vector<8x32xf32>
    %53 = math.tanh %52 : vector<8x32xf32>
    %54 = arith.truncf %53 : vector<8x32xf32> to vector<8x32xbf16>
    %cst_24 = arith.constant dense<0.000000e+00> : vector<8x32xf32>
    %55 = tpu.matmul %54, %4, %cst_24 {dimension_numbers = #tpu.dot_dimension_numbers<[1], [0], [0], [1], [0, 0, 1, 1], [], []>} : vector<8x32xbf16>, vector<32x32xbf16>, vector<8x32xf32> -> vector<8x32xf32>
    %56 = vector.broadcast %5 : vector<1x32xf32> to vector<8x32xf32>
    %57 = arith.addf %55, %56 : vector<8x32xf32>
    %cst_25 = arith.constant 0.166666672 : f32
    %58 = arith.mulf %11, %cst_25 : f32
    %59 = arith.addf %33, %45 : vector<8x32xf32>
    %cst_26 = arith.constant 2.000000e+00 : f32
    %60 = vector.broadcast %cst_26 : f32 to vector<8x32xf32>
    %61 = arith.mulf %60, %59 : vector<8x32xf32>
    %62 = arith.addf %21, %61 : vector<8x32xf32>
    %63 = arith.addf %62, %57 : vector<8x32xf32>
    %64 = vector.broadcast %58 : f32 to vector<8x32xf32>
    %65 = arith.mulf %64, %63 : vector<8x32xf32>
    %66 = arith.addf %9, %65 : vector<8x32xf32>
    %c8 = arith.constant 8 : index
    %c0_27 = arith.constant 0 : index
    %67 = vector.load %arg12[%c8, %c0_27] : memref<64x32xf32, #tpu.memory_space<vmem>>, vector<8x32xf32>
    tpu.vector_store %arg12[%c8, %c0_27], %66 {strides = array<i32>} : memref<64x32xf32, #tpu.memory_space<vmem>>, vector<8x32xf32>,
    %c1 = arith.constant 1 : index
    %68 = memref.load %arg0[%c1] : memref<7xf32, #tpu.memory_space<smem>>
    %cst_28 = arith.constant 5.000000e-01 : f32
    %69 = arith.mulf %cst_28, %68 : f32
    %70 = arith.truncf %66 : vector<8x32xf32> to vector<8x32xbf16>
    %cst_29 = arith.constant dense<0.000000e+00> : vector<8x32xf32>
    %71 = tpu.matmul %70, %2, %cst_29 {dimension_numbers = #tpu.dot_dimension_numbers<[1], [0], [0], [1], [0, 0, 1, 1], [], []>} : vector<8x32xbf16>, vector<32x32xbf16>, vector<8x32xf32> -> vector<8x32xf32>
    %72 = vector.broadcast %3 : vector<1x32xf32> to vector<8x32xf32>
    %73 = arith.addf %71, %72 : vector<8x32xf32>
    %74 = math.tanh %73 : vector<8x32xf32>
    %75 = arith.truncf %74 : vector<8x32xf32> to vector<8x32xbf16>
    %cst_30 = arith.constant dense<0.000000e+00> : vector<8x32xf32>
    %76 = tpu.matmul %75, %4, %cst_30 {dimension_numbers = #tpu.dot_dimension_numbers<[1], [0], [0], [1], [0, 0, 1, 1], [], []>} : vector<8x32xbf16>, vector<32x32xbf16>, vector<8x32xf32> -> vector<8x32xf32>
    %77 = vector.broadcast %5 : vector<1x32xf32> to vector<8x32xf32>
    %78 = arith.addf %76, %77 : vector<8x32xf32>
    %79 = vector.broadcast %69 : f32 to vector<8x32xf32>
    %80 = arith.mulf %79, %78 : vector<8x32xf32>
    %81 = arith.addf %66, %80 : vector<8x32xf32>
    %82 = arith.truncf %81 : vector<8x32xf32> to vector<8x32xbf16>
    %cst_31 = arith.constant dense<0.000000e+00> : vector<8x32xf32>
    %83 = tpu.matmul %82, %2, %cst_31 {dimension_numbers = #tpu.dot_dimension_numbers<[1], [0], [0], [1], [0, 0, 1, 1], [], []>} : vector<8x32xbf16>, vector<32x32xbf16>, vector<8x32xf32> -> vector<8x32xf32>
    %84 = vector.broadcast %3 : vector<1x32xf32> to vector<8x32xf32>
    %85 = arith.addf %83, %84 : vector<8x32xf32>
    %86 = math.tanh %85 : vector<8x32xf32>
    %87 = arith.truncf %86 : vector<8x32xf32> to vector<8x32xbf16>
    %cst_32 = arith.constant dense<0.000000e+00> : vector<8x32xf32>
    %88 = tpu.matmul %87, %4, %cst_32 {dimension_numbers = #tpu.dot_dimension_numbers<[1], [0], [0], [1], [0, 0, 1, 1], [], []>} : vector<8x32xbf16>, vector<32x32xbf16>, vector<8x32xf32> -> vector<8x32xf32>
    %89 = vector.broadcast %5 : vector<1x32xf32> to vector<8x32xf32>
    %90 = arith.addf %88, %89 : vector<8x32xf32>
    %91 = vector.broadcast %69 : f32 to vector<8x32xf32>
    %92 = arith.mulf %91, %90 : vector<8x32xf32>
    %93 = arith.addf %66, %92 : vector<8x32xf32>
    %94 = arith.truncf %93 : vector<8x32xf32> to vector<8x32xbf16>
    %cst_33 = arith.constant dense<0.000000e+00> : vector<8x32xf32>
    %95 = tpu.matmul %94, %2, %cst_33 {dimension_numbers = #tpu.dot_dimension_numbers<[1], [0], [0], [1], [0, 0, 1, 1], [], []>} : vector<8x32xbf16>, vector<32x32xbf16>, vector<8x32xf32> -> vector<8x32xf32>
    %96 = vector.broadcast %3 : vector<1x32xf32> to vector<8x32xf32>
    %97 = arith.addf %95, %96 : vector<8x32xf32>
    %98 = math.tanh %97 : vector<8x32xf32>
    %99 = arith.truncf %98 : vector<8x32xf32> to vector<8x32xbf16>
    %cst_34 = arith.constant dense<0.000000e+00> : vector<8x32xf32>
    %100 = tpu.matmul %99, %4, %cst_34 {dimension_numbers = #tpu.dot_dimension_numbers<[1], [0], [0], [1], [0, 0, 1, 1], [], []>} : vector<8x32xbf16>, vector<32x32xbf16>, vector<8x32xf32> -> vector<8x32xf32>
    %101 = vector.broadcast %5 : vector<1x32xf32> to vector<8x32xf32>
    %102 = arith.addf %100, %101 : vector<8x32xf32>
    %103 = vector.broadcast %68 : f32 to vector<8x32xf32>
    %104 = arith.mulf %103, %102 : vector<8x32xf32>
    %105 = arith.addf %66, %104 : vector<8x32xf32>
    %106 = arith.truncf %105 : vector<8x32xf32> to vector<8x32xbf16>
    %cst_35 = arith.constant dense<0.000000e+00> : vector<8x32xf32>
    %107 = tpu.matmul %106, %2, %cst_35 {dimension_numbers = #tpu.dot_dimension_numbers<[1], [0], [0], [1], [0, 0, 1, 1], [], []>} : vector<8x32xbf16>, vector<32x32xbf16>, vector<8x32xf32> -> vector<8x32xf32>
    %108 = vector.broadcast %3 : vector<1x32xf32> to vector<8x32xf32>
    %109 = arith.addf %107, %108 : vector<8x32xf32>
    %110 = math.tanh %109 : vector<8x32xf32>
    %111 = arith.truncf %110 : vector<8x32xf32> to vector<8x32xbf16>
    %cst_36 = arith.constant dense<0.000000e+00> : vector<8x32xf32>
    %112 = tpu.matmul %111, %4, %cst_36 {dimension_numbers = #tpu.dot_dimension_numbers<[1], [0], [0], [1], [0, 0, 1, 1], [], []>} : vector<8x32xbf16>, vector<32x32xbf16>, vector<8x32xf32> -> vector<8x32xf32>
    %113 = vector.broadcast %5 : vector<1x32xf32> to vector<8x32xf32>
    %114 = arith.addf %112, %113 : vector<8x32xf32>
    %cst_37 = arith.constant 0.166666672 : f32
    %115 = arith.mulf %68, %cst_37 : f32
    %116 = arith.addf %90, %102 : vector<8x32xf32>
    %cst_38 = arith.constant 2.000000e+00 : f32
    %117 = vector.broadcast %cst_38 : f32 to vector<8x32xf32>
    %118 = arith.mulf %117, %116 : vector<8x32xf32>
    %119 = arith.addf %78, %118 : vector<8x32xf32>
    %120 = arith.addf %119, %114 : vector<8x32xf32>
    %121 = vector.broadcast %115 : f32 to vector<8x32xf32>
    %122 = arith.mulf %121, %120 : vector<8x32xf32>
    %123 = arith.addf %66, %122 : vector<8x32xf32>
    %c16 = arith.constant 16 : index
    %c0_39 = arith.constant 0 : index
    %124 = vector.load %arg12[%c16, %c0_39] : memref<64x32xf32, #tpu.memory_space<vmem>>, vector<8x32xf32>
    tpu.vector_store %arg12[%c16, %c0_39], %123 {strides = array<i32>} : memref<64x32xf32, #tpu.memory_space<vmem>>, vector<8x32xf32>,
    %c2 = arith.constant 2 : index
    %125 = memref.load %arg0[%c2] : memref<7xf32, #tpu.memory_space<smem>>
    %cst_40 = arith.constant 5.000000e-01 : f32
    %126 = arith.mulf %cst_40, %125 : f32
    %127 = arith.truncf %123 : vector<8x32xf32> to vector<8x32xbf16>
    %cst_41 = arith.constant dense<0.000000e+00> : vector<8x32xf32>
    %128 = tpu.matmul %127, %2, %cst_41 {dimension_numbers = #tpu.dot_dimension_numbers<[1], [0], [0], [1], [0, 0, 1, 1], [], []>} : vector<8x32xbf16>, vector<32x32xbf16>, vector<8x32xf32> -> vector<8x32xf32>
    %129 = vector.broadcast %3 : vector<1x32xf32> to vector<8x32xf32>
    %130 = arith.addf %128, %129 : vector<8x32xf32>
    %131 = math.tanh %130 : vector<8x32xf32>
    %132 = arith.truncf %131 : vector<8x32xf32> to vector<8x32xbf16>
    %cst_42 = arith.constant dense<0.000000e+00> : vector<8x32xf32>
    %133 = tpu.matmul %132, %4, %cst_42 {dimension_numbers = #tpu.dot_dimension_numbers<[1], [0], [0], [1], [0, 0, 1, 1], [], []>} : vector<8x32xbf16>, vector<32x32xbf16>, vector<8x32xf32> -> vector<8x32xf32>
    %134 = vector.broadcast %5 : vector<1x32xf32> to vector<8x32xf32>
    %135 = arith.addf %133, %134 : vector<8x32xf32>
    %136 = vector.broadcast %126 : f32 to vector<8x32xf32>
    %137 = arith.mulf %136, %135 : vector<8x32xf32>
    %138 = arith.addf %123, %137 : vector<8x32xf32>
    %139 = arith.truncf %138 : vector<8x32xf32> to vector<8x32xbf16>
    %cst_43 = arith.constant dense<0.000000e+00> : vector<8x32xf32>
    %140 = tpu.matmul %139, %2, %cst_43 {dimension_numbers = #tpu.dot_dimension_numbers<[1], [0], [0], [1], [0, 0, 1, 1], [], []>} : vector<8x32xbf16>, vector<32x32xbf16>, vector<8x32xf32> -> vector<8x32xf32>
    %141 = vector.broadcast %3 : vector<1x32xf32> to vector<8x32xf32>
    %142 = arith.addf %140, %141 : vector<8x32xf32>
    %143 = math.tanh %142 : vector<8x32xf32>
    %144 = arith.truncf %143 : vector<8x32xf32> to vector<8x32xbf16>
    %cst_44 = arith.constant dense<0.000000e+00> : vector<8x32xf32>
    %145 = tpu.matmul %144, %4, %cst_44 {dimension_numbers = #tpu.dot_dimension_numbers<[1], [0], [0], [1], [0, 0, 1, 1], [], []>} : vector<8x32xbf16>, vector<32x32xbf16>, vector<8x32xf32> -> vector<8x32xf32>
    %146 = vector.broadcast %5 : vector<1x32xf32> to vector<8x32xf32>
    %147 = arith.addf %145, %146 : vector<8x32xf32>
    %148 = vector.broadcast %126 : f32 to vector<8x32xf32>
    %149 = arith.mulf %148, %147 : vector<8x32xf32>
    %150 = arith.addf %123, %149 : vector<8x32xf32>
    %151 = arith.truncf %150 : vector<8x32xf32> to vector<8x32xbf16>
    %cst_45 = arith.constant dense<0.000000e+00> : vector<8x32xf32>
    %152 = tpu.matmul %151, %2, %cst_45 {dimension_numbers = #tpu.dot_dimension_numbers<[1], [0], [0], [1], [0, 0, 1, 1], [], []>} : vector<8x32xbf16>, vector<32x32xbf16>, vector<8x32xf32> -> vector<8x32xf32>
    %153 = vector.broadcast %3 : vector<1x32xf32> to vector<8x32xf32>
    %154 = arith.addf %152, %153 : vector<8x32xf32>
    %155 = math.tanh %154 : vector<8x32xf32>
    %156 = arith.truncf %155 : vector<8x32xf32> to vector<8x32xbf16>
    %cst_46 = arith.constant dense<0.000000e+00> : vector<8x32xf32>
    %157 = tpu.matmul %156, %4, %cst_46 {dimension_numbers = #tpu.dot_dimension_numbers<[1], [0], [0], [1], [0, 0, 1, 1], [], []>} : vector<8x32xbf16>, vector<32x32xbf16>, vector<8x32xf32> -> vector<8x32xf32>
    %158 = vector.broadcast %5 : vector<1x32xf32> to vector<8x32xf32>
    %159 = arith.addf %157, %158 : vector<8x32xf32>
    %160 = vector.broadcast %125 : f32 to vector<8x32xf32>
    %161 = arith.mulf %160, %159 : vector<8x32xf32>
    %162 = arith.addf %123, %161 : vector<8x32xf32>
    %163 = arith.truncf %162 : vector<8x32xf32> to vector<8x32xbf16>
    %cst_47 = arith.constant dense<0.000000e+00> : vector<8x32xf32>
    %164 = tpu.matmul %163, %2, %cst_47 {dimension_numbers = #tpu.dot_dimension_numbers<[1], [0], [0], [1], [0, 0, 1, 1], [], []>} : vector<8x32xbf16>, vector<32x32xbf16>, vector<8x32xf32> -> vector<8x32xf32>
    %165 = vector.broadcast %3 : vector<1x32xf32> to vector<8x32xf32>
    %166 = arith.addf %164, %165 : vector<8x32xf32>
    %167 = math.tanh %166 : vector<8x32xf32>
    %168 = arith.truncf %167 : vector<8x32xf32> to vector<8x32xbf16>
    %cst_48 = arith.constant dense<0.000000e+00> : vector<8x32xf32>
    %169 = tpu.matmul %168, %4, %cst_48 {dimension_numbers = #tpu.dot_dimension_numbers<[1], [0], [0], [1], [0, 0, 1, 1], [], []>} : vector<8x32xbf16>, vector<32x32xbf16>, vector<8x32xf32> -> vector<8x32xf32>
    %170 = vector.broadcast %5 : vector<1x32xf32> to vector<8x32xf32>
    %171 = arith.addf %169, %170 : vector<8x32xf32>
    %cst_49 = arith.constant 0.166666672 : f32
    %172 = arith.mulf %125, %cst_49 : f32
    %173 = arith.addf %147, %159 : vector<8x32xf32>
    %cst_50 = arith.constant 2.000000e+00 : f32
    %174 = vector.broadcast %cst_50 : f32 to vector<8x32xf32>
    %175 = arith.mulf %174, %173 : vector<8x32xf32>
    %176 = arith.addf %135, %175 : vector<8x32xf32>
    %177 = arith.addf %176, %171 : vector<8x32xf32>
    %178 = vector.broadcast %172 : f32 to vector<8x32xf32>
    %179 = arith.mulf %178, %177 : vector<8x32xf32>
    %180 = arith.addf %123, %179 : vector<8x32xf32>
    %c24 = arith.constant 24 : index
    %c0_51 = arith.constant 0 : index
    %181 = vector.load %arg12[%c24, %c0_51] : memref<64x32xf32, #tpu.memory_space<vmem>>, vector<8x32xf32>
    tpu.vector_store %arg12[%c24, %c0_51], %180 {strides = array<i32>} : memref<64x32xf32, #tpu.memory_space<vmem>>, vector<8x32xf32>,
    %c3 = arith.constant 3 : index
    %182 = memref.load %arg0[%c3] : memref<7xf32, #tpu.memory_space<smem>>
    %cst_52 = arith.constant 5.000000e-01 : f32
    %183 = arith.mulf %cst_52, %182 : f32
    %184 = arith.truncf %180 : vector<8x32xf32> to vector<8x32xbf16>
    %cst_53 = arith.constant dense<0.000000e+00> : vector<8x32xf32>
    %185 = tpu.matmul %184, %2, %cst_53 {dimension_numbers = #tpu.dot_dimension_numbers<[1], [0], [0], [1], [0, 0, 1, 1], [], []>} : vector<8x32xbf16>, vector<32x32xbf16>, vector<8x32xf32> -> vector<8x32xf32>
    %186 = vector.broadcast %3 : vector<1x32xf32> to vector<8x32xf32>
    %187 = arith.addf %185, %186 : vector<8x32xf32>
    %188 = math.tanh %187 : vector<8x32xf32>
    %189 = arith.truncf %188 : vector<8x32xf32> to vector<8x32xbf16>
    %cst_54 = arith.constant dense<0.000000e+00> : vector<8x32xf32>
    %190 = tpu.matmul %189, %4, %cst_54 {dimension_numbers = #tpu.dot_dimension_numbers<[1], [0], [0], [1], [0, 0, 1, 1], [], []>} : vector<8x32xbf16>, vector<32x32xbf16>, vector<8x32xf32> -> vector<8x32xf32>
    %191 = vector.broadcast %5 : vector<1x32xf32> to vector<8x32xf32>
    %192 = arith.addf %190, %191 : vector<8x32xf32>
    %193 = vector.broadcast %183 : f32 to vector<8x32xf32>
    %194 = arith.mulf %193, %192 : vector<8x32xf32>
    %195 = arith.addf %180, %194 : vector<8x32xf32>
    %196 = arith.truncf %195 : vector<8x32xf32> to vector<8x32xbf16>
    %cst_55 = arith.constant dense<0.000000e+00> : vector<8x32xf32>
    %197 = tpu.matmul %196, %2, %cst_55 {dimension_numbers = #tpu.dot_dimension_numbers<[1], [0], [0], [1], [0, 0, 1, 1], [], []>} : vector<8x32xbf16>, vector<32x32xbf16>, vector<8x32xf32> -> vector<8x32xf32>
    %198 = vector.broadcast %3 : vector<1x32xf32> to vector<8x32xf32>
    %199 = arith.addf %197, %198 : vector<8x32xf32>
    %200 = math.tanh %199 : vector<8x32xf32>
    %201 = arith.truncf %200 : vector<8x32xf32> to vector<8x32xbf16>
    %cst_56 = arith.constant dense<0.000000e+00> : vector<8x32xf32>
    %202 = tpu.matmul %201, %4, %cst_56 {dimension_numbers = #tpu.dot_dimension_numbers<[1], [0], [0], [1], [0, 0, 1, 1], [], []>} : vector<8x32xbf16>, vector<32x32xbf16>, vector<8x32xf32> -> vector<8x32xf32>
    %203 = vector.broadcast %5 : vector<1x32xf32> to vector<8x32xf32>
    %204 = arith.addf %202, %203 : vector<8x32xf32>
    %205 = vector.broadcast %183 : f32 to vector<8x32xf32>
    %206 = arith.mulf %205, %204 : vector<8x32xf32>
    %207 = arith.addf %180, %206 : vector<8x32xf32>
    %208 = arith.truncf %207 : vector<8x32xf32> to vector<8x32xbf16>
    %cst_57 = arith.constant dense<0.000000e+00> : vector<8x32xf32>
    %209 = tpu.matmul %208, %2, %cst_57 {dimension_numbers = #tpu.dot_dimension_numbers<[1], [0], [0], [1], [0, 0, 1, 1], [], []>} : vector<8x32xbf16>, vector<32x32xbf16>, vector<8x32xf32> -> vector<8x32xf32>
    %210 = vector.broadcast %3 : vector<1x32xf32> to vector<8x32xf32>
    %211 = arith.addf %209, %210 : vector<8x32xf32>
    %212 = math.tanh %211 : vector<8x32xf32>
    %213 = arith.truncf %212 : vector<8x32xf32> to vector<8x32xbf16>
    %cst_58 = arith.constant dense<0.000000e+00> : vector<8x32xf32>
    %214 = tpu.matmul %213, %4, %cst_58 {dimension_numbers = #tpu.dot_dimension_numbers<[1], [0], [0], [1], [0, 0, 1, 1], [], []>} : vector<8x32xbf16>, vector<32x32xbf16>, vector<8x32xf32> -> vector<8x32xf32>
    %215 = vector.broadcast %5 : vector<1x32xf32> to vector<8x32xf32>
    %216 = arith.addf %214, %215 : vector<8x32xf32>
    %217 = vector.broadcast %182 : f32 to vector<8x32xf32>
    %218 = arith.mulf %217, %216 : vector<8x32xf32>
    %219 = arith.addf %180, %218 : vector<8x32xf32>
    %220 = arith.truncf %219 : vector<8x32xf32> to vector<8x32xbf16>
    %cst_59 = arith.constant dense<0.000000e+00> : vector<8x32xf32>
    %221 = tpu.matmul %220, %2, %cst_59 {dimension_numbers = #tpu.dot_dimension_numbers<[1], [0], [0], [1], [0, 0, 1, 1], [], []>} : vector<8x32xbf16>, vector<32x32xbf16>, vector<8x32xf32> -> vector<8x32xf32>
    %222 = vector.broadcast %3 : vector<1x32xf32> to vector<8x32xf32>
    %223 = arith.addf %221, %222 : vector<8x32xf32>
    %224 = math.tanh %223 : vector<8x32xf32>
    %225 = arith.truncf %224 : vector<8x32xf32> to vector<8x32xbf16>
    %cst_60 = arith.constant dense<0.000000e+00> : vector<8x32xf32>
    %226 = tpu.matmul %225, %4, %cst_60 {dimension_numbers = #tpu.dot_dimension_numbers<[1], [0], [0], [1], [0, 0, 1, 1], [], []>} : vector<8x32xbf16>, vector<32x32xbf16>, vector<8x32xf32> -> vector<8x32xf32>
    %227 = vector.broadcast %5 : vector<1x32xf32> to vector<8x32xf32>
    %228 = arith.addf %226, %227 : vector<8x32xf32>
    %cst_61 = arith.constant 0.166666672 : f32
    %229 = arith.mulf %182, %cst_61 : f32
    %230 = arith.addf %204, %216 : vector<8x32xf32>
    %cst_62 = arith.constant 2.000000e+00 : f32
    %231 = vector.broadcast %cst_62 : f32 to vector<8x32xf32>
    %232 = arith.mulf %231, %230 : vector<8x32xf32>
    %233 = arith.addf %192, %232 : vector<8x32xf32>
    %234 = arith.addf %233, %228 : vector<8x32xf32>
    %235 = vector.broadcast %229 : f32 to vector<8x32xf32>
    %236 = arith.mulf %235, %234 : vector<8x32xf32>
    %237 = arith.addf %180, %236 : vector<8x32xf32>
    %c32 = arith.constant 32 : index
    %c0_63 = arith.constant 0 : index
    %238 = vector.load %arg12[%c32, %c0_63] : memref<64x32xf32, #tpu.memory_space<vmem>>, vector<8x32xf32>
    tpu.vector_store %arg12[%c32, %c0_63], %237 {strides = array<i32>} : memref<64x32xf32, #tpu.memory_space<vmem>>, vector<8x32xf32>,
    %c4 = arith.constant 4 : index
    %239 = memref.load %arg0[%c4] : memref<7xf32, #tpu.memory_space<smem>>
    %cst_64 = arith.constant 5.000000e-01 : f32
    %240 = arith.mulf %cst_64, %239 : f32
    %241 = arith.truncf %237 : vector<8x32xf32> to vector<8x32xbf16>
    %cst_65 = arith.constant dense<0.000000e+00> : vector<8x32xf32>
    %242 = tpu.matmul %241, %2, %cst_65 {dimension_numbers = #tpu.dot_dimension_numbers<[1], [0], [0], [1], [0, 0, 1, 1], [], []>} : vector<8x32xbf16>, vector<32x32xbf16>, vector<8x32xf32> -> vector<8x32xf32>
    %243 = vector.broadcast %3 : vector<1x32xf32> to vector<8x32xf32>
    %244 = arith.addf %242, %243 : vector<8x32xf32>
    %245 = math.tanh %244 : vector<8x32xf32>
    %246 = arith.truncf %245 : vector<8x32xf32> to vector<8x32xbf16>
    %cst_66 = arith.constant dense<0.000000e+00> : vector<8x32xf32>
    %247 = tpu.matmul %246, %4, %cst_66 {dimension_numbers = #tpu.dot_dimension_numbers<[1], [0], [0], [1], [0, 0, 1, 1], [], []>} : vector<8x32xbf16>, vector<32x32xbf16>, vector<8x32xf32> -> vector<8x32xf32>
    %248 = vector.broadcast %5 : vector<1x32xf32> to vector<8x32xf32>
    %249 = arith.addf %247, %248 : vector<8x32xf32>
    %250 = vector.broadcast %240 : f32 to vector<8x32xf32>
    %251 = arith.mulf %250, %249 : vector<8x32xf32>
    %252 = arith.addf %237, %251 : vector<8x32xf32>
    %253 = arith.truncf %252 : vector<8x32xf32> to vector<8x32xbf16>
    %cst_67 = arith.constant dense<0.000000e+00> : vector<8x32xf32>
    %254 = tpu.matmul %253, %2, %cst_67 {dimension_numbers = #tpu.dot_dimension_numbers<[1], [0], [0], [1], [0, 0, 1, 1], [], []>} : vector<8x32xbf16>, vector<32x32xbf16>, vector<8x32xf32> -> vector<8x32xf32>
    %255 = vector.broadcast %3 : vector<1x32xf32> to vector<8x32xf32>
    %256 = arith.addf %254, %255 : vector<8x32xf32>
    %257 = math.tanh %256 : vector<8x32xf32>
    %258 = arith.truncf %257 : vector<8x32xf32> to vector<8x32xbf16>
    %cst_68 = arith.constant dense<0.000000e+00> : vector<8x32xf32>
    %259 = tpu.matmul %258, %4, %cst_68 {dimension_numbers = #tpu.dot_dimension_numbers<[1], [0], [0], [1], [0, 0, 1, 1], [], []>} : vector<8x32xbf16>, vector<32x32xbf16>, vector<8x32xf32> -> vector<8x32xf32>
    %260 = vector.broadcast %5 : vector<1x32xf32> to vector<8x32xf32>
    %261 = arith.addf %259, %260 : vector<8x32xf32>
    %262 = vector.broadcast %240 : f32 to vector<8x32xf32>
    %263 = arith.mulf %262, %261 : vector<8x32xf32>
    %264 = arith.addf %237, %263 : vector<8x32xf32>
    %265 = arith.truncf %264 : vector<8x32xf32> to vector<8x32xbf16>
    %cst_69 = arith.constant dense<0.000000e+00> : vector<8x32xf32>
    %266 = tpu.matmul %265, %2, %cst_69 {dimension_numbers = #tpu.dot_dimension_numbers<[1], [0], [0], [1], [0, 0, 1, 1], [], []>} : vector<8x32xbf16>, vector<32x32xbf16>, vector<8x32xf32> -> vector<8x32xf32>
    %267 = vector.broadcast %3 : vector<1x32xf32> to vector<8x32xf32>
    %268 = arith.addf %266, %267 : vector<8x32xf32>
    %269 = math.tanh %268 : vector<8x32xf32>
    %270 = arith.truncf %269 : vector<8x32xf32> to vector<8x32xbf16>
    %cst_70 = arith.constant dense<0.000000e+00> : vector<8x32xf32>
    %271 = tpu.matmul %270, %4, %cst_70 {dimension_numbers = #tpu.dot_dimension_numbers<[1], [0], [0], [1], [0, 0, 1, 1], [], []>} : vector<8x32xbf16>, vector<32x32xbf16>, vector<8x32xf32> -> vector<8x32xf32>
    %272 = vector.broadcast %5 : vector<1x32xf32> to vector<8x32xf32>
    %273 = arith.addf %271, %272 : vector<8x32xf32>
    %274 = vector.broadcast %239 : f32 to vector<8x32xf32>
    %275 = arith.mulf %274, %273 : vector<8x32xf32>
    %276 = arith.addf %237, %275 : vector<8x32xf32>
    %277 = arith.truncf %276 : vector<8x32xf32> to vector<8x32xbf16>
    %cst_71 = arith.constant dense<0.000000e+00> : vector<8x32xf32>
    %278 = tpu.matmul %277, %2, %cst_71 {dimension_numbers = #tpu.dot_dimension_numbers<[1], [0], [0], [1], [0, 0, 1, 1], [], []>} : vector<8x32xbf16>, vector<32x32xbf16>, vector<8x32xf32> -> vector<8x32xf32>
    %279 = vector.broadcast %3 : vector<1x32xf32> to vector<8x32xf32>
    %280 = arith.addf %278, %279 : vector<8x32xf32>
    %281 = math.tanh %280 : vector<8x32xf32>
    %282 = arith.truncf %281 : vector<8x32xf32> to vector<8x32xbf16>
    %cst_72 = arith.constant dense<0.000000e+00> : vector<8x32xf32>
    %283 = tpu.matmul %282, %4, %cst_72 {dimension_numbers = #tpu.dot_dimension_numbers<[1], [0], [0], [1], [0, 0, 1, 1], [], []>} : vector<8x32xbf16>, vector<32x32xbf16>, vector<8x32xf32> -> vector<8x32xf32>
    %284 = vector.broadcast %5 : vector<1x32xf32> to vector<8x32xf32>
    %285 = arith.addf %283, %284 : vector<8x32xf32>
    %cst_73 = arith.constant 0.166666672 : f32
    %286 = arith.mulf %239, %cst_73 : f32
    %287 = arith.addf %261, %273 : vector<8x32xf32>
    %cst_74 = arith.constant 2.000000e+00 : f32
    %288 = vector.broadcast %cst_74 : f32 to vector<8x32xf32>
    %289 = arith.mulf %288, %287 : vector<8x32xf32>
    %290 = arith.addf %249, %289 : vector<8x32xf32>
    %291 = arith.addf %290, %285 : vector<8x32xf32>
    %292 = vector.broadcast %286 : f32 to vector<8x32xf32>
    %293 = arith.mulf %292, %291 : vector<8x32xf32>
    %294 = arith.addf %237, %293 : vector<8x32xf32>
    %c40 = arith.constant 40 : index
    %c0_75 = arith.constant 0 : index
    %295 = vector.load %arg12[%c40, %c0_75] : memref<64x32xf32, #tpu.memory_space<vmem>>, vector<8x32xf32>
    tpu.vector_store %arg12[%c40, %c0_75], %294 {strides = array<i32>} : memref<64x32xf32, #tpu.memory_space<vmem>>, vector<8x32xf32>,
    %c5 = arith.constant 5 : index
    %296 = memref.load %arg0[%c5] : memref<7xf32, #tpu.memory_space<smem>>
    %cst_76 = arith.constant 5.000000e-01 : f32
    %297 = arith.mulf %cst_76, %296 : f32
    %298 = arith.truncf %294 : vector<8x32xf32> to vector<8x32xbf16>
    %cst_77 = arith.constant dense<0.000000e+00> : vector<8x32xf32>
    %299 = tpu.matmul %298, %2, %cst_77 {dimension_numbers = #tpu.dot_dimension_numbers<[1], [0], [0], [1], [0, 0, 1, 1], [], []>} : vector<8x32xbf16>, vector<32x32xbf16>, vector<8x32xf32> -> vector<8x32xf32>
    %300 = vector.broadcast %3 : vector<1x32xf32> to vector<8x32xf32>
    %301 = arith.addf %299, %300 : vector<8x32xf32>
    %302 = math.tanh %301 : vector<8x32xf32>
    %303 = arith.truncf %302 : vector<8x32xf32> to vector<8x32xbf16>
    %cst_78 = arith.constant dense<0.000000e+00> : vector<8x32xf32>
    %304 = tpu.matmul %303, %4, %cst_78 {dimension_numbers = #tpu.dot_dimension_numbers<[1], [0], [0], [1], [0, 0, 1, 1], [], []>} : vector<8x32xbf16>, vector<32x32xbf16>, vector<8x32xf32> -> vector<8x32xf32>
    %305 = vector.broadcast %5 : vector<1x32xf32> to vector<8x32xf32>
    %306 = arith.addf %304, %305 : vector<8x32xf32>
    %307 = vector.broadcast %297 : f32 to vector<8x32xf32>
    %308 = arith.mulf %307, %306 : vector<8x32xf32>
    %309 = arith.addf %294, %308 : vector<8x32xf32>
    %310 = arith.truncf %309 : vector<8x32xf32> to vector<8x32xbf16>
    %cst_79 = arith.constant dense<0.000000e+00> : vector<8x32xf32>
    %311 = tpu.matmul %310, %2, %cst_79 {dimension_numbers = #tpu.dot_dimension_numbers<[1], [0], [0], [1], [0, 0, 1, 1], [], []>} : vector<8x32xbf16>, vector<32x32xbf16>, vector<8x32xf32> -> vector<8x32xf32>
    %312 = vector.broadcast %3 : vector<1x32xf32> to vector<8x32xf32>
    %313 = arith.addf %311, %312 : vector<8x32xf32>
    %314 = math.tanh %313 : vector<8x32xf32>
    %315 = arith.truncf %314 : vector<8x32xf32> to vector<8x32xbf16>
    %cst_80 = arith.constant dense<0.000000e+00> : vector<8x32xf32>
    %316 = tpu.matmul %315, %4, %cst_80 {dimension_numbers = #tpu.dot_dimension_numbers<[1], [0], [0], [1], [0, 0, 1, 1], [], []>} : vector<8x32xbf16>, vector<32x32xbf16>, vector<8x32xf32> -> vector<8x32xf32>
    %317 = vector.broadcast %5 : vector<1x32xf32> to vector<8x32xf32>
    %318 = arith.addf %316, %317 : vector<8x32xf32>
    %319 = vector.broadcast %297 : f32 to vector<8x32xf32>
    %320 = arith.mulf %319, %318 : vector<8x32xf32>
    %321 = arith.addf %294, %320 : vector<8x32xf32>
    %322 = arith.truncf %321 : vector<8x32xf32> to vector<8x32xbf16>
    %cst_81 = arith.constant dense<0.000000e+00> : vector<8x32xf32>
    %323 = tpu.matmul %322, %2, %cst_81 {dimension_numbers = #tpu.dot_dimension_numbers<[1], [0], [0], [1], [0, 0, 1, 1], [], []>} : vector<8x32xbf16>, vector<32x32xbf16>, vector<8x32xf32> -> vector<8x32xf32>
    %324 = vector.broadcast %3 : vector<1x32xf32> to vector<8x32xf32>
    %325 = arith.addf %323, %324 : vector<8x32xf32>
    %326 = math.tanh %325 : vector<8x32xf32>
    %327 = arith.truncf %326 : vector<8x32xf32> to vector<8x32xbf16>
    %cst_82 = arith.constant dense<0.000000e+00> : vector<8x32xf32>
    %328 = tpu.matmul %327, %4, %cst_82 {dimension_numbers = #tpu.dot_dimension_numbers<[1], [0], [0], [1], [0, 0, 1, 1], [], []>} : vector<8x32xbf16>, vector<32x32xbf16>, vector<8x32xf32> -> vector<8x32xf32>
    %329 = vector.broadcast %5 : vector<1x32xf32> to vector<8x32xf32>
    %330 = arith.addf %328, %329 : vector<8x32xf32>
    %331 = vector.broadcast %296 : f32 to vector<8x32xf32>
    %332 = arith.mulf %331, %330 : vector<8x32xf32>
    %333 = arith.addf %294, %332 : vector<8x32xf32>
    %334 = arith.truncf %333 : vector<8x32xf32> to vector<8x32xbf16>
    %cst_83 = arith.constant dense<0.000000e+00> : vector<8x32xf32>
    %335 = tpu.matmul %334, %2, %cst_83 {dimension_numbers = #tpu.dot_dimension_numbers<[1], [0], [0], [1], [0, 0, 1, 1], [], []>} : vector<8x32xbf16>, vector<32x32xbf16>, vector<8x32xf32> -> vector<8x32xf32>
    %336 = vector.broadcast %3 : vector<1x32xf32> to vector<8x32xf32>
    %337 = arith.addf %335, %336 : vector<8x32xf32>
    %338 = math.tanh %337 : vector<8x32xf32>
    %339 = arith.truncf %338 : vector<8x32xf32> to vector<8x32xbf16>
    %cst_84 = arith.constant dense<0.000000e+00> : vector<8x32xf32>
    %340 = tpu.matmul %339, %4, %cst_84 {dimension_numbers = #tpu.dot_dimension_numbers<[1], [0], [0], [1], [0, 0, 1, 1], [], []>} : vector<8x32xbf16>, vector<32x32xbf16>, vector<8x32xf32> -> vector<8x32xf32>
    %341 = vector.broadcast %5 : vector<1x32xf32> to vector<8x32xf32>
    %342 = arith.addf %340, %341 : vector<8x32xf32>
    %cst_85 = arith.constant 0.166666672 : f32
    %343 = arith.mulf %296, %cst_85 : f32
    %344 = arith.addf %318, %330 : vector<8x32xf32>
    %cst_86 = arith.constant 2.000000e+00 : f32
    %345 = vector.broadcast %cst_86 : f32 to vector<8x32xf32>
    %346 = arith.mulf %345, %344 : vector<8x32xf32>
    %347 = arith.addf %306, %346 : vector<8x32xf32>
    %348 = arith.addf %347, %342 : vector<8x32xf32>
    %349 = vector.broadcast %343 : f32 to vector<8x32xf32>
    %350 = arith.mulf %349, %348 : vector<8x32xf32>
    %351 = arith.addf %294, %350 : vector<8x32xf32>
    %c48 = arith.constant 48 : index
    %c0_87 = arith.constant 0 : index
    %352 = vector.load %arg12[%c48, %c0_87] : memref<64x32xf32, #tpu.memory_space<vmem>>, vector<8x32xf32>
    tpu.vector_store %arg12[%c48, %c0_87], %351 {strides = array<i32>} : memref<64x32xf32, #tpu.memory_space<vmem>>, vector<8x32xf32>,
    %c6 = arith.constant 6 : index
    %353 = memref.load %arg0[%c6] : memref<7xf32, #tpu.memory_space<smem>>
    %cst_88 = arith.constant 5.000000e-01 : f32
    %354 = arith.mulf %cst_88, %353 : f32
    %355 = arith.truncf %351 : vector<8x32xf32> to vector<8x32xbf16>
    %cst_89 = arith.constant dense<0.000000e+00> : vector<8x32xf32>
    %356 = tpu.matmul %355, %2, %cst_89 {dimension_numbers = #tpu.dot_dimension_numbers<[1], [0], [0], [1], [0, 0, 1, 1], [], []>} : vector<8x32xbf16>, vector<32x32xbf16>, vector<8x32xf32> -> vector<8x32xf32>
    %357 = vector.broadcast %3 : vector<1x32xf32> to vector<8x32xf32>
    %358 = arith.addf %356, %357 : vector<8x32xf32>
    %359 = math.tanh %358 : vector<8x32xf32>
    %360 = arith.truncf %359 : vector<8x32xf32> to vector<8x32xbf16>
    %cst_90 = arith.constant dense<0.000000e+00> : vector<8x32xf32>
    %361 = tpu.matmul %360, %4, %cst_90 {dimension_numbers = #tpu.dot_dimension_numbers<[1], [0], [0], [1], [0, 0, 1, 1], [], []>} : vector<8x32xbf16>, vector<32x32xbf16>, vector<8x32xf32> -> vector<8x32xf32>
    %362 = vector.broadcast %5 : vector<1x32xf32> to vector<8x32xf32>
    %363 = arith.addf %361, %362 : vector<8x32xf32>
    %364 = vector.broadcast %354 : f32 to vector<8x32xf32>
    %365 = arith.mulf %364, %363 : vector<8x32xf32>
    %366 = arith.addf %351, %365 : vector<8x32xf32>
    %367 = arith.truncf %366 : vector<8x32xf32> to vector<8x32xbf16>
    %cst_91 = arith.constant dense<0.000000e+00> : vector<8x32xf32>
    %368 = tpu.matmul %367, %2, %cst_91 {dimension_numbers = #tpu.dot_dimension_numbers<[1], [0], [0], [1], [0, 0, 1, 1], [], []>} : vector<8x32xbf16>, vector<32x32xbf16>, vector<8x32xf32> -> vector<8x32xf32>
    %369 = vector.broadcast %3 : vector<1x32xf32> to vector<8x32xf32>
    %370 = arith.addf %368, %369 : vector<8x32xf32>
    %371 = math.tanh %370 : vector<8x32xf32>
    %372 = arith.truncf %371 : vector<8x32xf32> to vector<8x32xbf16>
    %cst_92 = arith.constant dense<0.000000e+00> : vector<8x32xf32>
    %373 = tpu.matmul %372, %4, %cst_92 {dimension_numbers = #tpu.dot_dimension_numbers<[1], [0], [0], [1], [0, 0, 1, 1], [], []>} : vector<8x32xbf16>, vector<32x32xbf16>, vector<8x32xf32> -> vector<8x32xf32>
    %374 = vector.broadcast %5 : vector<1x32xf32> to vector<8x32xf32>
    %375 = arith.addf %373, %374 : vector<8x32xf32>
    %376 = vector.broadcast %354 : f32 to vector<8x32xf32>
    %377 = arith.mulf %376, %375 : vector<8x32xf32>
    %378 = arith.addf %351, %377 : vector<8x32xf32>
    %379 = arith.truncf %378 : vector<8x32xf32> to vector<8x32xbf16>
    %cst_93 = arith.constant dense<0.000000e+00> : vector<8x32xf32>
    %380 = tpu.matmul %379, %2, %cst_93 {dimension_numbers = #tpu.dot_dimension_numbers<[1], [0], [0], [1], [0, 0, 1, 1], [], []>} : vector<8x32xbf16>, vector<32x32xbf16>, vector<8x32xf32> -> vector<8x32xf32>
    %381 = vector.broadcast %3 : vector<1x32xf32> to vector<8x32xf32>
    %382 = arith.addf %380, %381 : vector<8x32xf32>
    %383 = math.tanh %382 : vector<8x32xf32>
    %384 = arith.truncf %383 : vector<8x32xf32> to vector<8x32xbf16>
    %cst_94 = arith.constant dense<0.000000e+00> : vector<8x32xf32>
    %385 = tpu.matmul %384, %4, %cst_94 {dimension_numbers = #tpu.dot_dimension_numbers<[1], [0], [0], [1], [0, 0, 1, 1], [], []>} : vector<8x32xbf16>, vector<32x32xbf16>, vector<8x32xf32> -> vector<8x32xf32>
    %386 = vector.broadcast %5 : vector<1x32xf32> to vector<8x32xf32>
    %387 = arith.addf %385, %386 : vector<8x32xf32>
    %388 = vector.broadcast %353 : f32 to vector<8x32xf32>
    %389 = arith.mulf %388, %387 : vector<8x32xf32>
    %390 = arith.addf %351, %389 : vector<8x32xf32>
    %391 = arith.truncf %390 : vector<8x32xf32> to vector<8x32xbf16>
    %cst_95 = arith.constant dense<0.000000e+00> : vector<8x32xf32>
    %392 = tpu.matmul %391, %2, %cst_95 {dimension_numbers = #tpu.dot_dimension_numbers<[1], [0], [0], [1], [0, 0, 1, 1], [], []>} : vector<8x32xbf16>, vector<32x32xbf16>, vector<8x32xf32> -> vector<8x32xf32>
    %393 = vector.broadcast %3 : vector<1x32xf32> to vector<8x32xf32>
    %394 = arith.addf %392, %393 : vector<8x32xf32>
    %395 = math.tanh %394 : vector<8x32xf32>
    %396 = arith.truncf %395 : vector<8x32xf32> to vector<8x32xbf16>
    %cst_96 = arith.constant dense<0.000000e+00> : vector<8x32xf32>
    %397 = tpu.matmul %396, %4, %cst_96 {dimension_numbers = #tpu.dot_dimension_numbers<[1], [0], [0], [1], [0, 0, 1, 1], [], []>} : vector<8x32xbf16>, vector<32x32xbf16>, vector<8x32xf32> -> vector<8x32xf32>
    %398 = vector.broadcast %5 : vector<1x32xf32> to vector<8x32xf32>
    %399 = arith.addf %397, %398 : vector<8x32xf32>
    %cst_97 = arith.constant 0.166666672 : f32
    %400 = arith.mulf %353, %cst_97 : f32
    %401 = arith.addf %375, %387 : vector<8x32xf32>
    %cst_98 = arith.constant 2.000000e+00 : f32
    %402 = vector.broadcast %cst_98 : f32 to vector<8x32xf32>
    %403 = arith.mulf %402, %401 : vector<8x32xf32>
    %404 = arith.addf %363, %403 : vector<8x32xf32>
    %405 = arith.addf %404, %399 : vector<8x32xf32>
    %406 = vector.broadcast %400 : f32 to vector<8x32xf32>
    %407 = arith.mulf %406, %405 : vector<8x32xf32>
    %408 = arith.addf %351, %407 : vector<8x32xf32>
    %c56 = arith.constant 56 : index
    %c0_99 = arith.constant 0 : index
    %409 = vector.load %arg12[%c56, %c0_99] : memref<64x32xf32, #tpu.memory_space<vmem>>, vector<8x32xf32>
    tpu.vector_store %arg12[%c56, %c0_99], %408 {strides = array<i32>} : memref<64x32xf32, #tpu.memory_space<vmem>>, vector<8x32xf32>,
    %c0_100 = arith.constant 0 : index
    %c0_101 = arith.constant 0 : index
    %410 = vector.load %arg12[%c0_100, %c0_101] : memref<64x32xf32, #tpu.memory_space<vmem>>, vector<64x32xf32>
    %411 = arith.truncf %410 : vector<64x32xf32> to vector<64x32xbf16>
    %c0_102 = arith.constant 0 : index
    %c0_103 = arith.constant 0 : index
    %412 = vector.load %arg8[%c0_102, %c0_103] : memref<32x4xbf16, #tpu.memory_space<vmem>>, vector<32x4xbf16>
    %cst_104 = arith.constant dense<0.000000e+00> : vector<64x4xf32>
    %413 = tpu.matmul %411, %412, %cst_104 {dimension_numbers = #tpu.dot_dimension_numbers<[1], [0], [0], [1], [0, 0, 1, 1], [], []>} : vector<64x32xbf16>, vector<32x4xbf16>, vector<64x4xf32> -> vector<64x4xf32>
    %c0_105 = arith.constant 0 : index
    %c0_106 = arith.constant 0 : index
    %414 = vector.load %arg9[%c0_105, %c0_106] : memref<1x4xf32, #tpu.memory_space<vmem>>, vector<1x4xf32>
    %415 = vector.broadcast %414 : vector<1x4xf32> to vector<64x4xf32>
    %416 = arith.addf %413, %415 : vector<64x4xf32>
    %417 = vector.extract_strided_slice %416 {offsets = [0, 0], sizes = [64, 3], strides = [1, 1]} : vector<64x4xf32> to vector<64x3xf32>
    %c0_107 = arith.constant 0 : index
    %c0_108 = arith.constant 0 : index
    %418 = vector.load %arg10[%c0_107, %c0_108] : memref<64x3xf32, #tpu.memory_space<vmem>>, vector<64x3xf32>
    tpu.vector_store %arg10[%c0_107, %c0_108], %417 {strides = array<i32>} : memref<64x3xf32, #tpu.memory_space<vmem>>, vector<64x3xf32>,
    %419 = vector.extract_strided_slice %416 {offsets = [56, 3], sizes = [8, 1], strides = [1, 1]} : vector<64x4xf32> to vector<8x1xf32>
    %c0_109 = arith.constant 0 : index
    %c0_110 = arith.constant 0 : index
    %420 = vector.load %arg11[%c0_109, %c0_110] : memref<8x1xf32, #tpu.memory_space<vmem>>, vector<8x1xf32>
    tpu.vector_store %arg11[%c0_109, %c0_110], %419 {strides = array<i32>} : memref<8x1xf32, #tpu.memory_space<vmem>>, vector<8x1xf32>,
    return
  }
}

</mosaic_0001>

<llo_original>
// kernel: tpu_custom_call.1
$region0: #{tpu_custom_call.1}
  #allocation0 [shape = 'u32[]', space=smem, size = 0x4, offset = 0x4, fixed_abs, tag = 'smem constant byte address 0x4 - core index']
  #allocation1 [shape = 'u32[144,128]{1,0:T(1,128)}', space=vmem, size = 0x12000, scoped, tag = 'internal scratch']
  #allocation2 [shape = 'f32[64,32]{1,0:T(8,128)}', space=vmem, size = 0x8000, scoped, tag = 'scratch operand']
  %s0 = inlined_call_operand.vmem [shape: f32[7], index: 0, kind: input, shape index: {}]
  %s1 = inlined_call_operand.vmem [shape: bf16[8,4], index: 1, kind: input, shape index: {}]
  %s2 = inlined_call_operand.vmem [shape: bf16[4,32], index: 2, kind: input, shape index: {}]
  %s3 = inlined_call_operand.hbm [shape: f32[1,32], index: 3, kind: input, shape index: {}]
  %s4 = inlined_call_operand.vmem [shape: bf16[32,32], index: 4, kind: input, shape index: {}]
  %s5 = inlined_call_operand.vmem [shape: f32[1,32], index: 5, kind: input, shape index: {}]
  %s6 = inlined_call_operand.vmem [shape: bf16[32,32], index: 6, kind: input, shape index: {}]
  %s7 = inlined_call_operand.vmem [shape: f32[1,32], index: 7, kind: input, shape index: {}]
  %s8 = inlined_call_operand.vmem [shape: bf16[32,4], index: 8, kind: input, shape index: {}]
  %s9 = inlined_call_operand.vmem [shape: f32[1,4], index: 9, kind: input, shape index: {}]
  %s10 = inlined_call_operand.vmem [shape: f32[64,3], index: 10, kind: output, shape index: {0}]
  %s11 = inlined_call_operand.vmem [shape: f32[8,1], index: 11, kind: output, shape index: {1}]
  %12 = xla_tuple %s10, %s11
  %s13 = sld [smem:[#allocation0]]
  $region66: #{tpu_custom_call.1} parent=0
    _
  %s15 = ssub.s32 1, %s13
  %s16 = scalar_select 0, %s15, %s13
  $region1: #{tpu_custom_call.1} parent=0
    #allocation3 [shape = 'u8[512]{0}', space=smem, size = 0x200, scoped, tag = 'input window, operand 0, single buffered']
    #allocation4 [shape = 's32[1]{0}', space=sflag, size = 0x4, scoped, tag = 'scoped memory for tpu_custom_call.1']
    #allocation5 [shape = 's32[1]{0}', space=sflag, size = 0x4, scoped, tag = 'scoped memory for tpu_custom_call.1']
    #allocation6 [shape = 'u8[512]{0}', space=vmem, size = 0x400, scoped, tag = 'input window, operand 3, single buffered']
    %17 = vsyncpa [#allocation5], 0
    %18 = vsyncpa [#allocation4], 0
    // Predicated region
    $region2: #{tpu_custom_call.1} parent=1 // pred_check
      _
    $region3: #{tpu_custom_call.1} parent=1 // pred_check_branch
      %20 = sbr.rel (0) target = $region5
    $region4: #{tpu_custom_call.1} parent=1 // pred_region
      %s22 = ssub.s32 16, 16
      %23 = vsyncadd [#allocation5], %s22
      %s25 = sshll.u32 %s0, 4
      %s26 = int_to_ptr.vmem [resolvable:$true] %s25
      %28 = dma.vmem_to_smem %s26, 16, [#allocation3], [#allocation5]
    $region5: #{tpu_custom_call.1} parent=1 // pred_fallthru
      _
    // Predicated region
    $region6: #{tpu_custom_call.1} parent=1 // pred_check
      _
    $region7: #{tpu_custom_call.1} parent=1 // pred_check_branch
      %30 = sbr.rel (0) target = $region9
    $region8: #{tpu_custom_call.1} parent=1 // pred_region
      _
    $region9: #{tpu_custom_call.1} parent=1 // pred_fallthru
      _
    // Predicated region
    $region10: #{tpu_custom_call.1} parent=1 // pred_check
      _
    $region11: #{tpu_custom_call.1} parent=1 // pred_check_branch
      %32 = sbr.rel (0) target = $region13
    $region12: #{tpu_custom_call.1} parent=1 // pred_region
      _
    $region13: #{tpu_custom_call.1} parent=1 // pred_fallthru
      _
    // Predicated region
    $region14: #{tpu_custom_call.1} parent=1 // pred_check
      _
    $region15: #{tpu_custom_call.1} parent=1 // pred_check_branch
      %34 = sbr.rel (0) target = $region17
    $region16: #{tpu_custom_call.1} parent=1 // pred_region
      %s36 = ssub.s32 16, 16
      %37 = vsyncadd [#allocation4], %s36
      %s39 = sshll.u32 [#allocation6], 4
      %s40 = int_to_ptr.vmem [resolvable:$true] %s39
      %42 = dma.hbm_to_vmem [thread:$0]  %s3, 16, %s40, [#allocation4]
    $region17: #{tpu_custom_call.1} parent=1 // pred_fallthru
      _
    // Predicated region
    $region18: #{tpu_custom_call.1} parent=1 // pred_check
      _
    $region19: #{tpu_custom_call.1} parent=1 // pred_check_branch
      %44 = sbr.rel (0) target = $region21
    $region20: #{tpu_custom_call.1} parent=1 // pred_region
      _
    $region21: #{tpu_custom_call.1} parent=1 // pred_fallthru
      _
    // Predicated region
    $region22: #{tpu_custom_call.1} parent=1 // pred_check
      _
    $region23: #{tpu_custom_call.1} parent=1 // pred_check_branch
      %46 = sbr.rel (0) target = $region25
    $region24: #{tpu_custom_call.1} parent=1 // pred_region
      _
    $region25: #{tpu_custom_call.1} parent=1 // pred_fallthru
      _
    // Predicated region
    $region26: #{tpu_custom_call.1} parent=1 // pred_check
      _
    $region27: #{tpu_custom_call.1} parent=1 // pred_check_branch
      %48 = sbr.rel (0) target = $region29
    $region28: #{tpu_custom_call.1} parent=1 // pred_region
      _
    $region29: #{tpu_custom_call.1} parent=1 // pred_fallthru
      _
    // Predicated region
    $region30: #{tpu_custom_call.1} parent=1 // pred_check
      _
    $region31: #{tpu_custom_call.1} parent=1 // pred_check_branch
      %50 = sbr.rel (0) target = $region33
    $region32: #{tpu_custom_call.1} parent=1 // pred_region
      _
    $region33: #{tpu_custom_call.1} parent=1 // pred_fallthru
      _
    // Predicated region
    $region34: #{tpu_custom_call.1} parent=1 // pred_check
      _
    $region35: #{tpu_custom_call.1} parent=1 // pred_check_branch
      %52 = sbr.rel (0) target = $region37
    $region36: #{tpu_custom_call.1} parent=1 // pred_region
      _
    $region37: #{tpu_custom_call.1} parent=1 // pred_fallthru
      _
    // Predicated region
    $region38: #{tpu_custom_call.1} parent=1 // pred_check
      _
    $region39: #{tpu_custom_call.1} parent=1 // pred_check_branch
      %54 = sbr.rel (0) target = $region41
    $region40: #{tpu_custom_call.1} parent=1 // pred_region
      _
    $region41: #{tpu_custom_call.1} parent=1 // pred_fallthru
      _
    // Predicated region
    $region42: #{tpu_custom_call.1} parent=1 // pred_check
      _
    $region43: #{tpu_custom_call.1} parent=1 // pred_check_branch
      %56 = sbr.rel (0) target = $region45
    $region44: #{tpu_custom_call.1} parent=1 // pred_region
      %57 = dma.done [#allocation5], 16
    $region45: #{tpu_custom_call.1} parent=1 // pred_fallthru
      _
    // Predicated region
    $region46: #{tpu_custom_call.1} parent=1 // pred_check
      _
    $region47: #{tpu_custom_call.1} parent=1 // pred_check_branch
      %59 = sbr.rel (0) target = $region49
    $region48: #{tpu_custom_call.1} parent=1 // pred_region
      %60 = dma.done [#allocation4], 16
    $region49: #{tpu_custom_call.1} parent=1 // pred_fallthru
      _
    %61 = sfence
    %v63 = vld [vmem:[%s2] sm:$0x3]
    %v64 = vld [vmem:[#allocation6] sm:$0x1]
    %v65 = vld [vmem:[%s4] sm:$0xf]
    %v66 = vld [vmem:[%s4 + $0x4] sm:$0xf]
    %v67 = vld [vmem:[%s4 + $0x8] sm:$0xf]
    %v68 = vld [vmem:[%s4 + $0xc] sm:$0xf]
    %v69 = vld [vmem:[%s5] sm:$0x1]
    %v70 = vld [vmem:[%s6] sm:$0xf]
    %v71 = vld [vmem:[%s6 + $0x4] sm:$0xf]
    %v72 = vld [vmem:[%s6 + $0x8] sm:$0xf]
    %v73 = vld [vmem:[%s6 + $0xc] sm:$0xf]
    %v74 = vld [vmem:[%s7] sm:$0x1]
    %v75 = vld [vmem:[%s1] sm:$0xf]
    %v77 = vlaneseq
    %v78 = vshrl.u32 %v77, 7
    %v79 = vsub.s32 0, %v78
    %v80 = vrot.slane %v64, %v79
    %vm82 = vcmask 31744
    %v84 = vsel %vm82, %v75, 0
    %vm86 = vcmask 1041408
    %v88 = vsel %vm86, %v63, 0
    %90 = vmatprep.subr.bf16.mxu0 0
    %91 = vmatpush1.bf16.msra.mxu0 %v88
    %92 = vmatprep.subr.bf16.mxu0 0
    %93 = vmatpush1.bf16.msra.mxu0 0
    %94 = vmatprep.subr.bf16.mxu0 0
    %95 = vmatpush1.bf16.msra.mxu0 0
    %96 = vmatprep.subr.bf16.mxu0 0
    %97 = vmatpush1.bf16.msra.mxu0 0
    %98 = vmatprep.subr.bf16.mxu0 0
    %99 = vmatpush1.bf16.msra.mxu0 0
    %100 = vmatprep.subr.bf16.mxu0 0
    %101 = vmatpush1.bf16.msra.mxu0 0
    %102 = vmatprep.subr.bf16.mxu0 0
    %103 = vmatpush1.bf16.msra.mxu0 0
    %104 = vmatprep.subr.bf16.mxu0 0
    %105 = vmatpush1.bf16.msra.mxu0 0
    %106 = vmatprep.subr.bf16.mxu0 0
    %107 = vmatpush1.bf16.msra.mxu0 0
    %108 = vmatprep.subr.bf16.mxu0 0
    %109 = vmatpush1.bf16.msra.mxu0 0
    %110 = vmatprep.subr.bf16.mxu0 0
    %111 = vmatpush1.bf16.msra.mxu0 0
    %112 = vmatprep.subr.bf16.mxu0 0
    %113 = vmatpush1.bf16.msra.mxu0 0
    %114 = vmatprep.subr.bf16.mxu0 0
    %115 = vmatpush1.bf16.msra.mxu0 0
    %116 = vmatprep.subr.bf16.mxu0 0
    %117 = vmatpush1.bf16.msra.mxu0 0
    %118 = vmatprep.subr.bf16.mxu0 0
    %119 = vmatpush1.bf16.msra.mxu0 0
    %120 = vmatprep.subr.bf16.mxu0 0
    %121 = vmatpush1.bf16.msra.mxu0 0
    %122 = vmatprep.mubr.bf16.mxu0 0
    %123 = vmatmul.mubr.bf16.gmra.mrb[0].mxu0 %v84
    %v124 = vpop.f32.mrb[0].mxu0
    %v125 = vadd.f32 %v80, %v124
    %v126 = vpop.f32.mrb[0].mxu0
    %v127 = vpop.f32.mrb[0].mxu0
    %v128 = vpop.f32.mrb[0].mxu0
    %129 = vdwg.mxu0
    %vm130 = vcmask 261120
    %131 = vst.msk [vmem:[#allocation2] sm:$0xff] %vm130, %v125
    %s132 = sld [smem:[#allocation3]]
    %s133 = smul.f32 %s132, 0.5
    %v134 = vpack.c.bf16 %v125, %v125
    %v136 = vlaneseq
    %v137 = vshrl.u32 %v136, 7
    %v138 = vsub.s32 0, %v137
    %v139 = vrot.slane %v69, %v138
    %v145 = vunpack.c.l.b16 %v65
    %v146 = vunpack.c.l.b16 %v66
    %v147 = vunpack.c.l.b16 %v67
    %v148 = vunpack.c.l.b16 %v68
    %v149 = vpack.c.b16 %v146, %v145
    %v150 = vpack.c.b16 %v148, %v147
    %v154 = vsel %vm130, %v134, 0
    %156 = vmatprep.subr.bf16.mxu0 0
    %157 = vmatpush1.bf16.msra.mxu0 %v149
    %158 = vmatprep.subr.bf16.mxu0 0
    %159 = vmatpush1.bf16.msra.mxu0 %v150
    %160 = vmatprep.subr.bf16.mxu0 0
    %161 = vmatpush1.bf16.msra.mxu0 0
    %162 = vmatprep.subr.bf16.mxu0 0
    %163 = vmatpush1.bf16.msra.mxu0 0
    %164 = vmatprep.subr.bf16.mxu0 0
    %165 = vmatpush1.bf16.msra.mxu0 0
    %166 = vmatprep.subr.bf16.mxu0 0
    %167 = vmatpush1.bf16.msra.mxu0 0
    %168 = vmatprep.subr.bf16.mxu0 0
    %169 = vmatpush1.bf16.msra.mxu0 0
    %170 = vmatprep.subr.bf16.mxu0 0
    %171 = vmatpush1.bf16.msra.mxu0 0
    %172 = vmatprep.subr.bf16.mxu0 0
    %173 = vmatpush1.bf16.msra.mxu0 0
    %174 = vmatprep.subr.bf16.mxu0 0
    %175 = vmatpush1.bf16.msra.mxu0 0
    %176 = vmatprep.subr.bf16.mxu0 0
    %177 = vmatpush1.bf16.msra.mxu0 0
    %178 = vmatprep.subr.bf16.mxu0 0
    %179 = vmatpush1.bf16.msra.mxu0 0
    %180 = vmatprep.subr.bf16.mxu0 0
    %181 = vmatpush1.bf16.msra.mxu0 0
    %182 = vmatprep.subr.bf16.mxu0 0
    %183 = vmatpush1.bf16.msra.mxu0 0
    %184 = vmatprep.subr.bf16.mxu0 0
    %185 = vmatpush1.bf16.msra.mxu0 0
    %186 = vmatprep.subr.bf16.mxu0 0
    %187 = vmatpush1.bf16.msra.mxu0 0
    %188 = vmatprep.mubr.bf16.mxu0 0
    %189 = vmatmul.mubr.bf16.gmra.mrb[0].mxu0 %v154
    %v190 = vpop.f32.mrb[0].mxu0
    %v191 = vadd.f32 %v139, %v190
    %v192 = vpop.f32.mrb[0].mxu0
    %v193 = vpop.f32.mrb[0].mxu0
    %v194 = vpop.f32.mrb[0].mxu0
    %195 = vdwg.mxu0
    %v196 = vtanh.pop %v191
    %v197 = vpack.c.bf16 %v196, %v196
    %v199 = vlaneseq
    %v200 = vshrl.u32 %v199, 7
    %v201 = vsub.s32 0, %v200
    %v202 = vrot.slane %v74, %v201
    %v208 = vunpack.c.l.b16 %v70
    %v209 = vunpack.c.l.b16 %v71
    %v210 = vunpack.c.l.b16 %v72
    %v211 = vunpack.c.l.b16 %v73
    %v212 = vpack.c.b16 %v209, %v208
    %v213 = vpack.c.b16 %v211, %v210
    %v217 = vsel %vm130, %v197, 0
    %219 = vmatprep.subr.bf16.mxu0 0
    %220 = vmatpush1.bf16.msra.mxu0 %v212
    %221 = vmatprep.subr.bf16.mxu0 0
    %222 = vmatpush1.bf16.msra.mxu0 %v213
    %223 = vmatprep.subr.bf16.mxu0 0
    %224 = vmatpush1.bf16.msra.mxu0 0
    %225 = vmatprep.subr.bf16.mxu0 0
    %226 = vmatpush1.bf16.msra.mxu0 0
    %227 = vmatprep.subr.bf16.mxu0 0
    %228 = vmatpush1.bf16.msra.mxu0 0
    %229 = vmatprep.subr.bf16.mxu0 0
    %230 = vmatpush1.bf16.msra.mxu0 0
    %231 = vmatprep.subr.bf16.mxu0 0
    %232 = vmatpush1.bf16.msra.mxu0 0
    %233 = vmatprep.subr.bf16.mxu0 0
    %234 = vmatpush1.bf16.msra.mxu0 0
    %235 = vmatprep.subr.bf16.mxu0 0
    %236 = vmatpush1.bf16.msra.mxu0 0
    %237 = vmatprep.subr.bf16.mxu0 0
    %238 = vmatpush1.bf16.msra.mxu0 0
    %239 = vmatprep.subr.bf16.mxu0 0
    %240 = vmatpush1.bf16.msra.mxu0 0
    %241 = vmatprep.subr.bf16.mxu0 0
    %242 = vmatpush1.bf16.msra.mxu0 0
    %243 = vmatprep.subr.bf16.mxu0 0
    %244 = vmatpush1.bf16.msra.mxu0 0
    %245 = vmatprep.subr.bf16.mxu0 0
    %246 = vmatpush1.bf16.msra.mxu0 0
    %247 = vmatprep.subr.bf16.mxu0 0
    %248 = vmatpush1.bf16.msra.mxu0 0
    %249 = vmatprep.subr.bf16.mxu0 0
    %250 = vmatpush1.bf16.msra.mxu0 0
    %251 = vmatprep.mubr.bf16.mxu0 0
    %252 = vmatmul.mubr.bf16.gmra.mrb[0].mxu0 %v217
    %v253 = vpop.f32.mrb[0].mxu0
    %v254 = vadd.f32 %v202, %v253
    %v255 = vpop.f32.mrb[0].mxu0
    %v256 = vpop.f32.mrb[0].mxu0
    %v257 = vpop.f32.mrb[0].mxu0
    %258 = vdwg.mxu0
    %v259 = vstv %s133
    %v260 = vmul.f32 %v259, %v254
    %v261 = vadd.f32 %v125, %v260
    %v262 = vpack.c.bf16 %v261, %v261
    %v264 = vsel %vm130, %v262, 0
    %266 = vmatprep.subr.bf16.mxu0 0
    %267 = vmatpush1.bf16.msra.mxu0 %v149
    %268 = vmatprep.subr.bf16.mxu0 0
    %269 = vmatpush1.bf16.msra.mxu0 %v150
    %270 = vmatprep.subr.bf16.mxu0 0
    %271 = vmatpush1.bf16.msra.mxu0 0
    %272 = vmatprep.subr.bf16.mxu0 0
    %273 = vmatpush1.bf16.msra.mxu0 0
    %274 = vmatprep.subr.bf16.mxu0 0
    %275 = vmatpush1.bf16.msra.mxu0 0
    %276 = vmatprep.subr.bf16.mxu0 0
    %277 = vmatpush1.bf16.msra.mxu0 0
    %278 = vmatprep.subr.bf16.mxu0 0
    %279 = vmatpush1.bf16.msra.mxu0 0
    %280 = vmatprep.subr.bf16.mxu0 0
    %281 = vmatpush1.bf16.msra.mxu0 0
    %282 = vmatprep.subr.bf16.mxu0 0
    %283 = vmatpush1.bf16.msra.mxu0 0
    %284 = vmatprep.subr.bf16.mxu0 0
    %285 = vmatpush1.bf16.msra.mxu0 0
    %286 = vmatprep.subr.bf16.mxu0 0
    %287 = vmatpush1.bf16.msra.mxu0 0
    %288 = vmatprep.subr.bf16.mxu0 0
    %289 = vmatpush1.bf16.msra.mxu0 0
    %290 = vmatprep.subr.bf16.mxu0 0
    %291 = vmatpush1.bf16.msra.mxu0 0
    %292 = vmatprep.subr.bf16.mxu0 0
    %293 = vmatpush1.bf16.msra.mxu0 0
    %294 = vmatprep.subr.bf16.mxu0 0
    %295 = vmatpush1.bf16.msra.mxu0 0
    %296 = vmatprep.subr.bf16.mxu0 0
    %297 = vmatpush1.bf16.msra.mxu0 0
    %298 = vmatprep.mubr.bf16.mxu0 0
    %299 = vmatmul.mubr.bf16.gmra.mrb[0].mxu0 %v264
    %v300 = vpop.f32.mrb[0].mxu0
    %v301 = vadd.f32 %v139, %v300
    %v302 = vpop.f32.mrb[0].mxu0
    %v303 = vpop.f32.mrb[0].mxu0
    %v304 = vpop.f32.mrb[0].mxu0
    %305 = vdwg.mxu0
    %v306 = vtanh.pop %v301
    %v307 = vpack.c.bf16 %v306, %v306
    %v309 = vsel %vm130, %v307, 0
    %311 = vmatprep.subr.bf16.mxu0 0
    %312 = vmatpush1.bf16.msra.mxu0 %v212
    %313 = vmatprep.subr.bf16.mxu0 0
    %314 = vmatpush1.bf16.msra.mxu0 %v213
    %315 = vmatprep.subr.bf16.mxu0 0
    %316 = vmatpush1.bf16.msra.mxu0 0
    %317 = vmatprep.subr.bf16.mxu0 0
    %318 = vmatpush1.bf16.msra.mxu0 0
    %319 = vmatprep.subr.bf16.mxu0 0
    %320 = vmatpush1.bf16.msra.mxu0 0
    %321 = vmatprep.subr.bf16.mxu0 0
    %322 = vmatpush1.bf16.msra.mxu0 0
    %323 = vmatprep.subr.bf16.mxu0 0
    %324 = vmatpush1.bf16.msra.mxu0 0
    %325 = vmatprep.subr.bf16.mxu0 0
    %326 = vmatpush1.bf16.msra.mxu0 0
    %327 = vmatprep.subr.bf16.mxu0 0
    %328 = vmatpush1.bf16.msra.mxu0 0
    %329 = vmatprep.subr.bf16.mxu0 0
    %330 = vmatpush1.bf16.msra.mxu0 0
    %331 = vmatprep.subr.bf16.mxu0 0
    %332 = vmatpush1.bf16.msra.mxu0 0
    %333 = vmatprep.subr.bf16.mxu0 0
    %334 = vmatpush1.bf16.msra.mxu0 0
    %335 = vmatprep.subr.bf16.mxu0 0
    %336 = vmatpush1.bf16.msra.mxu0 0
    %337 = vmatprep.subr.bf16.mxu0 0
    %338 = vmatpush1.bf16.msra.mxu0 0
    %339 = vmatprep.subr.bf16.mxu0 0
    %340 = vmatpush1.bf16.msra.mxu0 0
    %341 = vmatprep.subr.bf16.mxu0 0
    %342 = vmatpush1.bf16.msra.mxu0 0
    %343 = vmatprep.mubr.bf16.mxu0 0
    %344 = vmatmul.mubr.bf16.gmra.mrb[0].mxu0 %v309
    %v345 = vpop.f32.mrb[0].mxu0
    %v346 = vadd.f32 %v202, %v345
    %v347 = vpop.f32.mrb[0].mxu0
    %v348 = vpop.f32.mrb[0].mxu0
    %v349 = vpop.f32.mrb[0].mxu0
    %350 = vdwg.mxu0
    %v351 = vmul.f32 %v259, %v346
    %v352 = vadd.f32 %v125, %v351
    %v353 = vpack.c.bf16 %v352, %v352
    %v355 = vsel %vm130, %v353, 0
    %357 = vmatprep.subr.bf16.mxu0 0
    %358 = vmatpush1.bf16.msra.mxu0 %v149
    %359 = vmatprep.subr.bf16.mxu0 0
    %360 = vmatpush1.bf16.msra.mxu0 %v150
    %361 = vmatprep.subr.bf16.mxu0 0
    %362 = vmatpush1.bf16.msra.mxu0 0
    %363 = vmatprep.subr.bf16.mxu0 0
    %364 = vmatpush1.bf16.msra.mxu0 0
    %365 = vmatprep.subr.bf16.mxu0 0
    %366 = vmatpush1.bf16.msra.mxu0 0
    %367 = vmatprep.subr.bf16.mxu0 0
    %368 = vmatpush1.bf16.msra.mxu0 0
    %369 = vmatprep.subr.bf16.mxu0 0
    %370 = vmatpush1.bf16.msra.mxu0 0
    %371 = vmatprep.subr.bf16.mxu0 0
    %372 = vmatpush1.bf16.msra.mxu0 0
    %373 = vmatprep.subr.bf16.mxu0 0
    %374 = vmatpush1.bf16.msra.mxu0 0
    %375 = vmatprep.subr.bf16.mxu0 0
    %376 = vmatpush1.bf16.msra.mxu0 0
    %377 = vmatprep.subr.bf16.mxu0 0
    %378 = vmatpush1.bf16.msra.mxu0 0
    %379 = vmatprep.subr.bf16.mxu0 0
    %380 = vmatpush1.bf16.msra.mxu0 0
    %381 = vmatprep.subr.bf16.mxu0 0
    %382 = vmatpush1.bf16.msra.mxu0 0
    %383 = vmatprep.subr.bf16.mxu0 0
    %384 = vmatpush1.bf16.msra.mxu0 0
    %385 = vmatprep.subr.bf16.mxu0 0
    %386 = vmatpush1.bf16.msra.mxu0 0
    %387 = vmatprep.subr.bf16.mxu0 0
    %388 = vmatpush1.bf16.msra.mxu0 0
    %389 = vmatprep.mubr.bf16.mxu0 0
    %390 = vmatmul.mubr.bf16.gmra.mrb[0].mxu0 %v355
    %v391 = vpop.f32.mrb[0].mxu0
    %v392 = vadd.f32 %v139, %v391
    %v393 = vpop.f32.mrb[0].mxu0
    %v394 = vpop.f32.mrb[0].mxu0
    %v395 = vpop.f32.mrb[0].mxu0
    %396 = vdwg.mxu0
    %v397 = vtanh.pop %v392
    %v398 = vpack.c.bf16 %v397, %v397
    %v400 = vsel %vm130, %v398, 0
    %402 = vmatprep.subr.bf16.mxu0 0
    %403 = vmatpush1.bf16.msra.mxu0 %v212
    %404 = vmatprep.subr.bf16.mxu0 0
    %405 = vmatpush1.bf16.msra.mxu0 %v213
    %406 = vmatprep.subr.bf16.mxu0 0
    %407 = vmatpush1.bf16.msra.mxu0 0
    %408 = vmatprep.subr.bf16.mxu0 0
    %409 = vmatpush1.bf16.msra.mxu0 0
    %410 = vmatprep.subr.bf16.mxu0 0
    %411 = vmatpush1.bf16.msra.mxu0 0
    %412 = vmatprep.subr.bf16.mxu0 0
    %413 = vmatpush1.bf16.msra.mxu0 0
    %414 = vmatprep.subr.bf16.mxu0 0
    %415 = vmatpush1.bf16.msra.mxu0 0
    %416 = vmatprep.subr.bf16.mxu0 0
    %417 = vmatpush1.bf16.msra.mxu0 0
    %418 = vmatprep.subr.bf16.mxu0 0
    %419 = vmatpush1.bf16.msra.mxu0 0
    %420 = vmatprep.subr.bf16.mxu0 0
    %421 = vmatpush1.bf16.msra.mxu0 0
    %422 = vmatprep.subr.bf16.mxu0 0
    %423 = vmatpush1.bf16.msra.mxu0 0
    %424 = vmatprep.subr.bf16.mxu0 0
    %425 = vmatpush1.bf16.msra.mxu0 0
    %426 = vmatprep.subr.bf16.mxu0 0
    %427 = vmatpush1.bf16.msra.mxu0 0
    %428 = vmatprep.subr.bf16.mxu0 0
    %429 = vmatpush1.bf16.msra.mxu0 0
    %430 = vmatprep.subr.bf16.mxu0 0
    %431 = vmatpush1.bf16.msra.mxu0 0
    %432 = vmatprep.subr.bf16.mxu0 0
    %433 = vmatpush1.bf16.msra.mxu0 0
    %434 = vmatprep.mubr.bf16.mxu0 0
    %435 = vmatmul.mubr.bf16.gmra.mrb[0].mxu0 %v400
    %v436 = vpop.f32.mrb[0].mxu0
    %v437 = vadd.f32 %v202, %v436
    %v438 = vpop.f32.mrb[0].mxu0
    %v439 = vpop.f32.mrb[0].mxu0
    %v440 = vpop.f32.mrb[0].mxu0
    %441 = vdwg.mxu0
    %v442 = vstv %s132
    %v443 = vmul.f32 %v442, %v437
    %v444 = vadd.f32 %v125, %v443
    %v445 = vpack.c.bf16 %v444, %v444
    %v447 = vsel %vm130, %v445, 0
    %449 = vmatprep.subr.bf16.mxu0 0
    %450 = vmatpush1.bf16.msra.mxu0 %v149
    %451 = vmatprep.subr.bf16.mxu0 0
    %452 = vmatpush1.bf16.msra.mxu0 %v150
    %453 = vmatprep.subr.bf16.mxu0 0
    %454 = vmatpush1.bf16.msra.mxu0 0
    %455 = vmatprep.subr.bf16.mxu0 0
    %456 = vmatpush1.bf16.msra.mxu0 0
    %457 = vmatprep.subr.bf16.mxu0 0
    %458 = vmatpush1.bf16.msra.mxu0 0
    %459 = vmatprep.subr.bf16.mxu0 0
    %460 = vmatpush1.bf16.msra.mxu0 0
    %461 = vmatprep.subr.bf16.mxu0 0
    %462 = vmatpush1.bf16.msra.mxu0 0
    %463 = vmatprep.subr.bf16.mxu0 0
    %464 = vmatpush1.bf16.msra.mxu0 0
    %465 = vmatprep.subr.bf16.mxu0 0
    %466 = vmatpush1.bf16.msra.mxu0 0
    %467 = vmatprep.subr.bf16.mxu0 0
    %468 = vmatpush1.bf16.msra.mxu0 0
    %469 = vmatprep.subr.bf16.mxu0 0
    %470 = vmatpush1.bf16.msra.mxu0 0
    %471 = vmatprep.subr.bf16.mxu0 0
    %472 = vmatpush1.bf16.msra.mxu0 0
    %473 = vmatprep.subr.bf16.mxu0 0
    %474 = vmatpush1.bf16.msra.mxu0 0
    %475 = vmatprep.subr.bf16.mxu0 0
    %476 = vmatpush1.bf16.msra.mxu0 0
    %477 = vmatprep.subr.bf16.mxu0 0
    %478 = vmatpush1.bf16.msra.mxu0 0
    %479 = vmatprep.subr.bf16.mxu0 0
    %480 = vmatpush1.bf16.msra.mxu0 0
    %481 = vmatprep.mubr.bf16.mxu0 0
    %482 = vmatmul.mubr.bf16.gmra.mrb[0].mxu0 %v447
    %v483 = vpop.f32.mrb[0].mxu0
    %v484 = vadd.f32 %v139, %v483
    %v485 = vpop.f32.mrb[0].mxu0
    %v486 = vpop.f32.mrb[0].mxu0
    %v487 = vpop.f32.mrb[0].mxu0
    %488 = vdwg.mxu0
    %v489 = vtanh.pop %v484
    %v490 = vpack.c.bf16 %v489, %v489
    %v492 = vsel %vm130, %v490, 0
    %494 = vmatprep.subr.bf16.mxu0 0
    %495 = vmatpush1.bf16.msra.mxu0 %v212
    %496 = vmatprep.subr.bf16.mxu0 0
    %497 = vmatpush1.bf16.msra.mxu0 %v213
    %498 = vmatprep.subr.bf16.mxu0 0
    %499 = vmatpush1.bf16.msra.mxu0 0
    %500 = vmatprep.subr.bf16.mxu0 0
    %501 = vmatpush1.bf16.msra.mxu0 0
    %502 = vmatprep.subr.bf16.mxu0 0
    %503 = vmatpush1.bf16.msra.mxu0 0
    %504 = vmatprep.subr.bf16.mxu0 0
    %505 = vmatpush1.bf16.msra.mxu0 0
    %506 = vmatprep.subr.bf16.mxu0 0
    %507 = vmatpush1.bf16.msra.mxu0 0
    %508 = vmatprep.subr.bf16.mxu0 0
    %509 = vmatpush1.bf16.msra.mxu0 0
    %510 = vmatprep.subr.bf16.mxu0 0
    %511 = vmatpush1.bf16.msra.mxu0 0
    %512 = vmatprep.subr.bf16.mxu0 0
    %513 = vmatpush1.bf16.msra.mxu0 0
    %514 = vmatprep.subr.bf16.mxu0 0
    %515 = vmatpush1.bf16.msra.mxu0 0
    %516 = vmatprep.subr.bf16.mxu0 0
    %517 = vmatpush1.bf16.msra.mxu0 0
    %518 = vmatprep.subr.bf16.mxu0 0
    %519 = vmatpush1.bf16.msra.mxu0 0
    %520 = vmatprep.subr.bf16.mxu0 0
    %521 = vmatpush1.bf16.msra.mxu0 0
    %522 = vmatprep.subr.bf16.mxu0 0
    %523 = vmatpush1.bf16.msra.mxu0 0
    %524 = vmatprep.subr.bf16.mxu0 0
    %525 = vmatpush1.bf16.msra.mxu0 0
    %526 = vmatprep.mubr.bf16.mxu0 0
    %527 = vmatmul.mubr.bf16.gmra.mrb[0].mxu0 %v492
    %v528 = vpop.f32.mrb[0].mxu0
    %v529 = vadd.f32 %v202, %v528
    %v530 = vpop.f32.mrb[0].mxu0
    %v531 = vpop.f32.mrb[0].mxu0
    %v532 = vpop.f32.mrb[0].mxu0
    %533 = vdwg.mxu0
    %s534 = smul.f32 %s132, 0.16666667
    %v535 = vadd.f32 %v346, %v437
    %v536 = vmul.f32 %v535, 2.0
    %v537 = vadd.f32 %v254, %v536
    %v538 = vadd.f32 %v537, %v529
    %v539 = vstv %s534
    %v540 = vmul.f32 %v539, %v538
    %v541 = vadd.f32 %v125, %v540
    %542 = vst.msk [vmem:[#allocation2 + $0x8] sm:$0xff] %vm130, %v541
    %s543 = sld [smem:[#allocation3 + $0x1]]
    %s544 = smul.f32 %s543, 0.5
    %v545 = vpack.c.bf16 %v541, %v541
    %v547 = vsel %vm130, %v545, 0
    %549 = vmatprep.subr.bf16.mxu0 0
    %550 = vmatpush1.bf16.msra.mxu0 %v149
    %551 = vmatprep.subr.bf16.mxu0 0
    %552 = vmatpush1.bf16.msra.mxu0 %v150
    %553 = vmatprep.subr.bf16.mxu0 0
    %554 = vmatpush1.bf16.msra.mxu0 0
    %555 = vmatprep.subr.bf16.mxu0 0
    %556 = vmatpush1.bf16.msra.mxu0 0
    %557 = vmatprep.subr.bf16.mxu0 0
    %558 = vmatpush1.bf16.msra.mxu0 0
    %559 = vmatprep.subr.bf16.mxu0 0
    %560 = vmatpush1.bf16.msra.mxu0 0
    %561 = vmatprep.subr.bf16.mxu0 0
    %562 = vmatpush1.bf16.msra.mxu0 0
    %563 = vmatprep.subr.bf16.mxu0 0
    %564 = vmatpush1.bf16.msra.mxu0 0
    %565 = vmatprep.subr.bf16.mxu0 0
    %566 = vmatpush1.bf16.msra.mxu0 0
    %567 = vmatprep.subr.bf16.mxu0 0
    %568 = vmatpush1.bf16.msra.mxu0 0
    %569 = vmatprep.subr.bf16.mxu0 0
    %570 = vmatpush1.bf16.msra.mxu0 0
    %571 = vmatprep.subr.bf16.mxu0 0
    %572 = vmatpush1.bf16.msra.mxu0 0
    %573 = vmatprep.subr.bf16.mxu0 0
    %574 = vmatpush1.bf16.msra.mxu0 0
    %575 = vmatprep.subr.bf16.mxu0 0
    %576 = vmatpush1.bf16.msra.mxu0 0
    %577 = vmatprep.subr.bf16.mxu0 0
    %578 = vmatpush1.bf16.msra.mxu0 0
    %579 = vmatprep.subr.bf16.mxu0 0
    %580 = vmatpush1.bf16.msra.mxu0 0
    %581 = vmatprep.mubr.bf16.mxu0 0
    %582 = vmatmul.mubr.bf16.gmra.mrb[0].mxu0 %v547
    %v583 = vpop.f32.mrb[0].mxu0
    %v584 = vadd.f32 %v139, %v583
    %v585 = vpop.f32.mrb[0].mxu0
    %v586 = vpop.f32.mrb[0].mxu0
    %v587 = vpop.f32.mrb[0].mxu0
    %588 = vdwg.mxu0
    %v589 = vtanh.pop %v584
    %v590 = vpack.c.bf16 %v589, %v589
    %v592 = vsel %vm130, %v590, 0
    %594 = vmatprep.subr.bf16.mxu0 0
    %595 = vmatpush1.bf16.msra.mxu0 %v212
    %596 = vmatprep.subr.bf16.mxu0 0
    %597 = vmatpush1.bf16.msra.mxu0 %v213
    %598 = vmatprep.subr.bf16.mxu0 0
    %599 = vmatpush1.bf16.msra.mxu0 0
    %600 = vmatprep.subr.bf16.mxu0 0
    %601 = vmatpush1.bf16.msra.mxu0 0
    %602 = vmatprep.subr.bf16.mxu0 0
    %603 = vmatpush1.bf16.msra.mxu0 0
    %604 = vmatprep.subr.bf16.mxu0 0
    %605 = vmatpush1.bf16.msra.mxu0 0
    %606 = vmatprep.subr.bf16.mxu0 0
    %607 = vmatpush1.bf16.msra.mxu0 0
    %608 = vmatprep.subr.bf16.mxu0 0
    %609 = vmatpush1.bf16.msra.mxu0 0
    %610 = vmatprep.subr.bf16.mxu0 0
    %611 = vmatpush1.bf16.msra.mxu0 0
    %612 = vmatprep.subr.bf16.mxu0 0
    %613 = vmatpush1.bf16.msra.mxu0 0
    %614 = vmatprep.subr.bf16.mxu0 0
    %615 = vmatpush1.bf16.msra.mxu0 0
    %616 = vmatprep.subr.bf16.mxu0 0
    %617 = vmatpush1.bf16.msra.mxu0 0
    %618 = vmatprep.subr.bf16.mxu0 0
    %619 = vmatpush1.bf16.msra.mxu0 0
    %620 = vmatprep.subr.bf16.mxu0 0
    %621 = vmatpush1.bf16.msra.mxu0 0
    %622 = vmatprep.subr.bf16.mxu0 0
    %623 = vmatpush1.bf16.msra.mxu0 0
    %624 = vmatprep.subr.bf16.mxu0 0
    %625 = vmatpush1.bf16.msra.mxu0 0
    %626 = vmatprep.mubr.bf16.mxu0 0
    %627 = vmatmul.mubr.bf16.gmra.mrb[0].mxu0 %v592
    %v628 = vpop.f32.mrb[0].mxu0
    %v629 = vadd.f32 %v202, %v628
    %v630 = vpop.f32.mrb[0].mxu0
    %v631 = vpop.f32.mrb[0].mxu0
    %v632 = vpop.f32.mrb[0].mxu0
    %633 = vdwg.mxu0
    %v634 = vstv %s544
    %v635 = vmul.f32 %v634, %v629
    %v636 = vadd.f32 %v541, %v635
    %v637 = vpack.c.bf16 %v636, %v636
    %v639 = vsel %vm130, %v637, 0
    %641 = vmatprep.subr.bf16.mxu0 0
    %642 = vmatpush1.bf16.msra.mxu0 %v149
    %643 = vmatprep.subr.bf16.mxu0 0
    %644 = vmatpush1.bf16.msra.mxu0 %v150
    %645 = vmatprep.subr.bf16.mxu0 0
    %646 = vmatpush1.bf16.msra.mxu0 0
    %647 = vmatprep.subr.bf16.mxu0 0
    %648 = vmatpush1.bf16.msra.mxu0 0
    %649 = vmatprep.subr.bf16.mxu0 0
    %650 = vmatpush1.bf16.msra.mxu0 0
    %651 = vmatprep.subr.bf16.mxu0 0
    %652 = vmatpush1.bf16.msra.mxu0 0
    %653 = vmatprep.subr.bf16.mxu0 0
    %654 = vmatpush1.bf16.msra.mxu0 0
    %655 = vmatprep.subr.bf16.mxu0 0
    %656 = vmatpush1.bf16.msra.mxu0 0
    %657 = vmatprep.subr.bf16.mxu0 0
    %658 = vmatpush1.bf16.msra.mxu0 0
    %659 = vmatprep.subr.bf16.mxu0 0
    %660 = vmatpush1.bf16.msra.mxu0 0
    %661 = vmatprep.subr.bf16.mxu0 0
    %662 = vmatpush1.bf16.msra.mxu0 0
    %663 = vmatprep.subr.bf16.mxu0 0
    %664 = vmatpush1.bf16.msra.mxu0 0
    %665 = vmatprep.subr.bf16.mxu0 0
    %666 = vmatpush1.bf16.msra.mxu0 0
    %667 = vmatprep.subr.bf16.mxu0 0
    %668 = vmatpush1.bf16.msra.mxu0 0
    %669 = vmatprep.subr.bf16.mxu0 0
    %670 = vmatpush1.bf16.msra.mxu0 0
    %671 = vmatprep.subr.bf16.mxu0 0
    %672 = vmatpush1.bf16.msra.mxu0 0
    %673 = vmatprep.mubr.bf16.mxu0 0
    %674 = vmatmul.mubr.bf16.gmra.mrb[0].mxu0 %v639
    %v675 = vpop.f32.mrb[0].mxu0
    %v676 = vadd.f32 %v139, %v675
    %v677 = vpop.f32.mrb[0].mxu0
    %v678 = vpop.f32.mrb[0].mxu0
    %v679 = vpop.f32.mrb[0].mxu0
    %680 = vdwg.mxu0
    %v681 = vtanh.pop %v676
    %v682 = vpack.c.bf16 %v681, %v681
    %v684 = vsel %vm130, %v682, 0
    %686 = vmatprep.subr.bf16.mxu0 0
    %687 = vmatpush1.bf16.msra.mxu0 %v212
    %688 = vmatprep.subr.bf16.mxu0 0
    %689 = vmatpush1.bf16.msra.mxu0 %v213
    %690 = vmatprep.subr.bf16.mxu0 0
    %691 = vmatpush1.bf16.msra.mxu0 0
    %692 = vmatprep.subr.bf16.mxu0 0
    %693 = vmatpush1.bf16.msra.mxu0 0
    %694 = vmatprep.subr.bf16.mxu0 0
    %695 = vmatpush1.bf16.msra.mxu0 0
    %696 = vmatprep.subr.bf16.mxu0 0
    %697 = vmatpush1.bf16.msra.mxu0 0
    %698 = vmatprep.subr.bf16.mxu0 0
    %699 = vmatpush1.bf16.msra.mxu0 0
    %700 = vmatprep.subr.bf16.mxu0 0
    %701 = vmatpush1.bf16.msra.mxu0 0
    %702 = vmatprep.subr.bf16.mxu0 0
    %703 = vmatpush1.bf16.msra.mxu0 0
    %704 = vmatprep.subr.bf16.mxu0 0
    %705 = vmatpush1.bf16.msra.mxu0 0
    %706 = vmatprep.subr.bf16.mxu0 0
    %707 = vmatpush1.bf16.msra.mxu0 0
    %708 = vmatprep.subr.bf16.mxu0 0
    %709 = vmatpush1.bf16.msra.mxu0 0
    %710 = vmatprep.subr.bf16.mxu0 0
    %711 = vmatpush1.bf16.msra.mxu0 0
    %712 = vmatprep.subr.bf16.mxu0 0
    %713 = vmatpush1.bf16.msra.mxu0 0
    %714 = vmatprep.subr.bf16.mxu0 0
    %715 = vmatpush1.bf16.msra.mxu0 0
    %716 = vmatprep.subr.bf16.mxu0 0
    %717 = vmatpush1.bf16.msra.mxu0 0
    %718 = vmatprep.mubr.bf16.mxu0 0
    %719 = vmatmul.mubr.bf16.gmra.mrb[0].mxu0 %v684
    %v720 = vpop.f32.mrb[0].mxu0
    %v721 = vadd.f32 %v202, %v720
    %v722 = vpop.f32.mrb[0].mxu0
    %v723 = vpop.f32.mrb[0].mxu0
    %v724 = vpop.f32.mrb[0].mxu0
    %725 = vdwg.mxu0
    %v726 = vmul.f32 %v634, %v721
    %v727 = vadd.f32 %v541, %v726
    %v728 = vpack.c.bf16 %v727, %v727
    %v730 = vsel %vm130, %v728, 0
    %732 = vmatprep.subr.bf16.mxu0 0
    %733 = vmatpush1.bf16.msra.mxu0 %v149
    %734 = vmatprep.subr.bf16.mxu0 0
    %735 = vmatpush1.bf16.msra.mxu0 %v150
    %736 = vmatprep.subr.bf16.mxu0 0
    %737 = vmatpush1.bf16.msra.mxu0 0
    %738 = vmatprep.subr.bf16.mxu0 0
    %739 = vmatpush1.bf16.msra.mxu0 0
    %740 = vmatprep.subr.bf16.mxu0 0
    %741 = vmatpush1.bf16.msra.mxu0 0
    %742 = vmatprep.subr.bf16.mxu0 0
    %743 = vmatpush1.bf16.msra.mxu0 0
    %744 = vmatprep.subr.bf16.mxu0 0
    %745 = vmatpush1.bf16.msra.mxu0 0
    %746 = vmatprep.subr.bf16.mxu0 0
    %747 = vmatpush1.bf16.msra.mxu0 0
    %748 = vmatprep.subr.bf16.mxu0 0
    %749 = vmatpush1.bf16.msra.mxu0 0
    %750 = vmatprep.subr.bf16.mxu0 0
    %751 = vmatpush1.bf16.msra.mxu0 0
    %752 = vmatprep.subr.bf16.mxu0 0
    %753 = vmatpush1.bf16.msra.mxu0 0
    %754 = vmatprep.subr.bf16.mxu0 0
    %755 = vmatpush1.bf16.msra.mxu0 0
    %756 = vmatprep.subr.bf16.mxu0 0
    %757 = vmatpush1.bf16.msra.mxu0 0
    %758 = vmatprep.subr.bf16.mxu0 0
    %759 = vmatpush1.bf16.msra.mxu0 0
    %760 = vmatprep.subr.bf16.mxu0 0
    %761 = vmatpush1.bf16.msra.mxu0 0
    %762 = vmatprep.subr.bf16.mxu0 0
    %763 = vmatpush1.bf16.msra.mxu0 0
    %764 = vmatprep.mubr.bf16.mxu0 0
    %765 = vmatmul.mubr.bf16.gmra.mrb[0].mxu0 %v730
    %v766 = vpop.f32.mrb[0].mxu0
    %v767 = vadd.f32 %v139, %v766
    %v768 = vpop.f32.mrb[0].mxu0
    %v769 = vpop.f32.mrb[0].mxu0
    %v770 = vpop.f32.mrb[0].mxu0
    %771 = vdwg.mxu0
    %v772 = vtanh.pop %v767
    %v773 = vpack.c.bf16 %v772, %v772
    %v775 = vsel %vm130, %v773, 0
    %777 = vmatprep.subr.bf16.mxu0 0
    %778 = vmatpush1.bf16.msra.mxu0 %v212
    %779 = vmatprep.subr.bf16.mxu0 0
    %780 = vmatpush1.bf16.msra.mxu0 %v213
    %781 = vmatprep.subr.bf16.mxu0 0
    %782 = vmatpush1.bf16.msra.mxu0 0
    %783 = vmatprep.subr.bf16.mxu0 0
    %784 = vmatpush1.bf16.msra.mxu0 0
    %785 = vmatprep.subr.bf16.mxu0 0
    %786 = vmatpush1.bf16.msra.mxu0 0
    %787 = vmatprep.subr.bf16.mxu0 0
    %788 = vmatpush1.bf16.msra.mxu0 0
    %789 = vmatprep.subr.bf16.mxu0 0
    %790 = vmatpush1.bf16.msra.mxu0 0
    %791 = vmatprep.subr.bf16.mxu0 0
    %792 = vmatpush1.bf16.msra.mxu0 0
    %793 = vmatprep.subr.bf16.mxu0 0
    %794 = vmatpush1.bf16.msra.mxu0 0
    %795 = vmatprep.subr.bf16.mxu0 0
    %796 = vmatpush1.bf16.msra.mxu0 0
    %797 = vmatprep.subr.bf16.mxu0 0
    %798 = vmatpush1.bf16.msra.mxu0 0
    %799 = vmatprep.subr.bf16.mxu0 0
    %800 = vmatpush1.bf16.msra.mxu0 0
    %801 = vmatprep.subr.bf16.mxu0 0
    %802 = vmatpush1.bf16.msra.mxu0 0
    %803 = vmatprep.subr.bf16.mxu0 0
    %804 = vmatpush1.bf16.msra.mxu0 0
    %805 = vmatprep.subr.bf16.mxu0 0
    %806 = vmatpush1.bf16.msra.mxu0 0
    %807 = vmatprep.subr.bf16.mxu0 0
    %808 = vmatpush1.bf16.msra.mxu0 0
    %809 = vmatprep.mubr.bf16.mxu0 0
    %810 = vmatmul.mubr.bf16.gmra.mrb[0].mxu0 %v775
    %v811 = vpop.f32.mrb[0].mxu0
    %v812 = vadd.f32 %v202, %v811
    %v813 = vpop.f32.mrb[0].mxu0
    %v814 = vpop.f32.mrb[0].mxu0
    %v815 = vpop.f32.mrb[0].mxu0
    %816 = vdwg.mxu0
    %v817 = vstv %s543
    %v818 = vmul.f32 %v817, %v812
    %v819 = vadd.f32 %v541, %v818
    %v820 = vpack.c.bf16 %v819, %v819
    %v822 = vsel %vm130, %v820, 0
    %824 = vmatprep.subr.bf16.mxu0 0
    %825 = vmatpush1.bf16.msra.mxu0 %v149
    %826 = vmatprep.subr.bf16.mxu0 0
    %827 = vmatpush1.bf16.msra.mxu0 %v150
    %828 = vmatprep.subr.bf16.mxu0 0
    %829 = vmatpush1.bf16.msra.mxu0 0
    %830 = vmatprep.subr.bf16.mxu0 0
    %831 = vmatpush1.bf16.msra.mxu0 0
    %832 = vmatprep.subr.bf16.mxu0 0
    %833 = vmatpush1.bf16.msra.mxu0 0
    %834 = vmatprep.subr.bf16.mxu0 0
    %835 = vmatpush1.bf16.msra.mxu0 0
    %836 = vmatprep.subr.bf16.mxu0 0
    %837 = vmatpush1.bf16.msra.mxu0 0
    %838 = vmatprep.subr.bf16.mxu0 0
    %839 = vmatpush1.bf16.msra.mxu0 0
    %840 = vmatprep.subr.bf16.mxu0 0
    %841 = vmatpush1.bf16.msra.mxu0 0
    %842 = vmatprep.subr.bf16.mxu0 0
    %843 = vmatpush1.bf16.msra.mxu0 0
    %844 = vmatprep.subr.bf16.mxu0 0
    %845 = vmatpush1.bf16.msra.mxu0 0
    %846 = vmatprep.subr.bf16.mxu0 0
    %847 = vmatpush1.bf16.msra.mxu0 0
    %848 = vmatprep.subr.bf16.mxu0 0
    %849 = vmatpush1.bf16.msra.mxu0 0
    %850 = vmatprep.subr.bf16.mxu0 0
    %851 = vmatpush1.bf16.msra.mxu0 0
    %852 = vmatprep.subr.bf16.mxu0 0
    %853 = vmatpush1.bf16.msra.mxu0 0
    %854 = vmatprep.subr.bf16.mxu0 0
    %855 = vmatpush1.bf16.msra.mxu0 0
    %856 = vmatprep.mubr.bf16.mxu0 0
    %857 = vmatmul.mubr.bf16.gmra.mrb[0].mxu0 %v822
    %v858 = vpop.f32.mrb[0].mxu0
    %v859 = vadd.f32 %v139, %v858
    %v860 = vpop.f32.mrb[0].mxu0
    %v861 = vpop.f32.mrb[0].mxu0
    %v862 = vpop.f32.mrb[0].mxu0
    %863 = vdwg.mxu0
    %v864 = vtanh.pop %v859
    %v865 = vpack.c.bf16 %v864, %v864
    %v867 = vsel %vm130, %v865, 0
    %869 = vmatprep.subr.bf16.mxu0 0
    %870 = vmatpush1.bf16.msra.mxu0 %v212
    %871 = vmatprep.subr.bf16.mxu0 0
    %872 = vmatpush1.bf16.msra.mxu0 %v213
    %873 = vmatprep.subr.bf16.mxu0 0
    %874 = vmatpush1.bf16.msra.mxu0 0
    %875 = vmatprep.subr.bf16.mxu0 0
    %876 = vmatpush1.bf16.msra.mxu0 0
    %877 = vmatprep.subr.bf16.mxu0 0
    %878 = vmatpush1.bf16.msra.mxu0 0
    %879 = vmatprep.subr.bf16.mxu0 0
    %880 = vmatpush1.bf16.msra.mxu0 0
    %881 = vmatprep.subr.bf16.mxu0 0
    %882 = vmatpush1.bf16.msra.mxu0 0
    %883 = vmatprep.subr.bf16.mxu0 0
    %884 = vmatpush1.bf16.msra.mxu0 0
    %885 = vmatprep.subr.bf16.mxu0 0
    %886 = vmatpush1.bf16.msra.mxu0 0
    %887 = vmatprep.subr.bf16.mxu0 0
    %888 = vmatpush1.bf16.msra.mxu0 0
    %889 = vmatprep.subr.bf16.mxu0 0
    %890 = vmatpush1.bf16.msra.mxu0 0
    %891 = vmatprep.subr.bf16.mxu0 0
    %892 = vmatpush1.bf16.msra.mxu0 0
    %893 = vmatprep.subr.bf16.mxu0 0
    %894 = vmatpush1.bf16.msra.mxu0 0
    %895 = vmatprep.subr.bf16.mxu0 0
    %896 = vmatpush1.bf16.msra.mxu0 0
    %897 = vmatprep.subr.bf16.mxu0 0
    %898 = vmatpush1.bf16.msra.mxu0 0
    %899 = vmatprep.subr.bf16.mxu0 0
    %900 = vmatpush1.bf16.msra.mxu0 0
    %901 = vmatprep.mubr.bf16.mxu0 0
    %902 = vmatmul.mubr.bf16.gmra.mrb[0].mxu0 %v867
    %v903 = vpop.f32.mrb[0].mxu0
    %v904 = vadd.f32 %v202, %v903
    %v905 = vpop.f32.mrb[0].mxu0
    %v906 = vpop.f32.mrb[0].mxu0
    %v907 = vpop.f32.mrb[0].mxu0
    %908 = vdwg.mxu0
    %s909 = smul.f32 %s543, 0.16666667
    %v910 = vadd.f32 %v721, %v812
    %v911 = vmul.f32 %v910, 2.0
    %v912 = vadd.f32 %v629, %v911
    %v913 = vadd.f32 %v912, %v904
    %v914 = vstv %s909
    %v915 = vmul.f32 %v914, %v913
    %v916 = vadd.f32 %v541, %v915
    %917 = vst.msk [vmem:[#allocation2 + $0x10] sm:$0xff] %vm130, %v916
    %s918 = sld [smem:[#allocation3 + $0x2]]
    %s919 = smul.f32 %s918, 0.5
    %v920 = vpack.c.bf16 %v916, %v916
    %v922 = vsel %vm130, %v920, 0
    %924 = vmatprep.subr.bf16.mxu0 0
    %925 = vmatpush1.bf16.msra.mxu0 %v149
    %926 = vmatprep.subr.bf16.mxu0 0
    %927 = vmatpush1.bf16.msra.mxu0 %v150
    %928 = vmatprep.subr.bf16.mxu0 0
    %929 = vmatpush1.bf16.msra.mxu0 0
    %930 = vmatprep.subr.bf16.mxu0 0
    %931 = vmatpush1.bf16.msra.mxu0 0
    %932 = vmatprep.subr.bf16.mxu0 0
    %933 = vmatpush1.bf16.msra.mxu0 0
    %934 = vmatprep.subr.bf16.mxu0 0
    %935 = vmatpush1.bf16.msra.mxu0 0
    %936 = vmatprep.subr.bf16.mxu0 0
    %937 = vmatpush1.bf16.msra.mxu0 0
    %938 = vmatprep.subr.bf16.mxu0 0
    %939 = vmatpush1.bf16.msra.mxu0 0
    %940 = vmatprep.subr.bf16.mxu0 0
    %941 = vmatpush1.bf16.msra.mxu0 0
    %942 = vmatprep.subr.bf16.mxu0 0
    %943 = vmatpush1.bf16.msra.mxu0 0
    %944 = vmatprep.subr.bf16.mxu0 0
    %945 = vmatpush1.bf16.msra.mxu0 0
    %946 = vmatprep.subr.bf16.mxu0 0
    %947 = vmatpush1.bf16.msra.mxu0 0
    %948 = vmatprep.subr.bf16.mxu0 0
    %949 = vmatpush1.bf16.msra.mxu0 0
    %950 = vmatprep.subr.bf16.mxu0 0
    %951 = vmatpush1.bf16.msra.mxu0 0
    %952 = vmatprep.subr.bf16.mxu0 0
    %953 = vmatpush1.bf16.msra.mxu0 0
    %954 = vmatprep.subr.bf16.mxu0 0
    %955 = vmatpush1.bf16.msra.mxu0 0
    %956 = vmatprep.mubr.bf16.mxu0 0
    %957 = vmatmul.mubr.bf16.gmra.mrb[0].mxu0 %v922
    %v958 = vpop.f32.mrb[0].mxu0
    %v959 = vadd.f32 %v139, %v958
    %v960 = vpop.f32.mrb[0].mxu0
    %v961 = vpop.f32.mrb[0].mxu0
    %v962 = vpop.f32.mrb[0].mxu0
    %963 = vdwg.mxu0
    %v964 = vtanh.pop %v959
    %v965 = vpack.c.bf16 %v964, %v964
    %v967 = vsel %vm130, %v965, 0
    %969 = vmatprep.subr.bf16.mxu0 0
    %970 = vmatpush1.bf16.msra.mxu0 %v212
    %971 = vmatprep.subr.bf16.mxu0 0
    %972 = vmatpush1.bf16.msra.mxu0 %v213
    %973 = vmatprep.subr.bf16.mxu0 0
    %974 = vmatpush1.bf16.msra.mxu0 0
    %975 = vmatprep.subr.bf16.mxu0 0
    %976 = vmatpush1.bf16.msra.mxu0 0
    %977 = vmatprep.subr.bf16.mxu0 0
    %978 = vmatpush1.bf16.msra.mxu0 0
    %979 = vmatprep.subr.bf16.mxu0 0
    %980 = vmatpush1.bf16.msra.mxu0 0
    %981 = vmatprep.subr.bf16.mxu0 0
    %982 = vmatpush1.bf16.msra.mxu0 0
    %983 = vmatprep.subr.bf16.mxu0 0
    %984 = vmatpush1.bf16.msra.mxu0 0
    %985 = vmatprep.subr.bf16.mxu0 0
    %986 = vmatpush1.bf16.msra.mxu0 0
    %987 = vmatprep.subr.bf16.mxu0 0
    %988 = vmatpush1.bf16.msra.mxu0 0
    %989 = vmatprep.subr.bf16.mxu0 0
    %990 = vmatpush1.bf16.msra.mxu0 0
    %991 = vmatprep.subr.bf16.mxu0 0
    %992 = vmatpush1.bf16.msra.mxu0 0
    %993 = vmatprep.subr.bf16.mxu0 0
    %994 = vmatpush1.bf16.msra.mxu0 0
    %995 = vmatprep.subr.bf16.mxu0 0
    %996 = vmatpush1.bf16.msra.mxu0 0
    %997 = vmatprep.subr.bf16.mxu0 0
    %998 = vmatpush1.bf16.msra.mxu0 0
    %999 = vmatprep.subr.bf16.mxu0 0
    %1000 = vmatpush1.bf16.msra.mxu0 0
    %1001 = vmatprep.mubr.bf16.mxu0 0
    %1002 = vmatmul.mubr.bf16.gmra.mrb[0].mxu0 %v967
    %v1003 = vpop.f32.mrb[0].mxu0
    %v1004 = vadd.f32 %v202, %v1003
    %v1005 = vpop.f32.mrb[0].mxu0
    %v1006 = vpop.f32.mrb[0].mxu0
    %v1007 = vpop.f32.mrb[0].mxu0
    %1008 = vdwg.mxu0
    %v1009 = vstv %s919
    %v1010 = vmul.f32 %v1009, %v1004
    %v1011 = vadd.f32 %v916, %v1010
    %v1012 = vpack.c.bf16 %v1011, %v1011
    %v1014 = vsel %vm130, %v1012, 0
    %1016 = vmatprep.subr.bf16.mxu0 0
    %1017 = vmatpush1.bf16.msra.mxu0 %v149
    %1018 = vmatprep.subr.bf16.mxu0 0
    %1019 = vmatpush1.bf16.msra.mxu0 %v150
    %1020 = vmatprep.subr.bf16.mxu0 0
    %1021 = vmatpush1.bf16.msra.mxu0 0
    %1022 = vmatprep.subr.bf16.mxu0 0
    %1023 = vmatpush1.bf16.msra.mxu0 0
    %1024 = vmatprep.subr.bf16.mxu0 0
    %1025 = vmatpush1.bf16.msra.mxu0 0
    %1026 = vmatprep.subr.bf16.mxu0 0
    %1027 = vmatpush1.bf16.msra.mxu0 0
    %1028 = vmatprep.subr.bf16.mxu0 0
    %1029 = vmatpush1.bf16.msra.mxu0 0
    %1030 = vmatprep.subr.bf16.mxu0 0
    %1031 = vmatpush1.bf16.msra.mxu0 0
    %1032 = vmatprep.subr.bf16.mxu0 0
    %1033 = vmatpush1.bf16.msra.mxu0 0
    %1034 = vmatprep.subr.bf16.mxu0 0
    %1035 = vmatpush1.bf16.msra.mxu0 0
    %1036 = vmatprep.subr.bf16.mxu0 0
    %1037 = vmatpush1.bf16.msra.mxu0 0
    %1038 = vmatprep.subr.bf16.mxu0 0
    %1039 = vmatpush1.bf16.msra.mxu0 0
    %1040 = vmatprep.subr.bf16.mxu0 0
    %1041 = vmatpush1.bf16.msra.mxu0 0
    %1042 = vmatprep.subr.bf16.mxu0 0
    %1043 = vmatpush1.bf16.msra.mxu0 0
    %1044 = vmatprep.subr.bf16.mxu0 0
    %1045 = vmatpush1.bf16.msra.mxu0 0
    %1046 = vmatprep.subr.bf16.mxu0 0
    %1047 = vmatpush1.bf16.msra.mxu0 0
    %1048 = vmatprep.mubr.bf16.mxu0 0
    %1049 = vmatmul.mubr.bf16.gmra.mrb[0].mxu0 %v1014
    %v1050 = vpop.f32.mrb[0].mxu0
    %v1051 = vadd.f32 %v139, %v1050
    %v1052 = vpop.f32.mrb[0].mxu0
    %v1053 = vpop.f32.mrb[0].mxu0
    %v1054 = vpop.f32.mrb[0].mxu0
    %1055 = vdwg.mxu0
    %v1056 = vtanh.pop %v1051
    %v1057 = vpack.c.bf16 %v1056, %v1056
    %v1059 = vsel %vm130, %v1057, 0
    %1061 = vmatprep.subr.bf16.mxu0 0
    %1062 = vmatpush1.bf16.msra.mxu0 %v212
    %1063 = vmatprep.subr.bf16.mxu0 0
    %1064 = vmatpush1.bf16.msra.mxu0 %v213
    %1065 = vmatprep.subr.bf16.mxu0 0
    %1066 = vmatpush1.bf16.msra.mxu0 0
    %1067 = vmatprep.subr.bf16.mxu0 0
    %1068 = vmatpush1.bf16.msra.mxu0 0
    %1069 = vmatprep.subr.bf16.mxu0 0
    %1070 = vmatpush1.bf16.msra.mxu0 0
    %1071 = vmatprep.subr.bf16.mxu0 0
    %1072 = vmatpush1.bf16.msra.mxu0 0
    %1073 = vmatprep.subr.bf16.mxu0 0
    %1074 = vmatpush1.bf16.msra.mxu0 0
    %1075 = vmatprep.subr.bf16.mxu0 0
    %1076 = vmatpush1.bf16.msra.mxu0 0
    %1077 = vmatprep.subr.bf16.mxu0 0
    %1078 = vmatpush1.bf16.msra.mxu0 0
    %1079 = vmatprep.subr.bf16.mxu0 0
    %1080 = vmatpush1.bf16.msra.mxu0 0
    %1081 = vmatprep.subr.bf16.mxu0 0
    %1082 = vmatpush1.bf16.msra.mxu0 0
    %1083 = vmatprep.subr.bf16.mxu0 0
    %1084 = vmatpush1.bf16.msra.mxu0 0
    %1085 = vmatprep.subr.bf16.mxu0 0
    %1086 = vmatpush1.bf16.msra.mxu0 0
    %1087 = vmatprep.subr.bf16.mxu0 0
    %1088 = vmatpush1.bf16.msra.mxu0 0
    %1089 = vmatprep.subr.bf16.mxu0 0
    %1090 = vmatpush1.bf16.msra.mxu0 0
    %1091 = vmatprep.subr.bf16.mxu0 0
    %1092 = vmatpush1.bf16.msra.mxu0 0
    %1093 = vmatprep.mubr.bf16.mxu0 0
    %1094 = vmatmul.mubr.bf16.gmra.mrb[0].mxu0 %v1059
    %v1095 = vpop.f32.mrb[0].mxu0
    %v1096 = vadd.f32 %v202, %v1095
    %v1097 = vpop.f32.mrb[0].mxu0
    %v1098 = vpop.f32.mrb[0].mxu0
    %v1099 = vpop.f32.mrb[0].mxu0
    %1100 = vdwg.mxu0
    %v1101 = vmul.f32 %v1009, %v1096
    %v1102 = vadd.f32 %v916, %v1101
    %v1103 = vpack.c.bf16 %v1102, %v1102
    %v1105 = vsel %vm130, %v1103, 0
    %1107 = vmatprep.subr.bf16.mxu0 0
    %1108 = vmatpush1.bf16.msra.mxu0 %v149
    %1109 = vmatprep.subr.bf16.mxu0 0
    %1110 = vmatpush1.bf16.msra.mxu0 %v150
    %1111 = vmatprep.subr.bf16.mxu0 0
    %1112 = vmatpush1.bf16.msra.mxu0 0
    %1113 = vmatprep.subr.bf16.mxu0 0
    %1114 = vmatpush1.bf16.msra.mxu0 0
    %1115 = vmatprep.subr.bf16.mxu0 0
    %1116 = vmatpush1.bf16.msra.mxu0 0
    %1117 = vmatprep.subr.bf16.mxu0 0
    %1118 = vmatpush1.bf16.msra.mxu0 0
    %1119 = vmatprep.subr.bf16.mxu0 0
    %1120 = vmatpush1.bf16.msra.mxu0 0
    %1121 = vmatprep.subr.bf16.mxu0 0
    %1122 = vmatpush1.bf16.msra.mxu0 0
    %1123 = vmatprep.subr.bf16.mxu0 0
    %1124 = vmatpush1.bf16.msra.mxu0 0
    %1125 = vmatprep.subr.bf16.mxu0 0
    %1126 = vmatpush1.bf16.msra.mxu0 0
    %1127 = vmatprep.subr.bf16.mxu0 0
    %1128 = vmatpush1.bf16.msra.mxu0 0
    %1129 = vmatprep.subr.bf16.mxu0 0
    %1130 = vmatpush1.bf16.msra.mxu0 0
    %1131 = vmatprep.subr.bf16.mxu0 0
    %1132 = vmatpush1.bf16.msra.mxu0 0
    %1133 = vmatprep.subr.bf16.mxu0 0
    %1134 = vmatpush1.bf16.msra.mxu0 0
    %1135 = vmatprep.subr.bf16.mxu0 0
    %1136 = vmatpush1.bf16.msra.mxu0 0
    %1137 = vmatprep.subr.bf16.mxu0 0
    %1138 = vmatpush1.bf16.msra.mxu0 0
    %1139 = vmatprep.mubr.bf16.mxu0 0
    %1140 = vmatmul.mubr.bf16.gmra.mrb[0].mxu0 %v1105
    %v1141 = vpop.f32.mrb[0].mxu0
    %v1142 = vadd.f32 %v139, %v1141
    %v1143 = vpop.f32.mrb[0].mxu0
    %v1144 = vpop.f32.mrb[0].mxu0
    %v1145 = vpop.f32.mrb[0].mxu0
    %1146 = vdwg.mxu0
    %v1147 = vtanh.pop %v1142
    %v1148 = vpack.c.bf16 %v1147, %v1147
    %v1150 = vsel %vm130, %v1148, 0
    %1152 = vmatprep.subr.bf16.mxu0 0
    %1153 = vmatpush1.bf16.msra.mxu0 %v212
    %1154 = vmatprep.subr.bf16.mxu0 0
    %1155 = vmatpush1.bf16.msra.mxu0 %v213
    %1156 = vmatprep.subr.bf16.mxu0 0
    %1157 = vmatpush1.bf16.msra.mxu0 0
    %1158 = vmatprep.subr.bf16.mxu0 0
    %1159 = vmatpush1.bf16.msra.mxu0 0
    %1160 = vmatprep.subr.bf16.mxu0 0
    %1161 = vmatpush1.bf16.msra.mxu0 0
    %1162 = vmatprep.subr.bf16.mxu0 0
    %1163 = vmatpush1.bf16.msra.mxu0 0
    %1164 = vmatprep.subr.bf16.mxu0 0
    %1165 = vmatpush1.bf16.msra.mxu0 0
    %1166 = vmatprep.subr.bf16.mxu0 0
    %1167 = vmatpush1.bf16.msra.mxu0 0
    %1168 = vmatprep.subr.bf16.mxu0 0
    %1169 = vmatpush1.bf16.msra.mxu0 0
    %1170 = vmatprep.subr.bf16.mxu0 0
    %1171 = vmatpush1.bf16.msra.mxu0 0
    %1172 = vmatprep.subr.bf16.mxu0 0
    %1173 = vmatpush1.bf16.msra.mxu0 0
    %1174 = vmatprep.subr.bf16.mxu0 0
    %1175 = vmatpush1.bf16.msra.mxu0 0
    %1176 = vmatprep.subr.bf16.mxu0 0
    %1177 = vmatpush1.bf16.msra.mxu0 0
    %1178 = vmatprep.subr.bf16.mxu0 0
    %1179 = vmatpush1.bf16.msra.mxu0 0
    %1180 = vmatprep.subr.bf16.mxu0 0
    %1181 = vmatpush1.bf16.msra.mxu0 0
    %1182 = vmatprep.subr.bf16.mxu0 0
    %1183 = vmatpush1.bf16.msra.mxu0 0
    %1184 = vmatprep.mubr.bf16.mxu0 0
    %1185 = vmatmul.mubr.bf16.gmra.mrb[0].mxu0 %v1150
    %v1186 = vpop.f32.mrb[0].mxu0
    %v1187 = vadd.f32 %v202, %v1186
    %v1188 = vpop.f32.mrb[0].mxu0
    %v1189 = vpop.f32.mrb[0].mxu0
    %v1190 = vpop.f32.mrb[0].mxu0
    %1191 = vdwg.mxu0
    %v1192 = vstv %s918
    %v1193 = vmul.f32 %v1192, %v1187
    %v1194 = vadd.f32 %v916, %v1193
    %v1195 = vpack.c.bf16 %v1194, %v1194
    %v1197 = vsel %vm130, %v1195, 0
    %1199 = vmatprep.subr.bf16.mxu0 0
    %1200 = vmatpush1.bf16.msra.mxu0 %v149
    %1201 = vmatprep.subr.bf16.mxu0 0
    %1202 = vmatpush1.bf16.msra.mxu0 %v150
    %1203 = vmatprep.subr.bf16.mxu0 0
    %1204 = vmatpush1.bf16.msra.mxu0 0
    %1205 = vmatprep.subr.bf16.mxu0 0
    %1206 = vmatpush1.bf16.msra.mxu0 0
    %1207 = vmatprep.subr.bf16.mxu0 0
    %1208 = vmatpush1.bf16.msra.mxu0 0
    %1209 = vmatprep.subr.bf16.mxu0 0
    %1210 = vmatpush1.bf16.msra.mxu0 0
    %1211 = vmatprep.subr.bf16.mxu0 0
    %1212 = vmatpush1.bf16.msra.mxu0 0
    %1213 = vmatprep.subr.bf16.mxu0 0
    %1214 = vmatpush1.bf16.msra.mxu0 0
    %1215 = vmatprep.subr.bf16.mxu0 0
    %1216 = vmatpush1.bf16.msra.mxu0 0
    %1217 = vmatprep.subr.bf16.mxu0 0
    %1218 = vmatpush1.bf16.msra.mxu0 0
    %1219 = vmatprep.subr.bf16.mxu0 0
    %1220 = vmatpush1.bf16.msra.mxu0 0
    %1221 = vmatprep.subr.bf16.mxu0 0
    %1222 = vmatpush1.bf16.msra.mxu0 0
    %1223 = vmatprep.subr.bf16.mxu0 0
    %1224 = vmatpush1.bf16.msra.mxu0 0
    %1225 = vmatprep.subr.bf16.mxu0 0
    %1226 = vmatpush1.bf16.msra.mxu0 0
    %1227 = vmatprep.subr.bf16.mxu0 0
    %1228 = vmatpush1.bf16.msra.mxu0 0
    %1229 = vmatprep.subr.bf16.mxu0 0
    %1230 = vmatpush1.bf16.msra.mxu0 0
    %1231 = vmatprep.mubr.bf16.mxu0 0
    %1232 = vmatmul.mubr.bf16.gmra.mrb[0].mxu0 %v1197
    %v1233 = vpop.f32.mrb[0].mxu0
    %v1234 = vadd.f32 %v139, %v1233
    %v1235 = vpop.f32.mrb[0].mxu0
    %v1236 = vpop.f32.mrb[0].mxu0
    %v1237 = vpop.f32.mrb[0].mxu0
    %1238 = vdwg.mxu0
    %v1239 = vtanh.pop %v1234
    %v1240 = vpack.c.bf16 %v1239, %v1239
    %v1242 = vsel %vm130, %v1240, 0
    %1244 = vmatprep.subr.bf16.mxu0 0
    %1245 = vmatpush1.bf16.msra.mxu0 %v212
    %1246 = vmatprep.subr.bf16.mxu0 0
    %1247 = vmatpush1.bf16.msra.mxu0 %v213
    %1248 = vmatprep.subr.bf16.mxu0 0
    %1249 = vmatpush1.bf16.msra.mxu0 0
    %1250 = vmatprep.subr.bf16.mxu0 0
    %1251 = vmatpush1.bf16.msra.mxu0 0
    %1252 = vmatprep.subr.bf16.mxu0 0
    %1253 = vmatpush1.bf16.msra.mxu0 0
    %1254 = vmatprep.subr.bf16.mxu0 0
    %1255 = vmatpush1.bf16.msra.mxu0 0
    %1256 = vmatprep.subr.bf16.mxu0 0
    %1257 = vmatpush1.bf16.msra.mxu0 0
    %1258 = vmatprep.subr.bf16.mxu0 0
    %1259 = vmatpush1.bf16.msra.mxu0 0
    %1260 = vmatprep.subr.bf16.mxu0 0
    %1261 = vmatpush1.bf16.msra.mxu0 0
    %1262 = vmatprep.subr.bf16.mxu0 0
    %1263 = vmatpush1.bf16.msra.mxu0 0
    %1264 = vmatprep.subr.bf16.mxu0 0
    %1265 = vmatpush1.bf16.msra.mxu0 0
    %1266 = vmatprep.subr.bf16.mxu0 0
    %1267 = vmatpush1.bf16.msra.mxu0 0
    %1268 = vmatprep.subr.bf16.mxu0 0
    %1269 = vmatpush1.bf16.msra.mxu0 0
    %1270 = vmatprep.subr.bf16.mxu0 0
    %1271 = vmatpush1.bf16.msra.mxu0 0
    %1272 = vmatprep.subr.bf16.mxu0 0
    %1273 = vmatpush1.bf16.msra.mxu0 0
    %1274 = vmatprep.subr.bf16.mxu0 0
    %1275 = vmatpush1.bf16.msra.mxu0 0
    %1276 = vmatprep.mubr.bf16.mxu0 0
    %1277 = vmatmul.mubr.bf16.gmra.mrb[0].mxu0 %v1242
    %v1278 = vpop.f32.mrb[0].mxu0
    %v1279 = vadd.f32 %v202, %v1278
    %v1280 = vpop.f32.mrb[0].mxu0
    %v1281 = vpop.f32.mrb[0].mxu0
    %v1282 = vpop.f32.mrb[0].mxu0
    %1283 = vdwg.mxu0
    %s1284 = smul.f32 %s918, 0.16666667
    %v1285 = vadd.f32 %v1096, %v1187
    %v1286 = vmul.f32 %v1285, 2.0
    %v1287 = vadd.f32 %v1004, %v1286
    %v1288 = vadd.f32 %v1287, %v1279
    %v1289 = vstv %s1284
    %v1290 = vmul.f32 %v1289, %v1288
    %v1291 = vadd.f32 %v916, %v1290
    %1292 = vst.msk [vmem:[#allocation2 + $0x18] sm:$0xff] %vm130, %v1291
    %s1293 = sld [smem:[#allocation3 + $0x3]]
    %s1294 = smul.f32 %s1293, 0.5
    %v1295 = vpack.c.bf16 %v1291, %v1291
    %v1297 = vsel %vm130, %v1295, 0
    %1299 = vmatprep.subr.bf16.mxu0 0
    %1300 = vmatpush1.bf16.msra.mxu0 %v149
    %1301 = vmatprep.subr.bf16.mxu0 0
    %1302 = vmatpush1.bf16.msra.mxu0 %v150
    %1303 = vmatprep.subr.bf16.mxu0 0
    %1304 = vmatpush1.bf16.msra.mxu0 0
    %1305 = vmatprep.subr.bf16.mxu0 0
    %1306 = vmatpush1.bf16.msra.mxu0 0
    %1307 = vmatprep.subr.bf16.mxu0 0
    %1308 = vmatpush1.bf16.msra.mxu0 0
    %1309 = vmatprep.subr.bf16.mxu0 0
    %1310 = vmatpush1.bf16.msra.mxu0 0
    %1311 = vmatprep.subr.bf16.mxu0 0
    %1312 = vmatpush1.bf16.msra.mxu0 0
    %1313 = vmatprep.subr.bf16.mxu0 0
    %1314 = vmatpush1.bf16.msra.mxu0 0
    %1315 = vmatprep.subr.bf16.mxu0 0
    %1316 = vmatpush1.bf16.msra.mxu0 0
    %1317 = vmatprep.subr.bf16.mxu0 0
    %1318 = vmatpush1.bf16.msra.mxu0 0
    %1319 = vmatprep.subr.bf16.mxu0 0
    %1320 = vmatpush1.bf16.msra.mxu0 0
    %1321 = vmatprep.subr.bf16.mxu0 0
    %1322 = vmatpush1.bf16.msra.mxu0 0
    %1323 = vmatprep.subr.bf16.mxu0 0
    %1324 = vmatpush1.bf16.msra.mxu0 0
    %1325 = vmatprep.subr.bf16.mxu0 0
    %1326 = vmatpush1.bf16.msra.mxu0 0
    %1327 = vmatprep.subr.bf16.mxu0 0
    %1328 = vmatpush1.bf16.msra.mxu0 0
    %1329 = vmatprep.subr.bf16.mxu0 0
    %1330 = vmatpush1.bf16.msra.mxu0 0
    %1331 = vmatprep.mubr.bf16.mxu0 0
    %1332 = vmatmul.mubr.bf16.gmra.mrb[0].mxu0 %v1297
    %v1333 = vpop.f32.mrb[0].mxu0
    %v1334 = vadd.f32 %v139, %v1333
    %v1335 = vpop.f32.mrb[0].mxu0
    %v1336 = vpop.f32.mrb[0].mxu0
    %v1337 = vpop.f32.mrb[0].mxu0
    %1338 = vdwg.mxu0
    %v1339 = vtanh.pop %v1334
    %v1340 = vpack.c.bf16 %v1339, %v1339
    %v1342 = vsel %vm130, %v1340, 0
    %1344 = vmatprep.subr.bf16.mxu0 0
    %1345 = vmatpush1.bf16.msra.mxu0 %v212
    %1346 = vmatprep.subr.bf16.mxu0 0
    %1347 = vmatpush1.bf16.msra.mxu0 %v213
    %1348 = vmatprep.subr.bf16.mxu0 0
    %1349 = vmatpush1.bf16.msra.mxu0 0
    %1350 = vmatprep.subr.bf16.mxu0 0
    %1351 = vmatpush1.bf16.msra.mxu0 0
    %1352 = vmatprep.subr.bf16.mxu0 0
    %1353 = vmatpush1.bf16.msra.mxu0 0
    %1354 = vmatprep.subr.bf16.mxu0 0
    %1355 = vmatpush1.bf16.msra.mxu0 0
    %1356 = vmatprep.subr.bf16.mxu0 0
    %1357 = vmatpush1.bf16.msra.mxu0 0
    %1358 = vmatprep.subr.bf16.mxu0 0
    %1359 = vmatpush1.bf16.msra.mxu0 0
    %1360 = vmatprep.subr.bf16.mxu0 0
    %1361 = vmatpush1.bf16.msra.mxu0 0
    %1362 = vmatprep.subr.bf16.mxu0 0
    %1363 = vmatpush1.bf16.msra.mxu0 0
    %1364 = vmatprep.subr.bf16.mxu0 0
    %1365 = vmatpush1.bf16.msra.mxu0 0
    %1366 = vmatprep.subr.bf16.mxu0 0
    %1367 = vmatpush1.bf16.msra.mxu0 0
    %1368 = vmatprep.subr.bf16.mxu0 0
    %1369 = vmatpush1.bf16.msra.mxu0 0
    %1370 = vmatprep.subr.bf16.mxu0 0
    %1371 = vmatpush1.bf16.msra.mxu0 0
    %1372 = vmatprep.subr.bf16.mxu0 0
    %1373 = vmatpush1.bf16.msra.mxu0 0
    %1374 = vmatprep.subr.bf16.mxu0 0
    %1375 = vmatpush1.bf16.msra.mxu0 0
    %1376 = vmatprep.mubr.bf16.mxu0 0
    %1377 = vmatmul.mubr.bf16.gmra.mrb[0].mxu0 %v1342
    %v1378 = vpop.f32.mrb[0].mxu0
    %v1379 = vadd.f32 %v202, %v1378
    %v1380 = vpop.f32.mrb[0].mxu0
    %v1381 = vpop.f32.mrb[0].mxu0
    %v1382 = vpop.f32.mrb[0].mxu0
    %1383 = vdwg.mxu0
    %v1384 = vstv %s1294
    %v1385 = vmul.f32 %v1384, %v1379
    %v1386 = vadd.f32 %v1291, %v1385
    %v1387 = vpack.c.bf16 %v1386, %v1386
    %v1389 = vsel %vm130, %v1387, 0
    %1391 = vmatprep.subr.bf16.mxu0 0
    %1392 = vmatpush1.bf16.msra.mxu0 %v149
    %1393 = vmatprep.subr.bf16.mxu0 0
    %1394 = vmatpush1.bf16.msra.mxu0 %v150
    %1395 = vmatprep.subr.bf16.mxu0 0
    %1396 = vmatpush1.bf16.msra.mxu0 0
    %1397 = vmatprep.subr.bf16.mxu0 0
    %1398 = vmatpush1.bf16.msra.mxu0 0
    %1399 = vmatprep.subr.bf16.mxu0 0
    %1400 = vmatpush1.bf16.msra.mxu0 0
    %1401 = vmatprep.subr.bf16.mxu0 0
    %1402 = vmatpush1.bf16.msra.mxu0 0
    %1403 = vmatprep.subr.bf16.mxu0 0
    %1404 = vmatpush1.bf16.msra.mxu0 0
    %1405 = vmatprep.subr.bf16.mxu0 0
    %1406 = vmatpush1.bf16.msra.mxu0 0
    %1407 = vmatprep.subr.bf16.mxu0 0
    %1408 = vmatpush1.bf16.msra.mxu0 0
    %1409 = vmatprep.subr.bf16.mxu0 0
    %1410 = vmatpush1.bf16.msra.mxu0 0
    %1411 = vmatprep.subr.bf16.mxu0 0
    %1412 = vmatpush1.bf16.msra.mxu0 0
    %1413 = vmatprep.subr.bf16.mxu0 0
    %1414 = vmatpush1.bf16.msra.mxu0 0
    %1415 = vmatprep.subr.bf16.mxu0 0
    %1416 = vmatpush1.bf16.msra.mxu0 0
    %1417 = vmatprep.subr.bf16.mxu0 0
    %1418 = vmatpush1.bf16.msra.mxu0 0
    %1419 = vmatprep.subr.bf16.mxu0 0
    %1420 = vmatpush1.bf16.msra.mxu0 0
    %1421 = vmatprep.subr.bf16.mxu0 0
    %1422 = vmatpush1.bf16.msra.mxu0 0
    %1423 = vmatprep.mubr.bf16.mxu0 0
    %1424 = vmatmul.mubr.bf16.gmra.mrb[0].mxu0 %v1389
    %v1425 = vpop.f32.mrb[0].mxu0
    %v1426 = vadd.f32 %v139, %v1425
    %v1427 = vpop.f32.mrb[0].mxu0
    %v1428 = vpop.f32.mrb[0].mxu0
    %v1429 = vpop.f32.mrb[0].mxu0
    %1430 = vdwg.mxu0
    %v1431 = vtanh.pop %v1426
    %v1432 = vpack.c.bf16 %v1431, %v1431
    %v1434 = vsel %vm130, %v1432, 0
    %1436 = vmatprep.subr.bf16.mxu0 0
    %1437 = vmatpush1.bf16.msra.mxu0 %v212
    %1438 = vmatprep.subr.bf16.mxu0 0
    %1439 = vmatpush1.bf16.msra.mxu0 %v213
    %1440 = vmatprep.subr.bf16.mxu0 0
    %1441 = vmatpush1.bf16.msra.mxu0 0
    %1442 = vmatprep.subr.bf16.mxu0 0
    %1443 = vmatpush1.bf16.msra.mxu0 0
    %1444 = vmatprep.subr.bf16.mxu0 0
    %1445 = vmatpush1.bf16.msra.mxu0 0
    %1446 = vmatprep.subr.bf16.mxu0 0
    %1447 = vmatpush1.bf16.msra.mxu0 0
    %1448 = vmatprep.subr.bf16.mxu0 0
    %1449 = vmatpush1.bf16.msra.mxu0 0
    %1450 = vmatprep.subr.bf16.mxu0 0
    %1451 = vmatpush1.bf16.msra.mxu0 0
    %1452 = vmatprep.subr.bf16.mxu0 0
    %1453 = vmatpush1.bf16.msra.mxu0 0
    %1454 = vmatprep.subr.bf16.mxu0 0
    %1455 = vmatpush1.bf16.msra.mxu0 0
    %1456 = vmatprep.subr.bf16.mxu0 0
    %1457 = vmatpush1.bf16.msra.mxu0 0
    %1458 = vmatprep.subr.bf16.mxu0 0
    %1459 = vmatpush1.bf16.msra.mxu0 0
    %1460 = vmatprep.subr.bf16.mxu0 0
    %1461 = vmatpush1.bf16.msra.mxu0 0
    %1462 = vmatprep.subr.bf16.mxu0 0
    %1463 = vmatpush1.bf16.msra.mxu0 0
    %1464 = vmatprep.subr.bf16.mxu0 0
    %1465 = vmatpush1.bf16.msra.mxu0 0
    %1466 = vmatprep.subr.bf16.mxu0 0
    %1467 = vmatpush1.bf16.msra.mxu0 0
    %1468 = vmatprep.mubr.bf16.mxu0 0
    %1469 = vmatmul.mubr.bf16.gmra.mrb[0].mxu0 %v1434
    %v1470 = vpop.f32.mrb[0].mxu0
    %v1471 = vadd.f32 %v202, %v1470
    %v1472 = vpop.f32.mrb[0].mxu0
    %v1473 = vpop.f32.mrb[0].mxu0
    %v1474 = vpop.f32.mrb[0].mxu0
    %1475 = vdwg.mxu0
    %v1476 = vmul.f32 %v1384, %v1471
    %v1477 = vadd.f32 %v1291, %v1476
    %v1478 = vpack.c.bf16 %v1477, %v1477
    %v1480 = vsel %vm130, %v1478, 0
    %1482 = vmatprep.subr.bf16.mxu0 0
    %1483 = vmatpush1.bf16.msra.mxu0 %v149
    %1484 = vmatprep.subr.bf16.mxu0 0
    %1485 = vmatpush1.bf16.msra.mxu0 %v150
    %1486 = vmatprep.subr.bf16.mxu0 0
    %1487 = vmatpush1.bf16.msra.mxu0 0
    %1488 = vmatprep.subr.bf16.mxu0 0
    %1489 = vmatpush1.bf16.msra.mxu0 0
    %1490 = vmatprep.subr.bf16.mxu0 0
    %1491 = vmatpush1.bf16.msra.mxu0 0
    %1492 = vmatprep.subr.bf16.mxu0 0
    %1493 = vmatpush1.bf16.msra.mxu0 0
    %1494 = vmatprep.subr.bf16.mxu0 0
    %1495 = vmatpush1.bf16.msra.mxu0 0
    %1496 = vmatprep.subr.bf16.mxu0 0
    %1497 = vmatpush1.bf16.msra.mxu0 0
    %1498 = vmatprep.subr.bf16.mxu0 0
    %1499 = vmatpush1.bf16.msra.mxu0 0
    %1500 = vmatprep.subr.bf16.mxu0 0
    %1501 = vmatpush1.bf16.msra.mxu0 0
    %1502 = vmatprep.subr.bf16.mxu0 0
    %1503 = vmatpush1.bf16.msra.mxu0 0
    %1504 = vmatprep.subr.bf16.mxu0 0
    %1505 = vmatpush1.bf16.msra.mxu0 0
    %1506 = vmatprep.subr.bf16.mxu0 0
    %1507 = vmatpush1.bf16.msra.mxu0 0
    %1508 = vmatprep.subr.bf16.mxu0 0
    %1509 = vmatpush1.bf16.msra.mxu0 0
    %1510 = vmatprep.subr.bf16.mxu0 0
    %1511 = vmatpush1.bf16.msra.mxu0 0
    %1512 = vmatprep.subr.bf16.mxu0 0
    %1513 = vmatpush1.bf16.msra.mxu0 0
    %1514 = vmatprep.mubr.bf16.mxu0 0
    %1515 = vmatmul.mubr.bf16.gmra.mrb[0].mxu0 %v1480
    %v1516 = vpop.f32.mrb[0].mxu0
    %v1517 = vadd.f32 %v139, %v1516
    %v1518 = vpop.f32.mrb[0].mxu0
    %v1519 = vpop.f32.mrb[0].mxu0
    %v1520 = vpop.f32.mrb[0].mxu0
    %1521 = vdwg.mxu0
    %v1522 = vtanh.pop %v1517
    %v1523 = vpack.c.bf16 %v1522, %v1522
    %v1525 = vsel %vm130, %v1523, 0
    %1527 = vmatprep.subr.bf16.mxu0 0
    %1528 = vmatpush1.bf16.msra.mxu0 %v212
    %1529 = vmatprep.subr.bf16.mxu0 0
    %1530 = vmatpush1.bf16.msra.mxu0 %v213
    %1531 = vmatprep.subr.bf16.mxu0 0
    %1532 = vmatpush1.bf16.msra.mxu0 0
    %1533 = vmatprep.subr.bf16.mxu0 0
    %1534 = vmatpush1.bf16.msra.mxu0 0
    %1535 = vmatprep.subr.bf16.mxu0 0
    %1536 = vmatpush1.bf16.msra.mxu0 0
    %1537 = vmatprep.subr.bf16.mxu0 0
    %1538 = vmatpush1.bf16.msra.mxu0 0
    %1539 = vmatprep.subr.bf16.mxu0 0
    %1540 = vmatpush1.bf16.msra.mxu0 0
    %1541 = vmatprep.subr.bf16.mxu0 0
    %1542 = vmatpush1.bf16.msra.mxu0 0
    %1543 = vmatprep.subr.bf16.mxu0 0
    %1544 = vmatpush1.bf16.msra.mxu0 0
    %1545 = vmatprep.subr.bf16.mxu0 0
    %1546 = vmatpush1.bf16.msra.mxu0 0
    %1547 = vmatprep.subr.bf16.mxu0 0
    %1548 = vmatpush1.bf16.msra.mxu0 0
    %1549 = vmatprep.subr.bf16.mxu0 0
    %1550 = vmatpush1.bf16.msra.mxu0 0
    %1551 = vmatprep.subr.bf16.mxu0 0
    %1552 = vmatpush1.bf16.msra.mxu0 0
    %1553 = vmatprep.subr.bf16.mxu0 0
    %1554 = vmatpush1.bf16.msra.mxu0 0
    %1555 = vmatprep.subr.bf16.mxu0 0
    %1556 = vmatpush1.bf16.msra.mxu0 0
    %1557 = vmatprep.subr.bf16.mxu0 0
    %1558 = vmatpush1.bf16.msra.mxu0 0
    %1559 = vmatprep.mubr.bf16.mxu0 0
    %1560 = vmatmul.mubr.bf16.gmra.mrb[0].mxu0 %v1525
    %v1561 = vpop.f32.mrb[0].mxu0
    %v1562 = vadd.f32 %v202, %v1561
    %v1563 = vpop.f32.mrb[0].mxu0
    %v1564 = vpop.f32.mrb[0].mxu0
    %v1565 = vpop.f32.mrb[0].mxu0
    %1566 = vdwg.mxu0
    %v1567 = vstv %s1293
    %v1568 = vmul.f32 %v1567, %v1562
    %v1569 = vadd.f32 %v1291, %v1568
    %v1570 = vpack.c.bf16 %v1569, %v1569
    %v1572 = vsel %vm130, %v1570, 0
    %1574 = vmatprep.subr.bf16.mxu0 0
    %1575 = vmatpush1.bf16.msra.mxu0 %v149
    %1576 = vmatprep.subr.bf16.mxu0 0
    %1577 = vmatpush1.bf16.msra.mxu0 %v150
    %1578 = vmatprep.subr.bf16.mxu0 0
    %1579 = vmatpush1.bf16.msra.mxu0 0
    %1580 = vmatprep.subr.bf16.mxu0 0
    %1581 = vmatpush1.bf16.msra.mxu0 0
    %1582 = vmatprep.subr.bf16.mxu0 0
    %1583 = vmatpush1.bf16.msra.mxu0 0
    %1584 = vmatprep.subr.bf16.mxu0 0
    %1585 = vmatpush1.bf16.msra.mxu0 0
    %1586 = vmatprep.subr.bf16.mxu0 0
    %1587 = vmatpush1.bf16.msra.mxu0 0
    %1588 = vmatprep.subr.bf16.mxu0 0
    %1589 = vmatpush1.bf16.msra.mxu0 0
    %1590 = vmatprep.subr.bf16.mxu0 0
    %1591 = vmatpush1.bf16.msra.mxu0 0
    %1592 = vmatprep.subr.bf16.mxu0 0
    %1593 = vmatpush1.bf16.msra.mxu0 0
    %1594 = vmatprep.subr.bf16.mxu0 0
    %1595 = vmatpush1.bf16.msra.mxu0 0
    %1596 = vmatprep.subr.bf16.mxu0 0
    %1597 = vmatpush1.bf16.msra.mxu0 0
    %1598 = vmatprep.subr.bf16.mxu0 0
    %1599 = vmatpush1.bf16.msra.mxu0 0
    %1600 = vmatprep.subr.bf16.mxu0 0
    %1601 = vmatpush1.bf16.msra.mxu0 0
    %1602 = vmatprep.subr.bf16.mxu0 0
    %1603 = vmatpush1.bf16.msra.mxu0 0
    %1604 = vmatprep.subr.bf16.mxu0 0
    %1605 = vmatpush1.bf16.msra.mxu0 0
    %1606 = vmatprep.mubr.bf16.mxu0 0
    %1607 = vmatmul.mubr.bf16.gmra.mrb[0].mxu0 %v1572
    %v1608 = vpop.f32.mrb[0].mxu0
    %v1609 = vadd.f32 %v139, %v1608
    %v1610 = vpop.f32.mrb[0].mxu0
    %v1611 = vpop.f32.mrb[0].mxu0
    %v1612 = vpop.f32.mrb[0].mxu0
    %1613 = vdwg.mxu0
    %v1614 = vtanh.pop %v1609
    %v1615 = vpack.c.bf16 %v1614, %v1614
    %v1617 = vsel %vm130, %v1615, 0
    %1619 = vmatprep.subr.bf16.mxu0 0
    %1620 = vmatpush1.bf16.msra.mxu0 %v212
    %1621 = vmatprep.subr.bf16.mxu0 0
    %1622 = vmatpush1.bf16.msra.mxu0 %v213
    %1623 = vmatprep.subr.bf16.mxu0 0
    %1624 = vmatpush1.bf16.msra.mxu0 0
    %1625 = vmatprep.subr.bf16.mxu0 0
    %1626 = vmatpush1.bf16.msra.mxu0 0
    %1627 = vmatprep.subr.bf16.mxu0 0
    %1628 = vmatpush1.bf16.msra.mxu0 0
    %1629 = vmatprep.subr.bf16.mxu0 0
    %1630 = vmatpush1.bf16.msra.mxu0 0
    %1631 = vmatprep.subr.bf16.mxu0 0
    %1632 = vmatpush1.bf16.msra.mxu0 0
    %1633 = vmatprep.subr.bf16.mxu0 0
    %1634 = vmatpush1.bf16.msra.mxu0 0
    %1635 = vmatprep.subr.bf16.mxu0 0
    %1636 = vmatpush1.bf16.msra.mxu0 0
    %1637 = vmatprep.subr.bf16.mxu0 0
    %1638 = vmatpush1.bf16.msra.mxu0 0
    %1639 = vmatprep.subr.bf16.mxu0 0
    %1640 = vmatpush1.bf16.msra.mxu0 0
    %1641 = vmatprep.subr.bf16.mxu0 0
    %1642 = vmatpush1.bf16.msra.mxu0 0
    %1643 = vmatprep.subr.bf16.mxu0 0
    %1644 = vmatpush1.bf16.msra.mxu0 0
    %1645 = vmatprep.subr.bf16.mxu0 0
    %1646 = vmatpush1.bf16.msra.mxu0 0
    %1647 = vmatprep.subr.bf16.mxu0 0
    %1648 = vmatpush1.bf16.msra.mxu0 0
    %1649 = vmatprep.subr.bf16.mxu0 0
    %1650 = vmatpush1.bf16.msra.mxu0 0
    %1651 = vmatprep.mubr.bf16.mxu0 0
    %1652 = vmatmul.mubr.bf16.gmra.mrb[0].mxu0 %v1617
    %v1653 = vpop.f32.mrb[0].mxu0
    %v1654 = vadd.f32 %v202, %v1653
    %v1655 = vpop.f32.mrb[0].mxu0
    %v1656 = vpop.f32.mrb[0].mxu0
    %v1657 = vpop.f32.mrb[0].mxu0
    %1658 = vdwg.mxu0
    %s1659 = smul.f32 %s1293, 0.16666667
    %v1660 = vadd.f32 %v1471, %v1562
    %v1661 = vmul.f32 %v1660, 2.0
    %v1662 = vadd.f32 %v1379, %v1661
    %v1663 = vadd.f32 %v1662, %v1654
    %v1664 = vstv %s1659
    %v1665 = vmul.f32 %v1664, %v1663
    %v1666 = vadd.f32 %v1291, %v1665
    %1667 = vst.msk [vmem:[#allocation2 + $0x20] sm:$0xff] %vm130, %v1666
    %s1668 = sld [smem:[#allocation3 + $0x4]]
    %s1669 = smul.f32 %s1668, 0.5
    %v1670 = vpack.c.bf16 %v1666, %v1666
    %v1672 = vsel %vm130, %v1670, 0
    %1674 = vmatprep.subr.bf16.mxu0 0
    %1675 = vmatpush1.bf16.msra.mxu0 %v149
    %1676 = vmatprep.subr.bf16.mxu0 0
    %1677 = vmatpush1.bf16.msra.mxu0 %v150
    %1678 = vmatprep.subr.bf16.mxu0 0
    %1679 = vmatpush1.bf16.msra.mxu0 0
    %1680 = vmatprep.subr.bf16.mxu0 0
    %1681 = vmatpush1.bf16.msra.mxu0 0
    %1682 = vmatprep.subr.bf16.mxu0 0
    %1683 = vmatpush1.bf16.msra.mxu0 0
    %1684 = vmatprep.subr.bf16.mxu0 0
    %1685 = vmatpush1.bf16.msra.mxu0 0
    %1686 = vmatprep.subr.bf16.mxu0 0
    %1687 = vmatpush1.bf16.msra.mxu0 0
    %1688 = vmatprep.subr.bf16.mxu0 0
    %1689 = vmatpush1.bf16.msra.mxu0 0
    %1690 = vmatprep.subr.bf16.mxu0 0
    %1691 = vmatpush1.bf16.msra.mxu0 0
    %1692 = vmatprep.subr.bf16.mxu0 0
    %1693 = vmatpush1.bf16.msra.mxu0 0
    %1694 = vmatprep.subr.bf16.mxu0 0
    %1695 = vmatpush1.bf16.msra.mxu0 0
    %1696 = vmatprep.subr.bf16.mxu0 0
    %1697 = vmatpush1.bf16.msra.mxu0 0
    %1698 = vmatprep.subr.bf16.mxu0 0
    %1699 = vmatpush1.bf16.msra.mxu0 0
    %1700 = vmatprep.subr.bf16.mxu0 0
    %1701 = vmatpush1.bf16.msra.mxu0 0
    %1702 = vmatprep.subr.bf16.mxu0 0
    %1703 = vmatpush1.bf16.msra.mxu0 0
    %1704 = vmatprep.subr.bf16.mxu0 0
    %1705 = vmatpush1.bf16.msra.mxu0 0
    %1706 = vmatprep.mubr.bf16.mxu0 0
    %1707 = vmatmul.mubr.bf16.gmra.mrb[0].mxu0 %v1672
    %v1708 = vpop.f32.mrb[0].mxu0
    %v1709 = vadd.f32 %v139, %v1708
    %v1710 = vpop.f32.mrb[0].mxu0
    %v1711 = vpop.f32.mrb[0].mxu0
    %v1712 = vpop.f32.mrb[0].mxu0
    %1713 = vdwg.mxu0
    %v1714 = vtanh.pop %v1709
    %v1715 = vpack.c.bf16 %v1714, %v1714
    %v1717 = vsel %vm130, %v1715, 0
    %1719 = vmatprep.subr.bf16.mxu0 0
    %1720 = vmatpush1.bf16.msra.mxu0 %v212
    %1721 = vmatprep.subr.bf16.mxu0 0
    %1722 = vmatpush1.bf16.msra.mxu0 %v213
    %1723 = vmatprep.subr.bf16.mxu0 0
    %1724 = vmatpush1.bf16.msra.mxu0 0
    %1725 = vmatprep.subr.bf16.mxu0 0
    %1726 = vmatpush1.bf16.msra.mxu0 0
    %1727 = vmatprep.subr.bf16.mxu0 0
    %1728 = vmatpush1.bf16.msra.mxu0 0
    %1729 = vmatprep.subr.bf16.mxu0 0
    %1730 = vmatpush1.bf16.msra.mxu0 0
    %1731 = vmatprep.subr.bf16.mxu0 0
    %1732 = vmatpush1.bf16.msra.mxu0 0
    %1733 = vmatprep.subr.bf16.mxu0 0
    %1734 = vmatpush1.bf16.msra.mxu0 0
    %1735 = vmatprep.subr.bf16.mxu0 0
    %1736 = vmatpush1.bf16.msra.mxu0 0
    %1737 = vmatprep.subr.bf16.mxu0 0
    %1738 = vmatpush1.bf16.msra.mxu0 0
    %1739 = vmatprep.subr.bf16.mxu0 0
    %1740 = vmatpush1.bf16.msra.mxu0 0
    %1741 = vmatprep.subr.bf16.mxu0 0
    %1742 = vmatpush1.bf16.msra.mxu0 0
    %1743 = vmatprep.subr.bf16.mxu0 0
    %1744 = vmatpush1.bf16.msra.mxu0 0
    %1745 = vmatprep.subr.bf16.mxu0 0
    %1746 = vmatpush1.bf16.msra.mxu0 0
    %1747 = vmatprep.subr.bf16.mxu0 0
    %1748 = vmatpush1.bf16.msra.mxu0 0
    %1749 = vmatprep.subr.bf16.mxu0 0
    %1750 = vmatpush1.bf16.msra.mxu0 0
    %1751 = vmatprep.mubr.bf16.mxu0 0
    %1752 = vmatmul.mubr.bf16.gmra.mrb[0].mxu0 %v1717
    %v1753 = vpop.f32.mrb[0].mxu0
    %v1754 = vadd.f32 %v202, %v1753
    %v1755 = vpop.f32.mrb[0].mxu0
    %v1756 = vpop.f32.mrb[0].mxu0
    %v1757 = vpop.f32.mrb[0].mxu0
    %1758 = vdwg.mxu0
    %v1759 = vstv %s1669
    %v1760 = vmul.f32 %v1759, %v1754
    %v1761 = vadd.f32 %v1666, %v1760
    %v1762 = vpack.c.bf16 %v1761, %v1761
    %v1764 = vsel %vm130, %v1762, 0
    %1766 = vmatprep.subr.bf16.mxu0 0
    %1767 = vmatpush1.bf16.msra.mxu0 %v149
    %1768 = vmatprep.subr.bf16.mxu0 0
    %1769 = vmatpush1.bf16.msra.mxu0 %v150
    %1770 = vmatprep.subr.bf16.mxu0 0
    %1771 = vmatpush1.bf16.msra.mxu0 0
    %1772 = vmatprep.subr.bf16.mxu0 0
    %1773 = vmatpush1.bf16.msra.mxu0 0
    %1774 = vmatprep.subr.bf16.mxu0 0
    %1775 = vmatpush1.bf16.msra.mxu0 0
    %1776 = vmatprep.subr.bf16.mxu0 0
    %1777 = vmatpush1.bf16.msra.mxu0 0
    %1778 = vmatprep.subr.bf16.mxu0 0
    %1779 = vmatpush1.bf16.msra.mxu0 0
    %1780 = vmatprep.subr.bf16.mxu0 0
    %1781 = vmatpush1.bf16.msra.mxu0 0
    %1782 = vmatprep.subr.bf16.mxu0 0
    %1783 = vmatpush1.bf16.msra.mxu0 0
    %1784 = vmatprep.subr.bf16.mxu0 0
    %1785 = vmatpush1.bf16.msra.mxu0 0
    %1786 = vmatprep.subr.bf16.mxu0 0
    %1787 = vmatpush1.bf16.msra.mxu0 0
    %1788 = vmatprep.subr.bf16.mxu0 0
    %1789 = vmatpush1.bf16.msra.mxu0 0
    %1790 = vmatprep.subr.bf16.mxu0 0
    %1791 = vmatpush1.bf16.msra.mxu0 0
    %1792 = vmatprep.subr.bf16.mxu0 0
    %1793 = vmatpush1.bf16.msra.mxu0 0
    %1794 = vmatprep.subr.bf16.mxu0 0
    %1795 = vmatpush1.bf16.msra.mxu0 0
    %1796 = vmatprep.subr.bf16.mxu0 0
    %1797 = vmatpush1.bf16.msra.mxu0 0
    %1798 = vmatprep.mubr.bf16.mxu0 0
    %1799 = vmatmul.mubr.bf16.gmra.mrb[0].mxu0 %v1764
    %v1800 = vpop.f32.mrb[0].mxu0
    %v1801 = vadd.f32 %v139, %v1800
    %v1802 = vpop.f32.mrb[0].mxu0
    %v1803 = vpop.f32.mrb[0].mxu0
    %v1804 = vpop.f32.mrb[0].mxu0
    %1805 = vdwg.mxu0
    %v1806 = vtanh.pop %v1801
    %v1807 = vpack.c.bf16 %v1806, %v1806
    %v1809 = vsel %vm130, %v1807, 0
    %1811 = vmatprep.subr.bf16.mxu0 0
    %1812 = vmatpush1.bf16.msra.mxu0 %v212
    %1813 = vmatprep.subr.bf16.mxu0 0
    %1814 = vmatpush1.bf16.msra.mxu0 %v213
    %1815 = vmatprep.subr.bf16.mxu0 0
    %1816 = vmatpush1.bf16.msra.mxu0 0
    %1817 = vmatprep.subr.bf16.mxu0 0
    %1818 = vmatpush1.bf16.msra.mxu0 0
    %1819 = vmatprep.subr.bf16.mxu0 0
    %1820 = vmatpush1.bf16.msra.mxu0 0
    %1821 = vmatprep.subr.bf16.mxu0 0
    %1822 = vmatpush1.bf16.msra.mxu0 0
    %1823 = vmatprep.subr.bf16.mxu0 0
    %1824 = vmatpush1.bf16.msra.mxu0 0
    %1825 = vmatprep.subr.bf16.mxu0 0
    %1826 = vmatpush1.bf16.msra.mxu0 0
    %1827 = vmatprep.subr.bf16.mxu0 0
    %1828 = vmatpush1.bf16.msra.mxu0 0
    %1829 = vmatprep.subr.bf16.mxu0 0
    %1830 = vmatpush1.bf16.msra.mxu0 0
    %1831 = vmatprep.subr.bf16.mxu0 0
    %1832 = vmatpush1.bf16.msra.mxu0 0
    %1833 = vmatprep.subr.bf16.mxu0 0
    %1834 = vmatpush1.bf16.msra.mxu0 0
    %1835 = vmatprep.subr.bf16.mxu0 0
    %1836 = vmatpush1.bf16.msra.mxu0 0
    %1837 = vmatprep.subr.bf16.mxu0 0
    %1838 = vmatpush1.bf16.msra.mxu0 0
    %1839 = vmatprep.subr.bf16.mxu0 0
    %1840 = vmatpush1.bf16.msra.mxu0 0
    %1841 = vmatprep.subr.bf16.mxu0 0
    %1842 = vmatpush1.bf16.msra.mxu0 0
    %1843 = vmatprep.mubr.bf16.mxu0 0
    %1844 = vmatmul.mubr.bf16.gmra.mrb[0].mxu0 %v1809
    %v1845 = vpop.f32.mrb[0].mxu0
    %v1846 = vadd.f32 %v202, %v1845
    %v1847 = vpop.f32.mrb[0].mxu0
    %v1848 = vpop.f32.mrb[0].mxu0
    %v1849 = vpop.f32.mrb[0].mxu0
    %1850 = vdwg.mxu0
    %v1851 = vmul.f32 %v1759, %v1846
    %v1852 = vadd.f32 %v1666, %v1851
    %v1853 = vpack.c.bf16 %v1852, %v1852
    %v1855 = vsel %vm130, %v1853, 0
    %1857 = vmatprep.subr.bf16.mxu0 0
    %1858 = vmatpush1.bf16.msra.mxu0 %v149
    %1859 = vmatprep.subr.bf16.mxu0 0
    %1860 = vmatpush1.bf16.msra.mxu0 %v150
    %1861 = vmatprep.subr.bf16.mxu0 0
    %1862 = vmatpush1.bf16.msra.mxu0 0
    %1863 = vmatprep.subr.bf16.mxu0 0
    %1864 = vmatpush1.bf16.msra.mxu0 0
    %1865 = vmatprep.subr.bf16.mxu0 0
    %1866 = vmatpush1.bf16.msra.mxu0 0
    %1867 = vmatprep.subr.bf16.mxu0 0
    %1868 = vmatpush1.bf16.msra.mxu0 0
    %1869 = vmatprep.subr.bf16.mxu0 0
    %1870 = vmatpush1.bf16.msra.mxu0 0
    %1871 = vmatprep.subr.bf16.mxu0 0
    %1872 = vmatpush1.bf16.msra.mxu0 0
    %1873 = vmatprep.subr.bf16.mxu0 0
    %1874 = vmatpush1.bf16.msra.mxu0 0
    %1875 = vmatprep.subr.bf16.mxu0 0
    %1876 = vmatpush1.bf16.msra.mxu0 0
    %1877 = vmatprep.subr.bf16.mxu0 0
    %1878 = vmatpush1.bf16.msra.mxu0 0
    %1879 = vmatprep.subr.bf16.mxu0 0
    %1880 = vmatpush1.bf16.msra.mxu0 0
    %1881 = vmatprep.subr.bf16.mxu0 0
    %1882 = vmatpush1.bf16.msra.mxu0 0
    %1883 = vmatprep.subr.bf16.mxu0 0
    %1884 = vmatpush1.bf16.msra.mxu0 0
    %1885 = vmatprep.subr.bf16.mxu0 0
    %1886 = vmatpush1.bf16.msra.mxu0 0
    %1887 = vmatprep.subr.bf16.mxu0 0
    %1888 = vmatpush1.bf16.msra.mxu0 0
    %1889 = vmatprep.mubr.bf16.mxu0 0
    %1890 = vmatmul.mubr.bf16.gmra.mrb[0].mxu0 %v1855
    %v1891 = vpop.f32.mrb[0].mxu0
    %v1892 = vadd.f32 %v139, %v1891
    %v1893 = vpop.f32.mrb[0].mxu0
    %v1894 = vpop.f32.mrb[0].mxu0
    %v1895 = vpop.f32.mrb[0].mxu0
    %1896 = vdwg.mxu0
    %v1897 = vtanh.pop %v1892
    %v1898 = vpack.c.bf16 %v1897, %v1897
    %v1900 = vsel %vm130, %v1898, 0
    %1902 = vmatprep.subr.bf16.mxu0 0
    %1903 = vmatpush1.bf16.msra.mxu0 %v212
    %1904 = vmatprep.subr.bf16.mxu0 0
    %1905 = vmatpush1.bf16.msra.mxu0 %v213
    %1906 = vmatprep.subr.bf16.mxu0 0
    %1907 = vmatpush1.bf16.msra.mxu0 0
    %1908 = vmatprep.subr.bf16.mxu0 0
    %1909 = vmatpush1.bf16.msra.mxu0 0
    %1910 = vmatprep.subr.bf16.mxu0 0
    %1911 = vmatpush1.bf16.msra.mxu0 0
    %1912 = vmatprep.subr.bf16.mxu0 0
    %1913 = vmatpush1.bf16.msra.mxu0 0
    %1914 = vmatprep.subr.bf16.mxu0 0
    %1915 = vmatpush1.bf16.msra.mxu0 0
    %1916 = vmatprep.subr.bf16.mxu0 0
    %1917 = vmatpush1.bf16.msra.mxu0 0
    %1918 = vmatprep.subr.bf16.mxu0 0
    %1919 = vmatpush1.bf16.msra.mxu0 0
    %1920 = vmatprep.subr.bf16.mxu0 0
    %1921 = vmatpush1.bf16.msra.mxu0 0
    %1922 = vmatprep.subr.bf16.mxu0 0
    %1923 = vmatpush1.bf16.msra.mxu0 0
    %1924 = vmatprep.subr.bf16.mxu0 0
    %1925 = vmatpush1.bf16.msra.mxu0 0
    %1926 = vmatprep.subr.bf16.mxu0 0
    %1927 = vmatpush1.bf16.msra.mxu0 0
    %1928 = vmatprep.subr.bf16.mxu0 0
    %1929 = vmatpush1.bf16.msra.mxu0 0
    %1930 = vmatprep.subr.bf16.mxu0 0
    %1931 = vmatpush1.bf16.msra.mxu0 0
    %1932 = vmatprep.subr.bf16.mxu0 0
    %1933 = vmatpush1.bf16.msra.mxu0 0
    %1934 = vmatprep.mubr.bf16.mxu0 0
    %1935 = vmatmul.mubr.bf16.gmra.mrb[0].mxu0 %v1900
    %v1936 = vpop.f32.mrb[0].mxu0
    %v1937 = vadd.f32 %v202, %v1936
    %v1938 = vpop.f32.mrb[0].mxu0
    %v1939 = vpop.f32.mrb[0].mxu0
    %v1940 = vpop.f32.mrb[0].mxu0
    %1941 = vdwg.mxu0
    %v1942 = vstv %s1668
    %v1943 = vmul.f32 %v1942, %v1937
    %v1944 = vadd.f32 %v1666, %v1943
    %v1945 = vpack.c.bf16 %v1944, %v1944
    %v1947 = vsel %vm130, %v1945, 0
    %1949 = vmatprep.subr.bf16.mxu0 0
    %1950 = vmatpush1.bf16.msra.mxu0 %v149
    %1951 = vmatprep.subr.bf16.mxu0 0
    %1952 = vmatpush1.bf16.msra.mxu0 %v150
    %1953 = vmatprep.subr.bf16.mxu0 0
    %1954 = vmatpush1.bf16.msra.mxu0 0
    %1955 = vmatprep.subr.bf16.mxu0 0
    %1956 = vmatpush1.bf16.msra.mxu0 0
    %1957 = vmatprep.subr.bf16.mxu0 0
    %1958 = vmatpush1.bf16.msra.mxu0 0
    %1959 = vmatprep.subr.bf16.mxu0 0
    %1960 = vmatpush1.bf16.msra.mxu0 0
    %1961 = vmatprep.subr.bf16.mxu0 0
    %1962 = vmatpush1.bf16.msra.mxu0 0
    %1963 = vmatprep.subr.bf16.mxu0 0
    %1964 = vmatpush1.bf16.msra.mxu0 0
    %1965 = vmatprep.subr.bf16.mxu0 0
    %1966 = vmatpush1.bf16.msra.mxu0 0
    %1967 = vmatprep.subr.bf16.mxu0 0
    %1968 = vmatpush1.bf16.msra.mxu0 0
    %1969 = vmatprep.subr.bf16.mxu0 0
    %1970 = vmatpush1.bf16.msra.mxu0 0
    %1971 = vmatprep.subr.bf16.mxu0 0
    %1972 = vmatpush1.bf16.msra.mxu0 0
    %1973 = vmatprep.subr.bf16.mxu0 0
    %1974 = vmatpush1.bf16.msra.mxu0 0
    %1975 = vmatprep.subr.bf16.mxu0 0
    %1976 = vmatpush1.bf16.msra.mxu0 0
    %1977 = vmatprep.subr.bf16.mxu0 0
    %1978 = vmatpush1.bf16.msra.mxu0 0
    %1979 = vmatprep.subr.bf16.mxu0 0
    %1980 = vmatpush1.bf16.msra.mxu0 0
    %1981 = vmatprep.mubr.bf16.mxu0 0
    %1982 = vmatmul.mubr.bf16.gmra.mrb[0].mxu0 %v1947
    %v1983 = vpop.f32.mrb[0].mxu0
    %v1984 = vadd.f32 %v139, %v1983
    %v1985 = vpop.f32.mrb[0].mxu0
    %v1986 = vpop.f32.mrb[0].mxu0
    %v1987 = vpop.f32.mrb[0].mxu0
    %1988 = vdwg.mxu0
    %v1989 = vtanh.pop %v1984
    %v1990 = vpack.c.bf16 %v1989, %v1989
    %v1992 = vsel %vm130, %v1990, 0
    %1994 = vmatprep.subr.bf16.mxu0 0
    %1995 = vmatpush1.bf16.msra.mxu0 %v212
    %1996 = vmatprep.subr.bf16.mxu0 0
    %1997 = vmatpush1.bf16.msra.mxu0 %v213
    %1998 = vmatprep.subr.bf16.mxu0 0
    %1999 = vmatpush1.bf16.msra.mxu0 0
    %2000 = vmatprep.subr.bf16.mxu0 0
    %2001 = vmatpush1.bf16.msra.mxu0 0
    %2002 = vmatprep.subr.bf16.mxu0 0
    %2003 = vmatpush1.bf16.msra.mxu0 0
    %2004 = vmatprep.subr.bf16.mxu0 0
    %2005 = vmatpush1.bf16.msra.mxu0 0
    %2006 = vmatprep.subr.bf16.mxu0 0
    %2007 = vmatpush1.bf16.msra.mxu0 0
    %2008 = vmatprep.subr.bf16.mxu0 0
    %2009 = vmatpush1.bf16.msra.mxu0 0
    %2010 = vmatprep.subr.bf16.mxu0 0
    %2011 = vmatpush1.bf16.msra.mxu0 0
    %2012 = vmatprep.subr.bf16.mxu0 0
    %2013 = vmatpush1.bf16.msra.mxu0 0
    %2014 = vmatprep.subr.bf16.mxu0 0
    %2015 = vmatpush1.bf16.msra.mxu0 0
    %2016 = vmatprep.subr.bf16.mxu0 0
    %2017 = vmatpush1.bf16.msra.mxu0 0
    %2018 = vmatprep.subr.bf16.mxu0 0
    %2019 = vmatpush1.bf16.msra.mxu0 0
    %2020 = vmatprep.subr.bf16.mxu0 0
    %2021 = vmatpush1.bf16.msra.mxu0 0
    %2022 = vmatprep.subr.bf16.mxu0 0
    %2023 = vmatpush1.bf16.msra.mxu0 0
    %2024 = vmatprep.subr.bf16.mxu0 0
    %2025 = vmatpush1.bf16.msra.mxu0 0
    %2026 = vmatprep.mubr.bf16.mxu0 0
    %2027 = vmatmul.mubr.bf16.gmra.mrb[0].mxu0 %v1992
    %v2028 = vpop.f32.mrb[0].mxu0
    %v2029 = vadd.f32 %v202, %v2028
    %v2030 = vpop.f32.mrb[0].mxu0
    %v2031 = vpop.f32.mrb[0].mxu0
    %v2032 = vpop.f32.mrb[0].mxu0
    %2033 = vdwg.mxu0
    %s2034 = smul.f32 %s1668, 0.16666667
    %v2035 = vadd.f32 %v1846, %v1937
    %v2036 = vmul.f32 %v2035, 2.0
    %v2037 = vadd.f32 %v1754, %v2036
    %v2038 = vadd.f32 %v2037, %v2029
    %v2039 = vstv %s2034
    %v2040 = vmul.f32 %v2039, %v2038
    %v2041 = vadd.f32 %v1666, %v2040
    %2042 = vst.msk [vmem:[#allocation2 + $0x28] sm:$0xff] %vm130, %v2041
    %s2043 = sld [smem:[#allocation3 + $0x5]]
    %s2044 = smul.f32 %s2043, 0.5
    %v2045 = vpack.c.bf16 %v2041, %v2041
    %v2047 = vsel %vm130, %v2045, 0
    %2049 = vmatprep.subr.bf16.mxu0 0
    %2050 = vmatpush1.bf16.msra.mxu0 %v149
    %2051 = vmatprep.subr.bf16.mxu0 0
    %2052 = vmatpush1.bf16.msra.mxu0 %v150
    %2053 = vmatprep.subr.bf16.mxu0 0
    %2054 = vmatpush1.bf16.msra.mxu0 0
    %2055 = vmatprep.subr.bf16.mxu0 0
    %2056 = vmatpush1.bf16.msra.mxu0 0
    %2057 = vmatprep.subr.bf16.mxu0 0
    %2058 = vmatpush1.bf16.msra.mxu0 0
    %2059 = vmatprep.subr.bf16.mxu0 0
    %2060 = vmatpush1.bf16.msra.mxu0 0
    %2061 = vmatprep.subr.bf16.mxu0 0
    %2062 = vmatpush1.bf16.msra.mxu0 0
    %2063 = vmatprep.subr.bf16.mxu0 0
    %2064 = vmatpush1.bf16.msra.mxu0 0
    %2065 = vmatprep.subr.bf16.mxu0 0
    %2066 = vmatpush1.bf16.msra.mxu0 0
    %2067 = vmatprep.subr.bf16.mxu0 0
    %2068 = vmatpush1.bf16.msra.mxu0 0
    %2069 = vmatprep.subr.bf16.mxu0 0
    %2070 = vmatpush1.bf16.msra.mxu0 0
    %2071 = vmatprep.subr.bf16.mxu0 0
    %2072 = vmatpush1.bf16.msra.mxu0 0
    %2073 = vmatprep.subr.bf16.mxu0 0
    %2074 = vmatpush1.bf16.msra.mxu0 0
    %2075 = vmatprep.subr.bf16.mxu0 0
    %2076 = vmatpush1.bf16.msra.mxu0 0
    %2077 = vmatprep.subr.bf16.mxu0 0
    %2078 = vmatpush1.bf16.msra.mxu0 0
    %2079 = vmatprep.subr.bf16.mxu0 0
    %2080 = vmatpush1.bf16.msra.mxu0 0
    %2081 = vmatprep.mubr.bf16.mxu0 0
    %2082 = vmatmul.mubr.bf16.gmra.mrb[0].mxu0 %v2047
    %v2083 = vpop.f32.mrb[0].mxu0
    %v2084 = vadd.f32 %v139, %v2083
    %v2085 = vpop.f32.mrb[0].mxu0
    %v2086 = vpop.f32.mrb[0].mxu0
    %v2087 = vpop.f32.mrb[0].mxu0
    %2088 = vdwg.mxu0
    %v2089 = vtanh.pop %v2084
    %v2090 = vpack.c.bf16 %v2089, %v2089
    %v2092 = vsel %vm130, %v2090, 0
    %2094 = vmatprep.subr.bf16.mxu0 0
    %2095 = vmatpush1.bf16.msra.mxu0 %v212
    %2096 = vmatprep.subr.bf16.mxu0 0
    %2097 = vmatpush1.bf16.msra.mxu0 %v213
    %2098 = vmatprep.subr.bf16.mxu0 0
    %2099 = vmatpush1.bf16.msra.mxu0 0
    %2100 = vmatprep.subr.bf16.mxu0 0
    %2101 = vmatpush1.bf16.msra.mxu0 0
    %2102 = vmatprep.subr.bf16.mxu0 0
    %2103 = vmatpush1.bf16.msra.mxu0 0
    %2104 = vmatprep.subr.bf16.mxu0 0
    %2105 = vmatpush1.bf16.msra.mxu0 0
    %2106 = vmatprep.subr.bf16.mxu0 0
    %2107 = vmatpush1.bf16.msra.mxu0 0
    %2108 = vmatprep.subr.bf16.mxu0 0
    %2109 = vmatpush1.bf16.msra.mxu0 0
    %2110 = vmatprep.subr.bf16.mxu0 0
    %2111 = vmatpush1.bf16.msra.mxu0 0
    %2112 = vmatprep.subr.bf16.mxu0 0
    %2113 = vmatpush1.bf16.msra.mxu0 0
    %2114 = vmatprep.subr.bf16.mxu0 0
    %2115 = vmatpush1.bf16.msra.mxu0 0
    %2116 = vmatprep.subr.bf16.mxu0 0
    %2117 = vmatpush1.bf16.msra.mxu0 0
    %2118 = vmatprep.subr.bf16.mxu0 0
    %2119 = vmatpush1.bf16.msra.mxu0 0
    %2120 = vmatprep.subr.bf16.mxu0 0
    %2121 = vmatpush1.bf16.msra.mxu0 0
    %2122 = vmatprep.subr.bf16.mxu0 0
    %2123 = vmatpush1.bf16.msra.mxu0 0
    %2124 = vmatprep.subr.bf16.mxu0 0
    %2125 = vmatpush1.bf16.msra.mxu0 0
    %2126 = vmatprep.mubr.bf16.mxu0 0
    %2127 = vmatmul.mubr.bf16.gmra.mrb[0].mxu0 %v2092
    %v2128 = vpop.f32.mrb[0].mxu0
    %v2129 = vadd.f32 %v202, %v2128
    %v2130 = vpop.f32.mrb[0].mxu0
    %v2131 = vpop.f32.mrb[0].mxu0
    %v2132 = vpop.f32.mrb[0].mxu0
    %2133 = vdwg.mxu0
    %v2134 = vstv %s2044
    %v2135 = vmul.f32 %v2134, %v2129
    %v2136 = vadd.f32 %v2041, %v2135
    %v2137 = vpack.c.bf16 %v2136, %v2136
    %v2139 = vsel %vm130, %v2137, 0
    %2141 = vmatprep.subr.bf16.mxu0 0
    %2142 = vmatpush1.bf16.msra.mxu0 %v149
    %2143 = vmatprep.subr.bf16.mxu0 0
    %2144 = vmatpush1.bf16.msra.mxu0 %v150
    %2145 = vmatprep.subr.bf16.mxu0 0
    %2146 = vmatpush1.bf16.msra.mxu0 0
    %2147 = vmatprep.subr.bf16.mxu0 0
    %2148 = vmatpush1.bf16.msra.mxu0 0
    %2149 = vmatprep.subr.bf16.mxu0 0
    %2150 = vmatpush1.bf16.msra.mxu0 0
    %2151 = vmatprep.subr.bf16.mxu0 0
    %2152 = vmatpush1.bf16.msra.mxu0 0
    %2153 = vmatprep.subr.bf16.mxu0 0
    %2154 = vmatpush1.bf16.msra.mxu0 0
    %2155 = vmatprep.subr.bf16.mxu0 0
    %2156 = vmatpush1.bf16.msra.mxu0 0
    %2157 = vmatprep.subr.bf16.mxu0 0
    %2158 = vmatpush1.bf16.msra.mxu0 0
    %2159 = vmatprep.subr.bf16.mxu0 0
    %2160 = vmatpush1.bf16.msra.mxu0 0
    %2161 = vmatprep.subr.bf16.mxu0 0
    %2162 = vmatpush1.bf16.msra.mxu0 0
    %2163 = vmatprep.subr.bf16.mxu0 0
    %2164 = vmatpush1.bf16.msra.mxu0 0
    %2165 = vmatprep.subr.bf16.mxu0 0
    %2166 = vmatpush1.bf16.msra.mxu0 0
    %2167 = vmatprep.subr.bf16.mxu0 0
    %2168 = vmatpush1.bf16.msra.mxu0 0
    %2169 = vmatprep.subr.bf16.mxu0 0
    %2170 = vmatpush1.bf16.msra.mxu0 0
    %2171 = vmatprep.subr.bf16.mxu0 0
    %2172 = vmatpush1.bf16.msra.mxu0 0
    %2173 = vmatprep.mubr.bf16.mxu0 0
    %2174 = vmatmul.mubr.bf16.gmra.mrb[0].mxu0 %v2139
    %v2175 = vpop.f32.mrb[0].mxu0
    %v2176 = vadd.f32 %v139, %v2175
    %v2177 = vpop.f32.mrb[0].mxu0
    %v2178 = vpop.f32.mrb[0].mxu0
    %v2179 = vpop.f32.mrb[0].mxu0
    %2180 = vdwg.mxu0
    %v2181 = vtanh.pop %v2176
    %v2182 = vpack.c.bf16 %v2181, %v2181
    %v2184 = vsel %vm130, %v2182, 0
    %2186 = vmatprep.subr.bf16.mxu0 0
    %2187 = vmatpush1.bf16.msra.mxu0 %v212
    %2188 = vmatprep.subr.bf16.mxu0 0
    %2189 = vmatpush1.bf16.msra.mxu0 %v213
    %2190 = vmatprep.subr.bf16.mxu0 0
    %2191 = vmatpush1.bf16.msra.mxu0 0
    %2192 = vmatprep.subr.bf16.mxu0 0
    %2193 = vmatpush1.bf16.msra.mxu0 0
    %2194 = vmatprep.subr.bf16.mxu0 0
    %2195 = vmatpush1.bf16.msra.mxu0 0
    %2196 = vmatprep.subr.bf16.mxu0 0
    %2197 = vmatpush1.bf16.msra.mxu0 0
    %2198 = vmatprep.subr.bf16.mxu0 0
    %2199 = vmatpush1.bf16.msra.mxu0 0
    %2200 = vmatprep.subr.bf16.mxu0 0
    %2201 = vmatpush1.bf16.msra.mxu0 0
    %2202 = vmatprep.subr.bf16.mxu0 0
    %2203 = vmatpush1.bf16.msra.mxu0 0
    %2204 = vmatprep.subr.bf16.mxu0 0
    %2205 = vmatpush1.bf16.msra.mxu0 0
    %2206 = vmatprep.subr.bf16.mxu0 0
    %2207 = vmatpush1.bf16.msra.mxu0 0
    %2208 = vmatprep.subr.bf16.mxu0 0
    %2209 = vmatpush1.bf16.msra.mxu0 0
    %2210 = vmatprep.subr.bf16.mxu0 0
    %2211 = vmatpush1.bf16.msra.mxu0 0
    %2212 = vmatprep.subr.bf16.mxu0 0
    %2213 = vmatpush1.bf16.msra.mxu0 0
    %2214 = vmatprep.subr.bf16.mxu0 0
    %2215 = vmatpush1.bf16.msra.mxu0 0
    %2216 = vmatprep.subr.bf16.mxu0 0
    %2217 = vmatpush1.bf16.msra.mxu0 0
    %2218 = vmatprep.mubr.bf16.mxu0 0
    %2219 = vmatmul.mubr.bf16.gmra.mrb[0].mxu0 %v2184
    %v2220 = vpop.f32.mrb[0].mxu0
    %v2221 = vadd.f32 %v202, %v2220
    %v2222 = vpop.f32.mrb[0].mxu0
    %v2223 = vpop.f32.mrb[0].mxu0
    %v2224 = vpop.f32.mrb[0].mxu0
    %2225 = vdwg.mxu0
    %v2226 = vmul.f32 %v2134, %v2221
    %v2227 = vadd.f32 %v2041, %v2226
    %v2228 = vpack.c.bf16 %v2227, %v2227
    %v2230 = vsel %vm130, %v2228, 0
    %2232 = vmatprep.subr.bf16.mxu0 0
    %2233 = vmatpush1.bf16.msra.mxu0 %v149
    %2234 = vmatprep.subr.bf16.mxu0 0
    %2235 = vmatpush1.bf16.msra.mxu0 %v150
    %2236 = vmatprep.subr.bf16.mxu0 0
    %2237 = vmatpush1.bf16.msra.mxu0 0
    %2238 = vmatprep.subr.bf16.mxu0 0
    %2239 = vmatpush1.bf16.msra.mxu0 0
    %2240 = vmatprep.subr.bf16.mxu0 0
    %2241 = vmatpush1.bf16.msra.mxu0 0
    %2242 = vmatprep.subr.bf16.mxu0 0
    %2243 = vmatpush1.bf16.msra.mxu0 0
    %2244 = vmatprep.subr.bf16.mxu0 0
    %2245 = vmatpush1.bf16.msra.mxu0 0
    %2246 = vmatprep.subr.bf16.mxu0 0
    %2247 = vmatpush1.bf16.msra.mxu0 0
    %2248 = vmatprep.subr.bf16.mxu0 0
    %2249 = vmatpush1.bf16.msra.mxu0 0
    %2250 = vmatprep.subr.bf16.mxu0 0
    %2251 = vmatpush1.bf16.msra.mxu0 0
    %2252 = vmatprep.subr.bf16.mxu0 0
    %2253 = vmatpush1.bf16.msra.mxu0 0
    %2254 = vmatprep.subr.bf16.mxu0 0
    %2255 = vmatpush1.bf16.msra.mxu0 0
    %2256 = vmatprep.subr.bf16.mxu0 0
    %2257 = vmatpush1.bf16.msra.mxu0 0
    %2258 = vmatprep.subr.bf16.mxu0 0
    %2259 = vmatpush1.bf16.msra.mxu0 0
    %2260 = vmatprep.subr.bf16.mxu0 0
    %2261 = vmatpush1.bf16.msra.mxu0 0
    %2262 = vmatprep.subr.bf16.mxu0 0
    %2263 = vmatpush1.bf16.msra.mxu0 0
    %2264 = vmatprep.mubr.bf16.mxu0 0
    %2265 = vmatmul.mubr.bf16.gmra.mrb[0].mxu0 %v2230
    %v2266 = vpop.f32.mrb[0].mxu0
    %v2267 = vadd.f32 %v139, %v2266
    %v2268 = vpop.f32.mrb[0].mxu0
    %v2269 = vpop.f32.mrb[0].mxu0
    %v2270 = vpop.f32.mrb[0].mxu0
    %2271 = vdwg.mxu0
    %v2272 = vtanh.pop %v2267
    %v2273 = vpack.c.bf16 %v2272, %v2272
    %v2275 = vsel %vm130, %v2273, 0
    %2277 = vmatprep.subr.bf16.mxu0 0
    %2278 = vmatpush1.bf16.msra.mxu0 %v212
    %2279 = vmatprep.subr.bf16.mxu0 0
    %2280 = vmatpush1.bf16.msra.mxu0 %v213
    %2281 = vmatprep.subr.bf16.mxu0 0
    %2282 = vmatpush1.bf16.msra.mxu0 0
    %2283 = vmatprep.subr.bf16.mxu0 0
    %2284 = vmatpush1.bf16.msra.mxu0 0
    %2285 = vmatprep.subr.bf16.mxu0 0
    %2286 = vmatpush1.bf16.msra.mxu0 0
    %2287 = vmatprep.subr.bf16.mxu0 0
    %2288 = vmatpush1.bf16.msra.mxu0 0
    %2289 = vmatprep.subr.bf16.mxu0 0
    %2290 = vmatpush1.bf16.msra.mxu0 0
    %2291 = vmatprep.subr.bf16.mxu0 0
    %2292 = vmatpush1.bf16.msra.mxu0 0
    %2293 = vmatprep.subr.bf16.mxu0 0
    %2294 = vmatpush1.bf16.msra.mxu0 0
    %2295 = vmatprep.subr.bf16.mxu0 0
    %2296 = vmatpush1.bf16.msra.mxu0 0
    %2297 = vmatprep.subr.bf16.mxu0 0
    %2298 = vmatpush1.bf16.msra.mxu0 0
    %2299 = vmatprep.subr.bf16.mxu0 0
    %2300 = vmatpush1.bf16.msra.mxu0 0
    %2301 = vmatprep.subr.bf16.mxu0 0
    %2302 = vmatpush1.bf16.msra.mxu0 0
    %2303 = vmatprep.subr.bf16.mxu0 0
    %2304 = vmatpush1.bf16.msra.mxu0 0
    %2305 = vmatprep.subr.bf16.mxu0 0
    %2306 = vmatpush1.bf16.msra.mxu0 0
    %2307 = vmatprep.subr.bf16.mxu0 0
    %2308 = vmatpush1.bf16.msra.mxu0 0
    %2309 = vmatprep.mubr.bf16.mxu0 0
    %2310 = vmatmul.mubr.bf16.gmra.mrb[0].mxu0 %v2275
    %v2311 = vpop.f32.mrb[0].mxu0
    %v2312 = vadd.f32 %v202, %v2311
    %v2313 = vpop.f32.mrb[0].mxu0
    %v2314 = vpop.f32.mrb[0].mxu0
    %v2315 = vpop.f32.mrb[0].mxu0
    %2316 = vdwg.mxu0
    %v2317 = vstv %s2043
    %v2318 = vmul.f32 %v2317, %v2312
    %v2319 = vadd.f32 %v2041, %v2318
    %v2320 = vpack.c.bf16 %v2319, %v2319
    %v2322 = vsel %vm130, %v2320, 0
    %2324 = vmatprep.subr.bf16.mxu0 0
    %2325 = vmatpush1.bf16.msra.mxu0 %v149
    %2326 = vmatprep.subr.bf16.mxu0 0
    %2327 = vmatpush1.bf16.msra.mxu0 %v150
    %2328 = vmatprep.subr.bf16.mxu0 0
    %2329 = vmatpush1.bf16.msra.mxu0 0
    %2330 = vmatprep.subr.bf16.mxu0 0
    %2331 = vmatpush1.bf16.msra.mxu0 0
    %2332 = vmatprep.subr.bf16.mxu0 0
    %2333 = vmatpush1.bf16.msra.mxu0 0
    %2334 = vmatprep.subr.bf16.mxu0 0
    %2335 = vmatpush1.bf16.msra.mxu0 0
    %2336 = vmatprep.subr.bf16.mxu0 0
    %2337 = vmatpush1.bf16.msra.mxu0 0
    %2338 = vmatprep.subr.bf16.mxu0 0
    %2339 = vmatpush1.bf16.msra.mxu0 0
    %2340 = vmatprep.subr.bf16.mxu0 0
    %2341 = vmatpush1.bf16.msra.mxu0 0
    %2342 = vmatprep.subr.bf16.mxu0 0
    %2343 = vmatpush1.bf16.msra.mxu0 0
    %2344 = vmatprep.subr.bf16.mxu0 0
    %2345 = vmatpush1.bf16.msra.mxu0 0
    %2346 = vmatprep.subr.bf16.mxu0 0
    %2347 = vmatpush1.bf16.msra.mxu0 0
    %2348 = vmatprep.subr.bf16.mxu0 0
    %2349 = vmatpush1.bf16.msra.mxu0 0
    %2350 = vmatprep.subr.bf16.mxu0 0
    %2351 = vmatpush1.bf16.msra.mxu0 0
    %2352 = vmatprep.subr.bf16.mxu0 0
    %2353 = vmatpush1.bf16.msra.mxu0 0
    %2354 = vmatprep.subr.bf16.mxu0 0
    %2355 = vmatpush1.bf16.msra.mxu0 0
    %2356 = vmatprep.mubr.bf16.mxu0 0
    %2357 = vmatmul.mubr.bf16.gmra.mrb[0].mxu0 %v2322
    %v2358 = vpop.f32.mrb[0].mxu0
    %v2359 = vadd.f32 %v139, %v2358
    %v2360 = vpop.f32.mrb[0].mxu0
    %v2361 = vpop.f32.mrb[0].mxu0
    %v2362 = vpop.f32.mrb[0].mxu0
    %2363 = vdwg.mxu0
    %v2364 = vtanh.pop %v2359
    %v2365 = vpack.c.bf16 %v2364, %v2364
    %v2367 = vsel %vm130, %v2365, 0
    %2369 = vmatprep.subr.bf16.mxu0 0
    %2370 = vmatpush1.bf16.msra.mxu0 %v212
    %2371 = vmatprep.subr.bf16.mxu0 0
    %2372 = vmatpush1.bf16.msra.mxu0 %v213
    %2373 = vmatprep.subr.bf16.mxu0 0
    %2374 = vmatpush1.bf16.msra.mxu0 0
    %2375 = vmatprep.subr.bf16.mxu0 0
    %2376 = vmatpush1.bf16.msra.mxu0 0
    %2377 = vmatprep.subr.bf16.mxu0 0
    %2378 = vmatpush1.bf16.msra.mxu0 0
    %2379 = vmatprep.subr.bf16.mxu0 0
    %2380 = vmatpush1.bf16.msra.mxu0 0
    %2381 = vmatprep.subr.bf16.mxu0 0
    %2382 = vmatpush1.bf16.msra.mxu0 0
    %2383 = vmatprep.subr.bf16.mxu0 0
    %2384 = vmatpush1.bf16.msra.mxu0 0
    %2385 = vmatprep.subr.bf16.mxu0 0
    %2386 = vmatpush1.bf16.msra.mxu0 0
    %2387 = vmatprep.subr.bf16.mxu0 0
    %2388 = vmatpush1.bf16.msra.mxu0 0
    %2389 = vmatprep.subr.bf16.mxu0 0
    %2390 = vmatpush1.bf16.msra.mxu0 0
    %2391 = vmatprep.subr.bf16.mxu0 0
    %2392 = vmatpush1.bf16.msra.mxu0 0
    %2393 = vmatprep.subr.bf16.mxu0 0
    %2394 = vmatpush1.bf16.msra.mxu0 0
    %2395 = vmatprep.subr.bf16.mxu0 0
    %2396 = vmatpush1.bf16.msra.mxu0 0
    %2397 = vmatprep.subr.bf16.mxu0 0
    %2398 = vmatpush1.bf16.msra.mxu0 0
    %2399 = vmatprep.subr.bf16.mxu0 0
    %2400 = vmatpush1.bf16.msra.mxu0 0
    %2401 = vmatprep.mubr.bf16.mxu0 0
    %2402 = vmatmul.mubr.bf16.gmra.mrb[0].mxu0 %v2367
    %v2403 = vpop.f32.mrb[0].mxu0
    %v2404 = vadd.f32 %v202, %v2403
    %v2405 = vpop.f32.mrb[0].mxu0
    %v2406 = vpop.f32.mrb[0].mxu0
    %v2407 = vpop.f32.mrb[0].mxu0
    %2408 = vdwg.mxu0
    %s2409 = smul.f32 %s2043, 0.16666667
    %v2410 = vadd.f32 %v2221, %v2312
    %v2411 = vmul.f32 %v2410, 2.0
    %v2412 = vadd.f32 %v2129, %v2411
    %v2413 = vadd.f32 %v2412, %v2404
    %v2414 = vstv %s2409
    %v2415 = vmul.f32 %v2414, %v2413
    %v2416 = vadd.f32 %v2041, %v2415
    %2417 = vst.msk [vmem:[#allocation2 + $0x30] sm:$0xff] %vm130, %v2416
    %s2418 = sld [smem:[#allocation3 + $0x6]]
    %s2419 = smul.f32 %s2418, 0.5
    %v2420 = vpack.c.bf16 %v2416, %v2416
    %v2422 = vsel %vm130, %v2420, 0
    %2424 = vmatprep.subr.bf16.mxu0 0
    %2425 = vmatpush1.bf16.msra.mxu0 %v149
    %2426 = vmatprep.subr.bf16.mxu0 0
    %2427 = vmatpush1.bf16.msra.mxu0 %v150
    %2428 = vmatprep.subr.bf16.mxu0 0
    %2429 = vmatpush1.bf16.msra.mxu0 0
    %2430 = vmatprep.subr.bf16.mxu0 0
    %2431 = vmatpush1.bf16.msra.mxu0 0
    %2432 = vmatprep.subr.bf16.mxu0 0
    %2433 = vmatpush1.bf16.msra.mxu0 0
    %2434 = vmatprep.subr.bf16.mxu0 0
    %2435 = vmatpush1.bf16.msra.mxu0 0
    %2436 = vmatprep.subr.bf16.mxu0 0
    %2437 = vmatpush1.bf16.msra.mxu0 0
    %2438 = vmatprep.subr.bf16.mxu0 0
    %2439 = vmatpush1.bf16.msra.mxu0 0
    %2440 = vmatprep.subr.bf16.mxu0 0
    %2441 = vmatpush1.bf16.msra.mxu0 0
    %2442 = vmatprep.subr.bf16.mxu0 0
    %2443 = vmatpush1.bf16.msra.mxu0 0
    %2444 = vmatprep.subr.bf16.mxu0 0
    %2445 = vmatpush1.bf16.msra.mxu0 0
    %2446 = vmatprep.subr.bf16.mxu0 0
    %2447 = vmatpush1.bf16.msra.mxu0 0
    %2448 = vmatprep.subr.bf16.mxu0 0
    %2449 = vmatpush1.bf16.msra.mxu0 0
    %2450 = vmatprep.subr.bf16.mxu0 0
    %2451 = vmatpush1.bf16.msra.mxu0 0
    %2452 = vmatprep.subr.bf16.mxu0 0
    %2453 = vmatpush1.bf16.msra.mxu0 0
    %2454 = vmatprep.subr.bf16.mxu0 0
    %2455 = vmatpush1.bf16.msra.mxu0 0
    %2456 = vmatprep.mubr.bf16.mxu0 0
    %2457 = vmatmul.mubr.bf16.gmra.mrb[0].mxu0 %v2422
    %v2458 = vpop.f32.mrb[0].mxu0
    %v2459 = vadd.f32 %v139, %v2458
    %v2460 = vpop.f32.mrb[0].mxu0
    %v2461 = vpop.f32.mrb[0].mxu0
    %v2462 = vpop.f32.mrb[0].mxu0
    %2463 = vdwg.mxu0
    %v2464 = vtanh.pop %v2459
    %v2465 = vpack.c.bf16 %v2464, %v2464
    %v2467 = vsel %vm130, %v2465, 0
    %2469 = vmatprep.subr.bf16.mxu0 0
    %2470 = vmatpush1.bf16.msra.mxu0 %v212
    %2471 = vmatprep.subr.bf16.mxu0 0
    %2472 = vmatpush1.bf16.msra.mxu0 %v213
    %2473 = vmatprep.subr.bf16.mxu0 0
    %2474 = vmatpush1.bf16.msra.mxu0 0
    %2475 = vmatprep.subr.bf16.mxu0 0
    %2476 = vmatpush1.bf16.msra.mxu0 0
    %2477 = vmatprep.subr.bf16.mxu0 0
    %2478 = vmatpush1.bf16.msra.mxu0 0
    %2479 = vmatprep.subr.bf16.mxu0 0
    %2480 = vmatpush1.bf16.msra.mxu0 0
    %2481 = vmatprep.subr.bf16.mxu0 0
    %2482 = vmatpush1.bf16.msra.mxu0 0
    %2483 = vmatprep.subr.bf16.mxu0 0
    %2484 = vmatpush1.bf16.msra.mxu0 0
    %2485 = vmatprep.subr.bf16.mxu0 0
    %2486 = vmatpush1.bf16.msra.mxu0 0
    %2487 = vmatprep.subr.bf16.mxu0 0
    %2488 = vmatpush1.bf16.msra.mxu0 0
    %2489 = vmatprep.subr.bf16.mxu0 0
    %2490 = vmatpush1.bf16.msra.mxu0 0
    %2491 = vmatprep.subr.bf16.mxu0 0
    %2492 = vmatpush1.bf16.msra.mxu0 0
    %2493 = vmatprep.subr.bf16.mxu0 0
    %2494 = vmatpush1.bf16.msra.mxu0 0
    %2495 = vmatprep.subr.bf16.mxu0 0
    %2496 = vmatpush1.bf16.msra.mxu0 0
    %2497 = vmatprep.subr.bf16.mxu0 0
    %2498 = vmatpush1.bf16.msra.mxu0 0
    %2499 = vmatprep.subr.bf16.mxu0 0
    %2500 = vmatpush1.bf16.msra.mxu0 0
    %2501 = vmatprep.mubr.bf16.mxu0 0
    %2502 = vmatmul.mubr.bf16.gmra.mrb[0].mxu0 %v2467
    %v2503 = vpop.f32.mrb[0].mxu0
    %v2504 = vadd.f32 %v202, %v2503
    %v2505 = vpop.f32.mrb[0].mxu0
    %v2506 = vpop.f32.mrb[0].mxu0
    %v2507 = vpop.f32.mrb[0].mxu0
    %2508 = vdwg.mxu0
    %v2509 = vstv %s2419
    %v2510 = vmul.f32 %v2509, %v2504
    %v2511 = vadd.f32 %v2416, %v2510
    %v2512 = vpack.c.bf16 %v2511, %v2511
    %v2514 = vsel %vm130, %v2512, 0
    %2516 = vmatprep.subr.bf16.mxu0 0
    %2517 = vmatpush1.bf16.msra.mxu0 %v149
    %2518 = vmatprep.subr.bf16.mxu0 0
    %2519 = vmatpush1.bf16.msra.mxu0 %v150
    %2520 = vmatprep.subr.bf16.mxu0 0
    %2521 = vmatpush1.bf16.msra.mxu0 0
    %2522 = vmatprep.subr.bf16.mxu0 0
    %2523 = vmatpush1.bf16.msra.mxu0 0
    %2524 = vmatprep.subr.bf16.mxu0 0
    %2525 = vmatpush1.bf16.msra.mxu0 0
    %2526 = vmatprep.subr.bf16.mxu0 0
    %2527 = vmatpush1.bf16.msra.mxu0 0
    %2528 = vmatprep.subr.bf16.mxu0 0
    %2529 = vmatpush1.bf16.msra.mxu0 0
    %2530 = vmatprep.subr.bf16.mxu0 0
    %2531 = vmatpush1.bf16.msra.mxu0 0
    %2532 = vmatprep.subr.bf16.mxu0 0
    %2533 = vmatpush1.bf16.msra.mxu0 0
    %2534 = vmatprep.subr.bf16.mxu0 0
    %2535 = vmatpush1.bf16.msra.mxu0 0
    %2536 = vmatprep.subr.bf16.mxu0 0
    %2537 = vmatpush1.bf16.msra.mxu0 0
    %2538 = vmatprep.subr.bf16.mxu0 0
    %2539 = vmatpush1.bf16.msra.mxu0 0
    %2540 = vmatprep.subr.bf16.mxu0 0
    %2541 = vmatpush1.bf16.msra.mxu0 0
    %2542 = vmatprep.subr.bf16.mxu0 0
    %2543 = vmatpush1.bf16.msra.mxu0 0
    %2544 = vmatprep.subr.bf16.mxu0 0
    %2545 = vmatpush1.bf16.msra.mxu0 0
    %2546 = vmatprep.subr.bf16.mxu0 0
    %2547 = vmatpush1.bf16.msra.mxu0 0
    %2548 = vmatprep.mubr.bf16.mxu0 0
    %2549 = vmatmul.mubr.bf16.gmra.mrb[0].mxu0 %v2514
    %v2550 = vpop.f32.mrb[0].mxu0
    %v2551 = vadd.f32 %v139, %v2550
    %v2552 = vpop.f32.mrb[0].mxu0
    %v2553 = vpop.f32.mrb[0].mxu0
    %v2554 = vpop.f32.mrb[0].mxu0
    %2555 = vdwg.mxu0
    %v2556 = vtanh.pop %v2551
    %v2557 = vpack.c.bf16 %v2556, %v2556
    %v2559 = vsel %vm130, %v2557, 0
    %2561 = vmatprep.subr.bf16.mxu0 0
    %2562 = vmatpush1.bf16.msra.mxu0 %v212
    %2563 = vmatprep.subr.bf16.mxu0 0
    %2564 = vmatpush1.bf16.msra.mxu0 %v213
    %2565 = vmatprep.subr.bf16.mxu0 0
    %2566 = vmatpush1.bf16.msra.mxu0 0
    %2567 = vmatprep.subr.bf16.mxu0 0
    %2568 = vmatpush1.bf16.msra.mxu0 0
    %2569 = vmatprep.subr.bf16.mxu0 0
    %2570 = vmatpush1.bf16.msra.mxu0 0
    %2571 = vmatprep.subr.bf16.mxu0 0
    %2572 = vmatpush1.bf16.msra.mxu0 0
    %2573 = vmatprep.subr.bf16.mxu0 0
    %2574 = vmatpush1.bf16.msra.mxu0 0
    %2575 = vmatprep.subr.bf16.mxu0 0
    %2576 = vmatpush1.bf16.msra.mxu0 0
    %2577 = vmatprep.subr.bf16.mxu0 0
    %2578 = vmatpush1.bf16.msra.mxu0 0
    %2579 = vmatprep.subr.bf16.mxu0 0
    %2580 = vmatpush1.bf16.msra.mxu0 0
    %2581 = vmatprep.subr.bf16.mxu0 0
    %2582 = vmatpush1.bf16.msra.mxu0 0
    %2583 = vmatprep.subr.bf16.mxu0 0
    %2584 = vmatpush1.bf16.msra.mxu0 0
    %2585 = vmatprep.subr.bf16.mxu0 0
    %2586 = vmatpush1.bf16.msra.mxu0 0
    %2587 = vmatprep.subr.bf16.mxu0 0
    %2588 = vmatpush1.bf16.msra.mxu0 0
    %2589 = vmatprep.subr.bf16.mxu0 0
    %2590 = vmatpush1.bf16.msra.mxu0 0
    %2591 = vmatprep.subr.bf16.mxu0 0
    %2592 = vmatpush1.bf16.msra.mxu0 0
    %2593 = vmatprep.mubr.bf16.mxu0 0
    %2594 = vmatmul.mubr.bf16.gmra.mrb[0].mxu0 %v2559
    %v2595 = vpop.f32.mrb[0].mxu0
    %v2596 = vadd.f32 %v202, %v2595
    %v2597 = vpop.f32.mrb[0].mxu0
    %v2598 = vpop.f32.mrb[0].mxu0
    %v2599 = vpop.f32.mrb[0].mxu0
    %2600 = vdwg.mxu0
    %v2601 = vmul.f32 %v2509, %v2596
    %v2602 = vadd.f32 %v2416, %v2601
    %v2603 = vpack.c.bf16 %v2602, %v2602
    %v2605 = vsel %vm130, %v2603, 0
    %2607 = vmatprep.subr.bf16.mxu0 0
    %2608 = vmatpush1.bf16.msra.mxu0 %v149
    %2609 = vmatprep.subr.bf16.mxu0 0
    %2610 = vmatpush1.bf16.msra.mxu0 %v150
    %2611 = vmatprep.subr.bf16.mxu0 0
    %2612 = vmatpush1.bf16.msra.mxu0 0
    %2613 = vmatprep.subr.bf16.mxu0 0
    %2614 = vmatpush1.bf16.msra.mxu0 0
    %2615 = vmatprep.subr.bf16.mxu0 0
    %2616 = vmatpush1.bf16.msra.mxu0 0
    %2617 = vmatprep.subr.bf16.mxu0 0
    %2618 = vmatpush1.bf16.msra.mxu0 0
    %2619 = vmatprep.subr.bf16.mxu0 0
    %2620 = vmatpush1.bf16.msra.mxu0 0
    %2621 = vmatprep.subr.bf16.mxu0 0
    %2622 = vmatpush1.bf16.msra.mxu0 0
    %2623 = vmatprep.subr.bf16.mxu0 0
    %2624 = vmatpush1.bf16.msra.mxu0 0
    %2625 = vmatprep.subr.bf16.mxu0 0
    %2626 = vmatpush1.bf16.msra.mxu0 0
    %2627 = vmatprep.subr.bf16.mxu0 0
    %2628 = vmatpush1.bf16.msra.mxu0 0
    %2629 = vmatprep.subr.bf16.mxu0 0
    %2630 = vmatpush1.bf16.msra.mxu0 0
    %2631 = vmatprep.subr.bf16.mxu0 0
    %2632 = vmatpush1.bf16.msra.mxu0 0
    %2633 = vmatprep.subr.bf16.mxu0 0
    %2634 = vmatpush1.bf16.msra.mxu0 0
    %2635 = vmatprep.subr.bf16.mxu0 0
    %2636 = vmatpush1.bf16.msra.mxu0 0
    %2637 = vmatprep.subr.bf16.mxu0 0
    %2638 = vmatpush1.bf16.msra.mxu0 0
    %2639 = vmatprep.mubr.bf16.mxu0 0
    %2640 = vmatmul.mubr.bf16.gmra.mrb[0].mxu0 %v2605
    %v2641 = vpop.f32.mrb[0].mxu0
    %v2642 = vadd.f32 %v139, %v2641
    %v2643 = vpop.f32.mrb[0].mxu0
    %v2644 = vpop.f32.mrb[0].mxu0
    %v2645 = vpop.f32.mrb[0].mxu0
    %2646 = vdwg.mxu0
    %v2647 = vtanh.pop %v2642
    %v2648 = vpack.c.bf16 %v2647, %v2647
    %v2650 = vsel %vm130, %v2648, 0
    %2652 = vmatprep.subr.bf16.mxu0 0
    %2653 = vmatpush1.bf16.msra.mxu0 %v212
    %2654 = vmatprep.subr.bf16.mxu0 0
    %2655 = vmatpush1.bf16.msra.mxu0 %v213
    %2656 = vmatprep.subr.bf16.mxu0 0
    %2657 = vmatpush1.bf16.msra.mxu0 0
    %2658 = vmatprep.subr.bf16.mxu0 0
    %2659 = vmatpush1.bf16.msra.mxu0 0
    %2660 = vmatprep.subr.bf16.mxu0 0
    %2661 = vmatpush1.bf16.msra.mxu0 0
    %2662 = vmatprep.subr.bf16.mxu0 0
    %2663 = vmatpush1.bf16.msra.mxu0 0
    %2664 = vmatprep.subr.bf16.mxu0 0
    %2665 = vmatpush1.bf16.msra.mxu0 0
    %2666 = vmatprep.subr.bf16.mxu0 0
    %2667 = vmatpush1.bf16.msra.mxu0 0
    %2668 = vmatprep.subr.bf16.mxu0 0
    %2669 = vmatpush1.bf16.msra.mxu0 0
    %2670 = vmatprep.subr.bf16.mxu0 0
    %2671 = vmatpush1.bf16.msra.mxu0 0
    %2672 = vmatprep.subr.bf16.mxu0 0
    %2673 = vmatpush1.bf16.msra.mxu0 0
    %2674 = vmatprep.subr.bf16.mxu0 0
    %2675 = vmatpush1.bf16.msra.mxu0 0
    %2676 = vmatprep.subr.bf16.mxu0 0
    %2677 = vmatpush1.bf16.msra.mxu0 0
    %2678 = vmatprep.subr.bf16.mxu0 0
    %2679 = vmatpush1.bf16.msra.mxu0 0
    %2680 = vmatprep.subr.bf16.mxu0 0
    %2681 = vmatpush1.bf16.msra.mxu0 0
    %2682 = vmatprep.subr.bf16.mxu0 0
    %2683 = vmatpush1.bf16.msra.mxu0 0
    %2684 = vmatprep.mubr.bf16.mxu0 0
    %2685 = vmatmul.mubr.bf16.gmra.mrb[0].mxu0 %v2650
    %v2686 = vpop.f32.mrb[0].mxu0
    %v2687 = vadd.f32 %v202, %v2686
    %v2688 = vpop.f32.mrb[0].mxu0
    %v2689 = vpop.f32.mrb[0].mxu0
    %v2690 = vpop.f32.mrb[0].mxu0
    %2691 = vdwg.mxu0
    %v2692 = vstv %s2418
    %v2693 = vmul.f32 %v2692, %v2687
    %v2694 = vadd.f32 %v2416, %v2693
    %v2695 = vpack.c.bf16 %v2694, %v2694
    %v2697 = vsel %vm130, %v2695, 0
    %2699 = vmatprep.subr.bf16.mxu0 0
    %2700 = vmatpush1.bf16.msra.mxu0 %v149
    %2701 = vmatprep.subr.bf16.mxu0 0
    %2702 = vmatpush1.bf16.msra.mxu0 %v150
    %2703 = vmatprep.subr.bf16.mxu0 0
    %2704 = vmatpush1.bf16.msra.mxu0 0
    %2705 = vmatprep.subr.bf16.mxu0 0
    %2706 = vmatpush1.bf16.msra.mxu0 0
    %2707 = vmatprep.subr.bf16.mxu0 0
    %2708 = vmatpush1.bf16.msra.mxu0 0
    %2709 = vmatprep.subr.bf16.mxu0 0
    %2710 = vmatpush1.bf16.msra.mxu0 0
    %2711 = vmatprep.subr.bf16.mxu0 0
    %2712 = vmatpush1.bf16.msra.mxu0 0
    %2713 = vmatprep.subr.bf16.mxu0 0
    %2714 = vmatpush1.bf16.msra.mxu0 0
    %2715 = vmatprep.subr.bf16.mxu0 0
    %2716 = vmatpush1.bf16.msra.mxu0 0
    %2717 = vmatprep.subr.bf16.mxu0 0
    %2718 = vmatpush1.bf16.msra.mxu0 0
    %2719 = vmatprep.subr.bf16.mxu0 0
    %2720 = vmatpush1.bf16.msra.mxu0 0
    %2721 = vmatprep.subr.bf16.mxu0 0
    %2722 = vmatpush1.bf16.msra.mxu0 0
    %2723 = vmatprep.subr.bf16.mxu0 0
    %2724 = vmatpush1.bf16.msra.mxu0 0
    %2725 = vmatprep.subr.bf16.mxu0 0
    %2726 = vmatpush1.bf16.msra.mxu0 0
    %2727 = vmatprep.subr.bf16.mxu0 0
    %2728 = vmatpush1.bf16.msra.mxu0 0
    %2729 = vmatprep.subr.bf16.mxu0 0
    %2730 = vmatpush1.bf16.msra.mxu0 0
    %2731 = vmatprep.mubr.bf16.mxu0 0
    %2732 = vmatmul.mubr.bf16.gmra.mrb[0].mxu0 %v2697
    %v2733 = vpop.f32.mrb[0].mxu0
    %v2734 = vadd.f32 %v139, %v2733
    %v2735 = vpop.f32.mrb[0].mxu0
    %v2736 = vpop.f32.mrb[0].mxu0
    %v2737 = vpop.f32.mrb[0].mxu0
    %2738 = vdwg.mxu0
    %v2739 = vtanh.pop %v2734
    %v2740 = vpack.c.bf16 %v2739, %v2739
    %v2742 = vsel %vm130, %v2740, 0
    %2744 = vmatprep.subr.bf16.mxu0 0
    %2745 = vmatpush1.bf16.msra.mxu0 %v212
    %2746 = vmatprep.subr.bf16.mxu0 0
    %2747 = vmatpush1.bf16.msra.mxu0 %v213
    %2748 = vmatprep.subr.bf16.mxu0 0
    %2749 = vmatpush1.bf16.msra.mxu0 0
    %2750 = vmatprep.subr.bf16.mxu0 0
    %2751 = vmatpush1.bf16.msra.mxu0 0
    %2752 = vmatprep.subr.bf16.mxu0 0
    %2753 = vmatpush1.bf16.msra.mxu0 0
    %2754 = vmatprep.subr.bf16.mxu0 0
    %2755 = vmatpush1.bf16.msra.mxu0 0
    %2756 = vmatprep.subr.bf16.mxu0 0
    %2757 = vmatpush1.bf16.msra.mxu0 0
    %2758 = vmatprep.subr.bf16.mxu0 0
    %2759 = vmatpush1.bf16.msra.mxu0 0
    %2760 = vmatprep.subr.bf16.mxu0 0
    %2761 = vmatpush1.bf16.msra.mxu0 0
    %2762 = vmatprep.subr.bf16.mxu0 0
    %2763 = vmatpush1.bf16.msra.mxu0 0
    %2764 = vmatprep.subr.bf16.mxu0 0
    %2765 = vmatpush1.bf16.msra.mxu0 0
    %2766 = vmatprep.subr.bf16.mxu0 0
    %2767 = vmatpush1.bf16.msra.mxu0 0
    %2768 = vmatprep.subr.bf16.mxu0 0
    %2769 = vmatpush1.bf16.msra.mxu0 0
    %2770 = vmatprep.subr.bf16.mxu0 0
    %2771 = vmatpush1.bf16.msra.mxu0 0
    %2772 = vmatprep.subr.bf16.mxu0 0
    %2773 = vmatpush1.bf16.msra.mxu0 0
    %2774 = vmatprep.subr.bf16.mxu0 0
    %2775 = vmatpush1.bf16.msra.mxu0 0
    %2776 = vmatprep.mubr.bf16.mxu0 0
    %2777 = vmatmul.mubr.bf16.gmra.mrb[0].mxu0 %v2742
    %v2778 = vpop.f32.mrb[0].mxu0
    %v2779 = vadd.f32 %v202, %v2778
    %v2780 = vpop.f32.mrb[0].mxu0
    %v2781 = vpop.f32.mrb[0].mxu0
    %v2782 = vpop.f32.mrb[0].mxu0
    %2783 = vdwg.mxu0
    %s2784 = smul.f32 %s2418, 0.16666667
    %v2785 = vadd.f32 %v2596, %v2687
    %v2786 = vmul.f32 %v2785, 2.0
    %v2787 = vadd.f32 %v2504, %v2786
    %v2788 = vadd.f32 %v2787, %v2779
    %v2789 = vstv %s2784
    %v2790 = vmul.f32 %v2789, %v2788
    %v2791 = vadd.f32 %v2416, %v2790
    %2792 = vst.msk [vmem:[#allocation2 + $0x38] sm:$0xff] %vm130, %v2791
    %v2793 = vld [vmem:[#allocation2] sm:$0xff]
    %v2794 = vld [vmem:[#allocation2 + $0x8] sm:$0xff]
    %v2795 = vld [vmem:[#allocation2 + $0x10] sm:$0xff]
    %v2796 = vld [vmem:[#allocation2 + $0x18] sm:$0xff]
    %v2797 = vld [vmem:[#allocation2 + $0x20] sm:$0xff]
    %v2798 = vld [vmem:[#allocation2 + $0x28] sm:$0xff]
    %v2799 = vld [vmem:[#allocation2 + $0x30] sm:$0xff]
    %v2800 = vld [vmem:[#allocation2 + $0x38] sm:$0xff]
    %v2801 = vpack.c.bf16 %v2794, %v2793
    %v2802 = vpack.c.bf16 %v2796, %v2795
    %v2803 = vpack.c.bf16 %v2798, %v2797
    %v2804 = vpack.c.bf16 %v2800, %v2799
    %v2805 = vld [vmem:[%s8] sm:$0xf]
    %v2806 = vld [vmem:[%s8 + $0x4] sm:$0xf]
    %v2807 = vld [vmem:[%s8 + $0x8] sm:$0xf]
    %v2808 = vld [vmem:[%s8 + $0xc] sm:$0xf]
    %v2809 = vld [vmem:[%s9] sm:$0x1]
    %v2811 = vlaneseq
    %v2812 = vshrl.u32 %v2811, 7
    %v2813 = vsub.s32 0, %v2812
    %v2814 = vrot.slane %v2809, %v2813
    %v2820 = vunpack.c.l.b16 %v2805
    %v2821 = vunpack.c.l.b16 %v2806
    %v2822 = vunpack.c.l.b16 %v2807
    %v2823 = vunpack.c.l.b16 %v2808
    %v2824 = vpack.c.b16 %v2821, %v2820
    %v2825 = vpack.c.b16 %v2823, %v2822
    %v2829 = vsel %vm130, %v2801, 0
    %v2832 = vsel %vm130, %v2802, 0
    %v2835 = vsel %vm130, %v2803, 0
    %v2838 = vsel %vm130, %v2804, 0
    %2840 = vmatprep.subr.bf16.mxu0 0
    %2841 = vmatpush1.bf16.msra.mxu0 %v2824
    %2842 = vmatprep.subr.bf16.mxu0 0
    %2843 = vmatpush1.bf16.msra.mxu0 %v2825
    %2844 = vmatprep.subr.bf16.mxu0 0
    %2845 = vmatpush1.bf16.msra.mxu0 0
    %2846 = vmatprep.subr.bf16.mxu0 0
    %2847 = vmatpush1.bf16.msra.mxu0 0
    %2848 = vmatprep.subr.bf16.mxu0 0
    %2849 = vmatpush1.bf16.msra.mxu0 0
    %2850 = vmatprep.subr.bf16.mxu0 0
    %2851 = vmatpush1.bf16.msra.mxu0 0
    %2852 = vmatprep.subr.bf16.mxu0 0
    %2853 = vmatpush1.bf16.msra.mxu0 0
    %2854 = vmatprep.subr.bf16.mxu0 0
    %2855 = vmatpush1.bf16.msra.mxu0 0
    %2856 = vmatprep.subr.bf16.mxu0 0
    %2857 = vmatpush1.bf16.msra.mxu0 0
    %2858 = vmatprep.subr.bf16.mxu0 0
    %2859 = vmatpush1.bf16.msra.mxu0 0
    %2860 = vmatprep.subr.bf16.mxu0 0
    %2861 = vmatpush1.bf16.msra.mxu0 0
    %2862 = vmatprep.subr.bf16.mxu0 0
    %2863 = vmatpush1.bf16.msra.mxu0 0
    %2864 = vmatprep.subr.bf16.mxu0 0
    %2865 = vmatpush1.bf16.msra.mxu0 0
    %2866 = vmatprep.subr.bf16.mxu0 0
    %2867 = vmatpush1.bf16.msra.mxu0 0
    %2868 = vmatprep.subr.bf16.mxu0 0
    %2869 = vmatpush1.bf16.msra.mxu0 0
    %2870 = vmatprep.subr.bf16.mxu0 0
    %2871 = vmatpush1.bf16.msra.mxu0 0
    %2872 = vmatprep.mubr.bf16.mxu0 0
    %2873 = vmatmul.mubr.bf16.gmra.mrb[0].mxu0 %v2829
    %v2874 = vpop.f32.mrb[0].mxu0
    %v2875 = vadd.f32 %v2814, %v2874
    %v2876 = vpop.f32.mrb[0].mxu0
    %v2877 = vpop.f32.mrb[0].mxu0
    %v2878 = vadd.f32 %v2814, %v2877
    %v2879 = vpop.f32.mrb[0].mxu0
    %2880 = vmatprep.mubr.bf16.mxu0 0
    %2881 = vmatmul.mubr.bf16.gmra.mrb[0].mxu0 %v2832
    %v2882 = vpop.f32.mrb[0].mxu0
    %v2883 = vadd.f32 %v2814, %v2882
    %v2884 = vpop.f32.mrb[0].mxu0
    %v2885 = vpop.f32.mrb[0].mxu0
    %v2886 = vadd.f32 %v2814, %v2885
    %v2887 = vpop.f32.mrb[0].mxu0
    %2888 = vmatprep.mubr.bf16.mxu0 0
    %2889 = vmatmul.mubr.bf16.gmra.mrb[0].mxu0 %v2835
    %v2890 = vpop.f32.mrb[0].mxu0
    %v2891 = vadd.f32 %v2814, %v2890
    %v2892 = vpop.f32.mrb[0].mxu0
    %v2893 = vpop.f32.mrb[0].mxu0
    %v2894 = vadd.f32 %v2814, %v2893
    %v2895 = vpop.f32.mrb[0].mxu0
    %2896 = vmatprep.mubr.bf16.mxu0 0
    %2897 = vmatmul.mubr.bf16.gmra.mrb[0].mxu0 %v2838
    %v2898 = vpop.f32.mrb[0].mxu0
    %v2899 = vadd.f32 %v2814, %v2898
    %v2900 = vpop.f32.mrb[0].mxu0
    %v2901 = vpop.f32.mrb[0].mxu0
    %v2902 = vadd.f32 %v2814, %v2901
    %v2903 = vpop.f32.mrb[0].mxu0
    %2904 = vdwg.mxu0
    %vm2905 = vcmask 23552
    %2906 = vst.msk [vmem:[%s10] sm:$0xff] %vm2905, %v2875
    %2907 = vst.msk [vmem:[%s10 + $0x8] sm:$0xff] %vm2905, %v2878
    %2908 = vst.msk [vmem:[%s10 + $0x10] sm:$0xff] %vm2905, %v2883
    %2909 = vst.msk [vmem:[%s10 + $0x18] sm:$0xff] %vm2905, %v2886
    %2910 = vst.msk [vmem:[%s10 + $0x20] sm:$0xff] %vm2905, %v2891
    %2911 = vst.msk [vmem:[%s10 + $0x28] sm:$0xff] %vm2905, %v2894
    %2912 = vst.msk [vmem:[%s10 + $0x30] sm:$0xff] %vm2905, %v2899
    %2913 = vst.msk [vmem:[%s10 + $0x38] sm:$0xff] %vm2905, %v2902
    %2915 = vrot.lane.b32.xlu0 %v2902, 125
    %v2916 = vpop.permute.xlu0 %2915
    %vm2918 = vcmask 7168
    %2919 = vst.msk [vmem:[%s11] sm:$0xff] %vm2918, %v2916
    // Predicated region
    $region50: #{tpu_custom_call.1} parent=1 // pred_check
      _
    $region51: #{tpu_custom_call.1} parent=1 // pred_check_branch
      %2921 = sbr.rel (0) target = $region53
    $region52: #{tpu_custom_call.1} parent=1 // pred_region
      _
    $region53: #{tpu_custom_call.1} parent=1 // pred_fallthru
      _
    // Predicated region
    $region54: #{tpu_custom_call.1} parent=1 // pred_check
      _
    $region55: #{tpu_custom_call.1} parent=1 // pred_check_branch
      %2923 = sbr.rel (0) target = $region57
    $region56: #{tpu_custom_call.1} parent=1 // pred_region
      _
    $region57: #{tpu_custom_call.1} parent=1 // pred_fallthru
      _
    // Predicated region
    $region58: #{tpu_custom_call.1} parent=1 // pred_check
      _
    $region59: #{tpu_custom_call.1} parent=1 // pred_check_branch
      %2925 = sbr.rel (0) target = $region61
    $region60: #{tpu_custom_call.1} parent=1 // pred_region
      _
    $region61: #{tpu_custom_call.1} parent=1 // pred_fallthru
      _
    // Predicated region
    $region62: #{tpu_custom_call.1} parent=1 // pred_check
      _
    $region63: #{tpu_custom_call.1} parent=1 // pred_check_branch
      %2927 = sbr.rel (0) target = $region65
    $region64: #{tpu_custom_call.1} parent=1 // pred_region
      _
    $region65: #{tpu_custom_call.1} parent=1 // pred_fallthru
      _
    %2928 = vsyncpa [#allocation4], 1
    %2929 = vsyncpa [#allocation5], 1

</llo_original>
